<compile_context>
chip_gen: v6e
topology: v6e:2x2x1
jax: 0.10.0
libtpu: 0.0.40
codegen_flags: <defaults>
</compile_context>

<pallas_src>
import functools

import jax
import jax.numpy as jnp
from jax import lax
from jax.experimental import pallas as pl
from jax.experimental.pallas import tpu as pltpu


def _round_up(v, m):
    return (v + m - 1) // m * m


def _middle_flow_kernel(xp_ref,
                        dw1_ref, pw1_ref, b1_ref,
                        dw2_ref, pw2_ref, b2_ref,
                        dw3_ref, pw3_ref, b3_ref,
                        o_ref,
                        s1_ref, s2_ref,
                        *, H, W, K, p, C1, C2):
    # xp_ref : (Hp, Wp, C1)  spatially + channel zero-padded input (one batch element)
    # dwX_ref: (K, K, C)     depthwise weights (channel-padded)
    # pwX_ref: (Cin, C2)     pointwise weights, bf16, channel-padded
    # bX_ref : (1, C2)       effective bias = dw_b @ pw_w + pw_b (f32, padded)
    # o_ref  : (H, W, C2)
    # s1/s2  : (Hp, Wp, C2)  VMEM scratch for padded intermediate activations

    def dwsep(load_tap, dw_ref, pw_ref, b_ref, cin, cout):
        # ReLU fused into each tap load; depthwise accumulate in f32 on the VPU.
        acc = jnp.zeros((H, W, cin), dtype=jnp.float32)
        for dy in range(K):
            for dx in range(K):
                tap = jnp.maximum(load_tap(dy, dx), 0.0)
                acc = acc + tap * dw_ref[dy, dx, :]
        # Pointwise 1x1 conv on the MXU: bf16 inputs, f32 accumulation.
        z = jnp.dot(acc.reshape(H * W, cin).astype(jnp.bfloat16), pw_ref[...],
                    preferred_element_type=jnp.float32)
        z = z + b_ref[...]  # (1, cout) broadcasts over (H*W, cout)
        return z.reshape(H, W, cout)

    # Block 1: ReLU -> DWSep(C1 -> C2), reading the already-padded HBM input tile.
    y1 = dwsep(lambda dy, dx: xp_ref[dy:dy + H, dx:dx + W, :],
               dw1_ref, pw1_ref, b1_ref, C1, C2)
    s1_ref[...] = jnp.zeros_like(s1_ref)          # zero halo (and alignment columns)
    s1_ref[p:p + H, p:p + W, :] = y1

    # Block 2: ReLU -> DWSep(C2 -> C2), reading the padded intermediate from VMEM.
    y2 = dwsep(lambda dy, dx: s1_ref[dy:dy + H, dx:dx + W, :],
               dw2_ref, pw2_ref, b2_ref, C2, C2)
    s2_ref[...] = jnp.zeros_like(s2_ref)
    s2_ref[p:p + H, p:p + W, :] = y2

    # Block 3: ReLU -> DWSep(C2 -> C2), writing the final output tile.
    y3 = dwsep(lambda dy, dx: s2_ref[dy:dy + H, dx:dx + W, :],
               dw3_ref, pw3_ref, b3_ref, C2, C2)
    o_ref[...] = y3.astype(o_ref.dtype)


def middle_flow_separable_conv(x_nchw, params):
    """MiddleFlowSeparableConv forward. x_nchw: (N, C, H, W) like PyTorch."""
    N, Cin, H, W = x_nchw.shape
    dw_w0 = params[0][0]
    K = dw_w0.shape[0]
    Cout = params[0][2].shape[1]
    p = K // 2

    # Lane-align channels (multiple of 128) and sublane-align the padded width.
    C1 = _round_up(Cin, 128)
    C2 = _round_up(Cout, 128)
    Hp = H + 2 * p
    Wp = _round_up(W + 2 * p, 8)

    # --- prepare padded weights (trace-time, outside the kernel) ---
    cins = [Cin, Cout, Cout]
    cps = [C1, C2, C2]
    flat_args = []
    for (dw_w, dw_b, pw_w, pw_b), cin, cp in zip(params, cins, cps):
        # Fold the depthwise bias into the pointwise bias (exact).
        b_eff = dw_b @ pw_w + pw_b                                     # (1, Cout)
        dw_p = jnp.pad(dw_w, ((0, 0), (0, 0), (0, cp - cin)))          # (K, K, cp)
        pw_p = jnp.pad(pw_w, ((0, cp - cin), (0, C2 - Cout)))          # (cp, C2)
        b_p = jnp.pad(b_eff, ((0, 0), (0, C2 - Cout)))                 # (1, C2)
        flat_args += [dw_p, pw_p.astype(jnp.bfloat16), b_p]

    # --- prepare padded input: NCHW -> NHWC, spatial + channel zero pad ---
    x_nhwc = jnp.transpose(x_nchw, (0, 2, 3, 1))
    xp = jnp.pad(x_nhwc, ((0, 0), (p, p), (p, Wp - W - p), (0, C1 - Cin)))

    kern = functools.partial(_middle_flow_kernel,
                             H=H, W=W, K=K, p=p, C1=C1, C2=C2)

    wspec = []
    for cin_p in (C1, C2, C2):
        wspec += [
            pl.BlockSpec((K, K, cin_p), lambda n: (0, 0, 0)),
            pl.BlockSpec((cin_p, C2), lambda n: (0, 0)),
            pl.BlockSpec((1, C2), lambda n: (0, 0)),
        ]

    out = pl.pallas_call(
        kern,
        out_shape=jax.ShapeDtypeStruct((N, H, W, C2), x_nchw.dtype),
        grid=(N,),
        in_specs=[pl.BlockSpec((None, Hp, Wp, C1), lambda n: (n, 0, 0, 0))] + wspec,
        out_specs=pl.BlockSpec((None, H, W, C2), lambda n: (n, 0, 0, 0)),
        scratch_shapes=[
            pltpu.VMEM((Hp, Wp, C2), jnp.float32),
            pltpu.VMEM((Hp, Wp, C2), jnp.float32),
        ],
        compiler_params=pltpu.CompilerParams(
            dimension_semantics=("parallel",)),
    )(xp, *flat_args)

    # Drop channel padding, back to NCHW.
    return jnp.transpose(out[:, :, :, :Cout], (0, 3, 1, 2))


def init_params(key, in_channels, out_channels, kernel_size):
    """Deterministic synthetic weights for the 3 depthwise-separable convs."""
    params = []
    cin = in_channels
    for _ in range(3):
        k0, k1, k2, k3, key = jax.random.split(key, 5)
        dw_w = 0.1 * jax.random.normal(k0, (kernel_size, kernel_size, cin), jnp.float32)
        dw_b = 0.1 * jax.random.normal(k1, (1, cin), jnp.float32)
        pw_w = 0.1 * jax.random.normal(k2, (cin, out_channels), jnp.float32)
        pw_b = 0.1 * jax.random.normal(k3, (1, out_channels), jnp.float32)
        params.append((dw_w, dw_b, pw_w, pw_b))
        cin = out_channels
    return params


def reference_forward(x_nchw, params):
    """Pure-JAX f32 reference mirroring the PyTorch NCHW convolutions."""
    y = x_nchw
    for (dw_w, dw_b, pw_w, pw_b) in params:
        cin = dw_w.shape[2]
        y = jnp.maximum(y, 0.0)
        # depthwise: (K,K,Cin) -> OIHW (Cin, 1, K, K), groups=Cin
        w_d = jnp.transpose(dw_w, (2, 0, 1))[:, None, :, :]
        y = lax.conv_general_dilated(
            y, w_d, window_strides=(1, 1), padding="SAME",
            dimension_numbers=("NCHW", "OIHW", "NCHW"),
            feature_group_count=cin)
        y = y + dw_b.reshape(1, -1, 1, 1)
        # pointwise: (Cin,Cout) -> OIHW (Cout, Cin, 1, 1)
        w_p = jnp.transpose(pw_w, (1, 0))[:, :, None, None]
        y = lax.conv_general_dilated(
            y, w_p, window_strides=(1, 1), padding="SAME",
            dimension_numbers=("NCHW", "OIHW", "NCHW"))
        y = y + pw_b.reshape(1, -1, 1, 1)
    return y


if __name__ == "__main__":
    N, Cin, H, W = 2, 4, 16, 16
    Cout, K = 8, 3

    key = jax.random.PRNGKey(0)
    kx, kp = jax.random.split(key)
    x = jax.random.normal(kx, (N, Cin, H, W), jnp.float32)
    params = init_params(kp, Cin, Cout, K)

    out = jax.block_until_ready(middle_flow_separable_conv(x, params))
    ref = jax.block_until_ready(reference_forward(x, params))

    assert out.shape == (N, Cout, H, W), out.shape
    # bf16 pointwise-matmul inputs (f32 accumulate) -> relaxed tolerance vs f32 reference.
    max_err = float(jnp.max(jnp.abs(out - ref)))
    assert jnp.allclose(out, ref, atol=2e-2, rtol=2e-2), max_err
    print("KERNEL_OK")
</pallas_src>

<mosaic_0001>
module attributes {stable_mosaic.version = 11 : i64} {
  func.func @_middle_flow_kernel(%arg0: i32, %arg1: memref<1x18x24x128xf32, #tpu.memory_space<vmem>>, %arg2: memref<3x3x128xf32, #tpu.memory_space<vmem>>, %arg3: memref<128x128xbf16, #tpu.memory_space<vmem>>, %arg4: memref<1x128xf32, #tpu.memory_space<vmem>>, %arg5: memref<3x3x128xf32, #tpu.memory_space<vmem>>, %arg6: memref<128x128xbf16, #tpu.memory_space<vmem>>, %arg7: memref<1x128xf32, #tpu.memory_space<vmem>>, %arg8: memref<3x3x128xf32, #tpu.memory_space<vmem>>, %arg9: memref<128x128xbf16, #tpu.memory_space<vmem>>, %arg10: memref<1x128xf32, #tpu.memory_space<vmem>>, %arg11: memref<1x16x16x128xf32, #tpu.memory_space<vmem>>, %arg12: memref<18x24x128xf32, #tpu.memory_space<vmem>>, %arg13: memref<18x24x128xf32, #tpu.memory_space<vmem>>) attributes {dimension_semantics = [#tpu.dimension_semantics<parallel>], iteration_bounds = array<i64: 2>, scalar_prefetch = 0 : i64, scratch_operands = 2 : i64, tpu.core_type = #tpu.core_type<tc>, window_params = [{transform_indices = @transform_0, window_bounds = array<i64: 1, 18, 24, 128>}, {pipeline_mode = #tpu.pipeline_mode<synchronous>, transform_indices = @transform_1, window_bounds = array<i64: 3, 3, 128>}, {pipeline_mode = #tpu.pipeline_mode<synchronous>, transform_indices = @transform_2, window_bounds = array<i64: 128, 128>}, {pipeline_mode = #tpu.pipeline_mode<synchronous>, transform_indices = @transform_3, window_bounds = array<i64: 1, 128>}, {pipeline_mode = #tpu.pipeline_mode<synchronous>, transform_indices = @transform_4, window_bounds = array<i64: 3, 3, 128>}, {pipeline_mode = #tpu.pipeline_mode<synchronous>, transform_indices = @transform_5, window_bounds = array<i64: 128, 128>}, {pipeline_mode = #tpu.pipeline_mode<synchronous>, transform_indices = @transform_6, window_bounds = array<i64: 1, 128>}, {pipeline_mode = #tpu.pipeline_mode<synchronous>, transform_indices = @transform_7, window_bounds = array<i64: 3, 3, 128>}, {pipeline_mode = #tpu.pipeline_mode<synchronous>, transform_indices = @transform_8, window_bounds = array<i64: 128, 128>}, {pipeline_mode = #tpu.pipeline_mode<synchronous>, transform_indices = @transform_9, window_bounds = array<i64: 1, 128>}, {transform_indices = @transform_10, window_bounds = array<i64: 1, 16, 16, 128>}]} {
    %cst = arith.constant 0.000000e+00 : f32
    %0 = vector.broadcast %cst : f32 to vector<16x16x128xf32>
    %c0 = arith.constant 0 : index
    %c0_0 = arith.constant 0 : index
    %c0_1 = arith.constant 0 : index
    %c0_2 = arith.constant 0 : index
    %1 = vector.load %arg1[%c0, %c0_0, %c0_1, %c0_2] : memref<1x18x24x128xf32, #tpu.memory_space<vmem>>, vector<1x16x16x128xf32>
    %2 = vector.shape_cast %1 : vector<1x16x16x128xf32> to vector<16x16x128xf32>
    %cst_3 = arith.constant 0.000000e+00 : f32
    %3 = vector.broadcast %cst_3 : f32 to vector<16x16x128xf32>
    %4 = arith.maximumf %2, %3 : vector<16x16x128xf32>
    %c0_4 = arith.constant 0 : index
    %c0_5 = arith.constant 0 : index
    %c0_6 = arith.constant 0 : index
    %5 = vector.load %arg2[%c0_4, %c0_5, %c0_6] : memref<3x3x128xf32, #tpu.memory_space<vmem>>, vector<1x1x128xf32>
    %6 = vector.shape_cast %5 : vector<1x1x128xf32> to vector<128xf32>
    %7 = vector.shape_cast %6 : vector<128xf32> to vector<1x1x128xf32>
    %8 = vector.broadcast %7 : vector<1x1x128xf32> to vector<16x16x128xf32>
    %9 = arith.mulf %4, %8 : vector<16x16x128xf32>
    %10 = arith.addf %0, %9 : vector<16x16x128xf32>
    %c0_7 = arith.constant 0 : index
    %c0_8 = arith.constant 0 : index
    %c1 = arith.constant 1 : index
    %c0_9 = arith.constant 0 : index
    %11 = vector.load %arg1[%c0_7, %c0_8, %c1, %c0_9] : memref<1x18x24x128xf32, #tpu.memory_space<vmem>>, vector<1x16x16x128xf32>
    %12 = vector.shape_cast %11 : vector<1x16x16x128xf32> to vector<16x16x128xf32>
    %cst_10 = arith.constant 0.000000e+00 : f32
    %13 = vector.broadcast %cst_10 : f32 to vector<16x16x128xf32>
    %14 = arith.maximumf %12, %13 : vector<16x16x128xf32>
    %c0_11 = arith.constant 0 : index
    %c1_12 = arith.constant 1 : index
    %c0_13 = arith.constant 0 : index
    %15 = vector.load %arg2[%c0_11, %c1_12, %c0_13] : memref<3x3x128xf32, #tpu.memory_space<vmem>>, vector<1x1x128xf32>
    %16 = vector.shape_cast %15 : vector<1x1x128xf32> to vector<128xf32>
    %17 = vector.shape_cast %16 : vector<128xf32> to vector<1x1x128xf32>
    %18 = vector.broadcast %17 : vector<1x1x128xf32> to vector<16x16x128xf32>
    %19 = arith.mulf %14, %18 : vector<16x16x128xf32>
    %20 = arith.addf %10, %19 : vector<16x16x128xf32>
    %c0_14 = arith.constant 0 : index
    %c0_15 = arith.constant 0 : index
    %c2 = arith.constant 2 : index
    %c0_16 = arith.constant 0 : index
    %21 = vector.load %arg1[%c0_14, %c0_15, %c2, %c0_16] : memref<1x18x24x128xf32, #tpu.memory_space<vmem>>, vector<1x16x16x128xf32>
    %22 = vector.shape_cast %21 : vector<1x16x16x128xf32> to vector<16x16x128xf32>
    %cst_17 = arith.constant 0.000000e+00 : f32
    %23 = vector.broadcast %cst_17 : f32 to vector<16x16x128xf32>
    %24 = arith.maximumf %22, %23 : vector<16x16x128xf32>
    %c0_18 = arith.constant 0 : index
    %c2_19 = arith.constant 2 : index
    %c0_20 = arith.constant 0 : index
    %25 = vector.load %arg2[%c0_18, %c2_19, %c0_20] : memref<3x3x128xf32, #tpu.memory_space<vmem>>, vector<1x1x128xf32>
    %26 = vector.shape_cast %25 : vector<1x1x128xf32> to vector<128xf32>
    %27 = vector.shape_cast %26 : vector<128xf32> to vector<1x1x128xf32>
    %28 = vector.broadcast %27 : vector<1x1x128xf32> to vector<16x16x128xf32>
    %29 = arith.mulf %24, %28 : vector<16x16x128xf32>
    %30 = arith.addf %20, %29 : vector<16x16x128xf32>
    %c0_21 = arith.constant 0 : index
    %c1_22 = arith.constant 1 : index
    %c0_23 = arith.constant 0 : index
    %c0_24 = arith.constant 0 : index
    %31 = vector.load %arg1[%c0_21, %c1_22, %c0_23, %c0_24] : memref<1x18x24x128xf32, #tpu.memory_space<vmem>>, vector<1x16x16x128xf32>
    %32 = vector.shape_cast %31 : vector<1x16x16x128xf32> to vector<16x16x128xf32>
    %cst_25 = arith.constant 0.000000e+00 : f32
    %33 = vector.broadcast %cst_25 : f32 to vector<16x16x128xf32>
    %34 = arith.maximumf %32, %33 : vector<16x16x128xf32>
    %c1_26 = arith.constant 1 : index
    %c0_27 = arith.constant 0 : index
    %c0_28 = arith.constant 0 : index
    %35 = vector.load %arg2[%c1_26, %c0_27, %c0_28] : memref<3x3x128xf32, #tpu.memory_space<vmem>>, vector<1x1x128xf32>
    %36 = vector.shape_cast %35 : vector<1x1x128xf32> to vector<128xf32>
    %37 = vector.shape_cast %36 : vector<128xf32> to vector<1x1x128xf32>
    %38 = vector.broadcast %37 : vector<1x1x128xf32> to vector<16x16x128xf32>
    %39 = arith.mulf %34, %38 : vector<16x16x128xf32>
    %40 = arith.addf %30, %39 : vector<16x16x128xf32>
    %c0_29 = arith.constant 0 : index
    %c1_30 = arith.constant 1 : index
    %c1_31 = arith.constant 1 : index
    %c0_32 = arith.constant 0 : index
    %41 = vector.load %arg1[%c0_29, %c1_30, %c1_31, %c0_32] : memref<1x18x24x128xf32, #tpu.memory_space<vmem>>, vector<1x16x16x128xf32>
    %42 = vector.shape_cast %41 : vector<1x16x16x128xf32> to vector<16x16x128xf32>
    %cst_33 = arith.constant 0.000000e+00 : f32
    %43 = vector.broadcast %cst_33 : f32 to vector<16x16x128xf32>
    %44 = arith.maximumf %42, %43 : vector<16x16x128xf32>
    %c1_34 = arith.constant 1 : index
    %c1_35 = arith.constant 1 : index
    %c0_36 = arith.constant 0 : index
    %45 = vector.load %arg2[%c1_34, %c1_35, %c0_36] : memref<3x3x128xf32, #tpu.memory_space<vmem>>, vector<1x1x128xf32>
    %46 = vector.shape_cast %45 : vector<1x1x128xf32> to vector<128xf32>
    %47 = vector.shape_cast %46 : vector<128xf32> to vector<1x1x128xf32>
    %48 = vector.broadcast %47 : vector<1x1x128xf32> to vector<16x16x128xf32>
    %49 = arith.mulf %44, %48 : vector<16x16x128xf32>
    %50 = arith.addf %40, %49 : vector<16x16x128xf32>
    %c0_37 = arith.constant 0 : index
    %c1_38 = arith.constant 1 : index
    %c2_39 = arith.constant 2 : index
    %c0_40 = arith.constant 0 : index
    %51 = vector.load %arg1[%c0_37, %c1_38, %c2_39, %c0_40] : memref<1x18x24x128xf32, #tpu.memory_space<vmem>>, vector<1x16x16x128xf32>
    %52 = vector.shape_cast %51 : vector<1x16x16x128xf32> to vector<16x16x128xf32>
    %cst_41 = arith.constant 0.000000e+00 : f32
    %53 = vector.broadcast %cst_41 : f32 to vector<16x16x128xf32>
    %54 = arith.maximumf %52, %53 : vector<16x16x128xf32>
    %c1_42 = arith.constant 1 : index
    %c2_43 = arith.constant 2 : index
    %c0_44 = arith.constant 0 : index
    %55 = vector.load %arg2[%c1_42, %c2_43, %c0_44] : memref<3x3x128xf32, #tpu.memory_space<vmem>>, vector<1x1x128xf32>
    %56 = vector.shape_cast %55 : vector<1x1x128xf32> to vector<128xf32>
    %57 = vector.shape_cast %56 : vector<128xf32> to vector<1x1x128xf32>
    %58 = vector.broadcast %57 : vector<1x1x128xf32> to vector<16x16x128xf32>
    %59 = arith.mulf %54, %58 : vector<16x16x128xf32>
    %60 = arith.addf %50, %59 : vector<16x16x128xf32>
    %c0_45 = arith.constant 0 : index
    %c2_46 = arith.constant 2 : index
    %c0_47 = arith.constant 0 : index
    %c0_48 = arith.constant 0 : index
    %61 = vector.load %arg1[%c0_45, %c2_46, %c0_47, %c0_48] : memref<1x18x24x128xf32, #tpu.memory_space<vmem>>, vector<1x16x16x128xf32>
    %62 = vector.shape_cast %61 : vector<1x16x16x128xf32> to vector<16x16x128xf32>
    %cst_49 = arith.constant 0.000000e+00 : f32
    %63 = vector.broadcast %cst_49 : f32 to vector<16x16x128xf32>
    %64 = arith.maximumf %62, %63 : vector<16x16x128xf32>
    %c2_50 = arith.constant 2 : index
    %c0_51 = arith.constant 0 : index
    %c0_52 = arith.constant 0 : index
    %65 = vector.load %arg2[%c2_50, %c0_51, %c0_52] : memref<3x3x128xf32, #tpu.memory_space<vmem>>, vector<1x1x128xf32>
    %66 = vector.shape_cast %65 : vector<1x1x128xf32> to vector<128xf32>
    %67 = vector.shape_cast %66 : vector<128xf32> to vector<1x1x128xf32>
    %68 = vector.broadcast %67 : vector<1x1x128xf32> to vector<16x16x128xf32>
    %69 = arith.mulf %64, %68 : vector<16x16x128xf32>
    %70 = arith.addf %60, %69 : vector<16x16x128xf32>
    %c0_53 = arith.constant 0 : index
    %c2_54 = arith.constant 2 : index
    %c1_55 = arith.constant 1 : index
    %c0_56 = arith.constant 0 : index
    %71 = vector.load %arg1[%c0_53, %c2_54, %c1_55, %c0_56] : memref<1x18x24x128xf32, #tpu.memory_space<vmem>>, vector<1x16x16x128xf32>
    %72 = vector.shape_cast %71 : vector<1x16x16x128xf32> to vector<16x16x128xf32>
    %cst_57 = arith.constant 0.000000e+00 : f32
    %73 = vector.broadcast %cst_57 : f32 to vector<16x16x128xf32>
    %74 = arith.maximumf %72, %73 : vector<16x16x128xf32>
    %c2_58 = arith.constant 2 : index
    %c1_59 = arith.constant 1 : index
    %c0_60 = arith.constant 0 : index
    %75 = vector.load %arg2[%c2_58, %c1_59, %c0_60] : memref<3x3x128xf32, #tpu.memory_space<vmem>>, vector<1x1x128xf32>
    %76 = vector.shape_cast %75 : vector<1x1x128xf32> to vector<128xf32>
    %77 = vector.shape_cast %76 : vector<128xf32> to vector<1x1x128xf32>
    %78 = vector.broadcast %77 : vector<1x1x128xf32> to vector<16x16x128xf32>
    %79 = arith.mulf %74, %78 : vector<16x16x128xf32>
    %80 = arith.addf %70, %79 : vector<16x16x128xf32>
    %c0_61 = arith.constant 0 : index
    %c2_62 = arith.constant 2 : index
    %c2_63 = arith.constant 2 : index
    %c0_64 = arith.constant 0 : index
    %81 = vector.load %arg1[%c0_61, %c2_62, %c2_63, %c0_64] : memref<1x18x24x128xf32, #tpu.memory_space<vmem>>, vector<1x16x16x128xf32>
    %82 = vector.shape_cast %81 : vector<1x16x16x128xf32> to vector<16x16x128xf32>
    %cst_65 = arith.constant 0.000000e+00 : f32
    %83 = vector.broadcast %cst_65 : f32 to vector<16x16x128xf32>
    %84 = arith.maximumf %82, %83 : vector<16x16x128xf32>
    %c2_66 = arith.constant 2 : index
    %c2_67 = arith.constant 2 : index
    %c0_68 = arith.constant 0 : index
    %85 = vector.load %arg2[%c2_66, %c2_67, %c0_68] : memref<3x3x128xf32, #tpu.memory_space<vmem>>, vector<1x1x128xf32>
    %86 = vector.shape_cast %85 : vector<1x1x128xf32> to vector<128xf32>
    %87 = vector.shape_cast %86 : vector<128xf32> to vector<1x1x128xf32>
    %88 = vector.broadcast %87 : vector<1x1x128xf32> to vector<16x16x128xf32>
    %89 = arith.mulf %84, %88 : vector<16x16x128xf32>
    %90 = arith.addf %80, %89 : vector<16x16x128xf32>
    %91 = vector.shape_cast %90 : vector<16x16x128xf32> to vector<256x128xf32>
    %92 = arith.truncf %91 : vector<256x128xf32> to vector<256x128xbf16>
    %c0_69 = arith.constant 0 : index
    %c0_70 = arith.constant 0 : index
    %93 = vector.load %arg3[%c0_69, %c0_70] : memref<128x128xbf16, #tpu.memory_space<vmem>>, vector<128x128xbf16>
    %cst_71 = arith.constant dense<0.000000e+00> : vector<256x128xf32>
    %94 = tpu.matmul %92, %93, %cst_71 {dimension_numbers = #tpu.dot_dimension_numbers<[1], [0], [0], [1], [0, 0, 1, 1], [], []>} : vector<256x128xbf16>, vector<128x128xbf16>, vector<256x128xf32> -> vector<256x128xf32>
    %c0_72 = arith.constant 0 : index
    %c0_73 = arith.constant 0 : index
    %95 = vector.load %arg4[%c0_72, %c0_73] : memref<1x128xf32, #tpu.memory_space<vmem>>, vector<1x128xf32>
    %96 = vector.broadcast %95 : vector<1x128xf32> to vector<256x128xf32>
    %97 = arith.addf %94, %96 : vector<256x128xf32>
    %98 = vector.shape_cast %97 : vector<256x128xf32> to vector<16x16x128xf32>
    %cst_74 = arith.constant 0.000000e+00 : f32
    %99 = vector.broadcast %cst_74 : f32 to vector<18x24x128xf32>
    %c0_75 = arith.constant 0 : index
    %c0_76 = arith.constant 0 : index
    %c0_77 = arith.constant 0 : index
    %100 = vector.load %arg12[%c0_75, %c0_76, %c0_77] : memref<18x24x128xf32, #tpu.memory_space<vmem>>, vector<18x24x128xf32>
    tpu.vector_store %arg12[%c0_75, %c0_76, %c0_77], %99 {strides = array<i32>} : memref<18x24x128xf32, #tpu.memory_space<vmem>>, vector<18x24x128xf32>,
    %c1_78 = arith.constant 1 : index
    %c1_79 = arith.constant 1 : index
    %c0_80 = arith.constant 0 : index
    %101 = vector.load %arg12[%c1_78, %c1_79, %c0_80] : memref<18x24x128xf32, #tpu.memory_space<vmem>>, vector<16x16x128xf32>
    tpu.vector_store %arg12[%c1_78, %c1_79, %c0_80], %98 {strides = array<i32>} : memref<18x24x128xf32, #tpu.memory_space<vmem>>, vector<16x16x128xf32>,
    %cst_81 = arith.constant 0.000000e+00 : f32
    %102 = vector.broadcast %cst_81 : f32 to vector<16x16x128xf32>
    %c0_82 = arith.constant 0 : index
    %c0_83 = arith.constant 0 : index
    %c0_84 = arith.constant 0 : index
    %103 = vector.load %arg12[%c0_82, %c0_83, %c0_84] : memref<18x24x128xf32, #tpu.memory_space<vmem>>, vector<16x16x128xf32>
    %cst_85 = arith.constant 0.000000e+00 : f32
    %104 = vector.broadcast %cst_85 : f32 to vector<16x16x128xf32>
    %105 = arith.maximumf %103, %104 : vector<16x16x128xf32>
    %c0_86 = arith.constant 0 : index
    %c0_87 = arith.constant 0 : index
    %c0_88 = arith.constant 0 : index
    %106 = vector.load %arg5[%c0_86, %c0_87, %c0_88] : memref<3x3x128xf32, #tpu.memory_space<vmem>>, vector<1x1x128xf32>
    %107 = vector.shape_cast %106 : vector<1x1x128xf32> to vector<128xf32>
    %108 = vector.shape_cast %107 : vector<128xf32> to vector<1x1x128xf32>
    %109 = vector.broadcast %108 : vector<1x1x128xf32> to vector<16x16x128xf32>
    %110 = arith.mulf %105, %109 : vector<16x16x128xf32>
    %111 = arith.addf %102, %110 : vector<16x16x128xf32>
    %c0_89 = arith.constant 0 : index
    %c1_90 = arith.constant 1 : index
    %c0_91 = arith.constant 0 : index
    %112 = vector.load %arg12[%c0_89, %c1_90, %c0_91] : memref<18x24x128xf32, #tpu.memory_space<vmem>>, vector<16x16x128xf32>
    %cst_92 = arith.constant 0.000000e+00 : f32
    %113 = vector.broadcast %cst_92 : f32 to vector<16x16x128xf32>
    %114 = arith.maximumf %112, %113 : vector<16x16x128xf32>
    %c0_93 = arith.constant 0 : index
    %c1_94 = arith.constant 1 : index
    %c0_95 = arith.constant 0 : index
    %115 = vector.load %arg5[%c0_93, %c1_94, %c0_95] : memref<3x3x128xf32, #tpu.memory_space<vmem>>, vector<1x1x128xf32>
    %116 = vector.shape_cast %115 : vector<1x1x128xf32> to vector<128xf32>
    %117 = vector.shape_cast %116 : vector<128xf32> to vector<1x1x128xf32>
    %118 = vector.broadcast %117 : vector<1x1x128xf32> to vector<16x16x128xf32>
    %119 = arith.mulf %114, %118 : vector<16x16x128xf32>
    %120 = arith.addf %111, %119 : vector<16x16x128xf32>
    %c0_96 = arith.constant 0 : index
    %c2_97 = arith.constant 2 : index
    %c0_98 = arith.constant 0 : index
    %121 = vector.load %arg12[%c0_96, %c2_97, %c0_98] : memref<18x24x128xf32, #tpu.memory_space<vmem>>, vector<16x16x128xf32>
    %cst_99 = arith.constant 0.000000e+00 : f32
    %122 = vector.broadcast %cst_99 : f32 to vector<16x16x128xf32>
    %123 = arith.maximumf %121, %122 : vector<16x16x128xf32>
    %c0_100 = arith.constant 0 : index
    %c2_101 = arith.constant 2 : index
    %c0_102 = arith.constant 0 : index
    %124 = vector.load %arg5[%c0_100, %c2_101, %c0_102] : memref<3x3x128xf32, #tpu.memory_space<vmem>>, vector<1x1x128xf32>
    %125 = vector.shape_cast %124 : vector<1x1x128xf32> to vector<128xf32>
    %126 = vector.shape_cast %125 : vector<128xf32> to vector<1x1x128xf32>
    %127 = vector.broadcast %126 : vector<1x1x128xf32> to vector<16x16x128xf32>
    %128 = arith.mulf %123, %127 : vector<16x16x128xf32>
    %129 = arith.addf %120, %128 : vector<16x16x128xf32>
    %c1_103 = arith.constant 1 : index
    %c0_104 = arith.constant 0 : index
    %c0_105 = arith.constant 0 : index
    %130 = vector.load %arg12[%c1_103, %c0_104, %c0_105] : memref<18x24x128xf32, #tpu.memory_space<vmem>>, vector<16x16x128xf32>
    %cst_106 = arith.constant 0.000000e+00 : f32
    %131 = vector.broadcast %cst_106 : f32 to vector<16x16x128xf32>
    %132 = arith.maximumf %130, %131 : vector<16x16x128xf32>
    %c1_107 = arith.constant 1 : index
    %c0_108 = arith.constant 0 : index
    %c0_109 = arith.constant 0 : index
    %133 = vector.load %arg5[%c1_107, %c0_108, %c0_109] : memref<3x3x128xf32, #tpu.memory_space<vmem>>, vector<1x1x128xf32>
    %134 = vector.shape_cast %133 : vector<1x1x128xf32> to vector<128xf32>
    %135 = vector.shape_cast %134 : vector<128xf32> to vector<1x1x128xf32>
    %136 = vector.broadcast %135 : vector<1x1x128xf32> to vector<16x16x128xf32>
    %137 = arith.mulf %132, %136 : vector<16x16x128xf32>
    %138 = arith.addf %129, %137 : vector<16x16x128xf32>
    %c1_110 = arith.constant 1 : index
    %c1_111 = arith.constant 1 : index
    %c0_112 = arith.constant 0 : index
    %139 = vector.load %arg12[%c1_110, %c1_111, %c0_112] : memref<18x24x128xf32, #tpu.memory_space<vmem>>, vector<16x16x128xf32>
    %cst_113 = arith.constant 0.000000e+00 : f32
    %140 = vector.broadcast %cst_113 : f32 to vector<16x16x128xf32>
    %141 = arith.maximumf %139, %140 : vector<16x16x128xf32>
    %c1_114 = arith.constant 1 : index
    %c1_115 = arith.constant 1 : index
    %c0_116 = arith.constant 0 : index
    %142 = vector.load %arg5[%c1_114, %c1_115, %c0_116] : memref<3x3x128xf32, #tpu.memory_space<vmem>>, vector<1x1x128xf32>
    %143 = vector.shape_cast %142 : vector<1x1x128xf32> to vector<128xf32>
    %144 = vector.shape_cast %143 : vector<128xf32> to vector<1x1x128xf32>
    %145 = vector.broadcast %144 : vector<1x1x128xf32> to vector<16x16x128xf32>
    %146 = arith.mulf %141, %145 : vector<16x16x128xf32>
    %147 = arith.addf %138, %146 : vector<16x16x128xf32>
    %c1_117 = arith.constant 1 : index
    %c2_118 = arith.constant 2 : index
    %c0_119 = arith.constant 0 : index
    %148 = vector.load %arg12[%c1_117, %c2_118, %c0_119] : memref<18x24x128xf32, #tpu.memory_space<vmem>>, vector<16x16x128xf32>
    %cst_120 = arith.constant 0.000000e+00 : f32
    %149 = vector.broadcast %cst_120 : f32 to vector<16x16x128xf32>
    %150 = arith.maximumf %148, %149 : vector<16x16x128xf32>
    %c1_121 = arith.constant 1 : index
    %c2_122 = arith.constant 2 : index
    %c0_123 = arith.constant 0 : index
    %151 = vector.load %arg5[%c1_121, %c2_122, %c0_123] : memref<3x3x128xf32, #tpu.memory_space<vmem>>, vector<1x1x128xf32>
    %152 = vector.shape_cast %151 : vector<1x1x128xf32> to vector<128xf32>
    %153 = vector.shape_cast %152 : vector<128xf32> to vector<1x1x128xf32>
    %154 = vector.broadcast %153 : vector<1x1x128xf32> to vector<16x16x128xf32>
    %155 = arith.mulf %150, %154 : vector<16x16x128xf32>
    %156 = arith.addf %147, %155 : vector<16x16x128xf32>
    %c2_124 = arith.constant 2 : index
    %c0_125 = arith.constant 0 : index
    %c0_126 = arith.constant 0 : index
    %157 = vector.load %arg12[%c2_124, %c0_125, %c0_126] : memref<18x24x128xf32, #tpu.memory_space<vmem>>, vector<16x16x128xf32>
    %cst_127 = arith.constant 0.000000e+00 : f32
    %158 = vector.broadcast %cst_127 : f32 to vector<16x16x128xf32>
    %159 = arith.maximumf %157, %158 : vector<16x16x128xf32>
    %c2_128 = arith.constant 2 : index
    %c0_129 = arith.constant 0 : index
    %c0_130 = arith.constant 0 : index
    %160 = vector.load %arg5[%c2_128, %c0_129, %c0_130] : memref<3x3x128xf32, #tpu.memory_space<vmem>>, vector<1x1x128xf32>
    %161 = vector.shape_cast %160 : vector<1x1x128xf32> to vector<128xf32>
    %162 = vector.shape_cast %161 : vector<128xf32> to vector<1x1x128xf32>
    %163 = vector.broadcast %162 : vector<1x1x128xf32> to vector<16x16x128xf32>
    %164 = arith.mulf %159, %163 : vector<16x16x128xf32>
    %165 = arith.addf %156, %164 : vector<16x16x128xf32>
    %c2_131 = arith.constant 2 : index
    %c1_132 = arith.constant 1 : index
    %c0_133 = arith.constant 0 : index
    %166 = vector.load %arg12[%c2_131, %c1_132, %c0_133] : memref<18x24x128xf32, #tpu.memory_space<vmem>>, vector<16x16x128xf32>
    %cst_134 = arith.constant 0.000000e+00 : f32
    %167 = vector.broadcast %cst_134 : f32 to vector<16x16x128xf32>
    %168 = arith.maximumf %166, %167 : vector<16x16x128xf32>
    %c2_135 = arith.constant 2 : index
    %c1_136 = arith.constant 1 : index
    %c0_137 = arith.constant 0 : index
    %169 = vector.load %arg5[%c2_135, %c1_136, %c0_137] : memref<3x3x128xf32, #tpu.memory_space<vmem>>, vector<1x1x128xf32>
    %170 = vector.shape_cast %169 : vector<1x1x128xf32> to vector<128xf32>
    %171 = vector.shape_cast %170 : vector<128xf32> to vector<1x1x128xf32>
    %172 = vector.broadcast %171 : vector<1x1x128xf32> to vector<16x16x128xf32>
    %173 = arith.mulf %168, %172 : vector<16x16x128xf32>
    %174 = arith.addf %165, %173 : vector<16x16x128xf32>
    %c2_138 = arith.constant 2 : index
    %c2_139 = arith.constant 2 : index
    %c0_140 = arith.constant 0 : index
    %175 = vector.load %arg12[%c2_138, %c2_139, %c0_140] : memref<18x24x128xf32, #tpu.memory_space<vmem>>, vector<16x16x128xf32>
    %cst_141 = arith.constant 0.000000e+00 : f32
    %176 = vector.broadcast %cst_141 : f32 to vector<16x16x128xf32>
    %177 = arith.maximumf %175, %176 : vector<16x16x128xf32>
    %c2_142 = arith.constant 2 : index
    %c2_143 = arith.constant 2 : index
    %c0_144 = arith.constant 0 : index
    %178 = vector.load %arg5[%c2_142, %c2_143, %c0_144] : memref<3x3x128xf32, #tpu.memory_space<vmem>>, vector<1x1x128xf32>
    %179 = vector.shape_cast %178 : vector<1x1x128xf32> to vector<128xf32>
    %180 = vector.shape_cast %179 : vector<128xf32> to vector<1x1x128xf32>
    %181 = vector.broadcast %180 : vector<1x1x128xf32> to vector<16x16x128xf32>
    %182 = arith.mulf %177, %181 : vector<16x16x128xf32>
    %183 = arith.addf %174, %182 : vector<16x16x128xf32>
    %184 = vector.shape_cast %183 : vector<16x16x128xf32> to vector<256x128xf32>
    %185 = arith.truncf %184 : vector<256x128xf32> to vector<256x128xbf16>
    %c0_145 = arith.constant 0 : index
    %c0_146 = arith.constant 0 : index
    %186 = vector.load %arg6[%c0_145, %c0_146] : memref<128x128xbf16, #tpu.memory_space<vmem>>, vector<128x128xbf16>
    %cst_147 = arith.constant dense<0.000000e+00> : vector<256x128xf32>
    %187 = tpu.matmul %185, %186, %cst_147 {dimension_numbers = #tpu.dot_dimension_numbers<[1], [0], [0], [1], [0, 0, 1, 1], [], []>} : vector<256x128xbf16>, vector<128x128xbf16>, vector<256x128xf32> -> vector<256x128xf32>
    %c0_148 = arith.constant 0 : index
    %c0_149 = arith.constant 0 : index
    %188 = vector.load %arg7[%c0_148, %c0_149] : memref<1x128xf32, #tpu.memory_space<vmem>>, vector<1x128xf32>
    %189 = vector.broadcast %188 : vector<1x128xf32> to vector<256x128xf32>
    %190 = arith.addf %187, %189 : vector<256x128xf32>
    %191 = vector.shape_cast %190 : vector<256x128xf32> to vector<16x16x128xf32>
    %cst_150 = arith.constant 0.000000e+00 : f32
    %192 = vector.broadcast %cst_150 : f32 to vector<18x24x128xf32>
    %c0_151 = arith.constant 0 : index
    %c0_152 = arith.constant 0 : index
    %c0_153 = arith.constant 0 : index
    %193 = vector.load %arg13[%c0_151, %c0_152, %c0_153] : memref<18x24x128xf32, #tpu.memory_space<vmem>>, vector<18x24x128xf32>
    tpu.vector_store %arg13[%c0_151, %c0_152, %c0_153], %192 {strides = array<i32>} : memref<18x24x128xf32, #tpu.memory_space<vmem>>, vector<18x24x128xf32>,
    %c1_154 = arith.constant 1 : index
    %c1_155 = arith.constant 1 : index
    %c0_156 = arith.constant 0 : index
    %194 = vector.load %arg13[%c1_154, %c1_155, %c0_156] : memref<18x24x128xf32, #tpu.memory_space<vmem>>, vector<16x16x128xf32>
    tpu.vector_store %arg13[%c1_154, %c1_155, %c0_156], %191 {strides = array<i32>} : memref<18x24x128xf32, #tpu.memory_space<vmem>>, vector<16x16x128xf32>,
    %cst_157 = arith.constant 0.000000e+00 : f32
    %195 = vector.broadcast %cst_157 : f32 to vector<16x16x128xf32>
    %c0_158 = arith.constant 0 : index
    %c0_159 = arith.constant 0 : index
    %c0_160 = arith.constant 0 : index
    %196 = vector.load %arg13[%c0_158, %c0_159, %c0_160] : memref<18x24x128xf32, #tpu.memory_space<vmem>>, vector<16x16x128xf32>
    %cst_161 = arith.constant 0.000000e+00 : f32
    %197 = vector.broadcast %cst_161 : f32 to vector<16x16x128xf32>
    %198 = arith.maximumf %196, %197 : vector<16x16x128xf32>
    %c0_162 = arith.constant 0 : index
    %c0_163 = arith.constant 0 : index
    %c0_164 = arith.constant 0 : index
    %199 = vector.load %arg8[%c0_162, %c0_163, %c0_164] : memref<3x3x128xf32, #tpu.memory_space<vmem>>, vector<1x1x128xf32>
    %200 = vector.shape_cast %199 : vector<1x1x128xf32> to vector<128xf32>
    %201 = vector.shape_cast %200 : vector<128xf32> to vector<1x1x128xf32>
    %202 = vector.broadcast %201 : vector<1x1x128xf32> to vector<16x16x128xf32>
    %203 = arith.mulf %198, %202 : vector<16x16x128xf32>
    %204 = arith.addf %195, %203 : vector<16x16x128xf32>
    %c0_165 = arith.constant 0 : index
    %c1_166 = arith.constant 1 : index
    %c0_167 = arith.constant 0 : index
    %205 = vector.load %arg13[%c0_165, %c1_166, %c0_167] : memref<18x24x128xf32, #tpu.memory_space<vmem>>, vector<16x16x128xf32>
    %cst_168 = arith.constant 0.000000e+00 : f32
    %206 = vector.broadcast %cst_168 : f32 to vector<16x16x128xf32>
    %207 = arith.maximumf %205, %206 : vector<16x16x128xf32>
    %c0_169 = arith.constant 0 : index
    %c1_170 = arith.constant 1 : index
    %c0_171 = arith.constant 0 : index
    %208 = vector.load %arg8[%c0_169, %c1_170, %c0_171] : memref<3x3x128xf32, #tpu.memory_space<vmem>>, vector<1x1x128xf32>
    %209 = vector.shape_cast %208 : vector<1x1x128xf32> to vector<128xf32>
    %210 = vector.shape_cast %209 : vector<128xf32> to vector<1x1x128xf32>
    %211 = vector.broadcast %210 : vector<1x1x128xf32> to vector<16x16x128xf32>
    %212 = arith.mulf %207, %211 : vector<16x16x128xf32>
    %213 = arith.addf %204, %212 : vector<16x16x128xf32>
    %c0_172 = arith.constant 0 : index
    %c2_173 = arith.constant 2 : index
    %c0_174 = arith.constant 0 : index
    %214 = vector.load %arg13[%c0_172, %c2_173, %c0_174] : memref<18x24x128xf32, #tpu.memory_space<vmem>>, vector<16x16x128xf32>
    %cst_175 = arith.constant 0.000000e+00 : f32
    %215 = vector.broadcast %cst_175 : f32 to vector<16x16x128xf32>
    %216 = arith.maximumf %214, %215 : vector<16x16x128xf32>
    %c0_176 = arith.constant 0 : index
    %c2_177 = arith.constant 2 : index
    %c0_178 = arith.constant 0 : index
    %217 = vector.load %arg8[%c0_176, %c2_177, %c0_178] : memref<3x3x128xf32, #tpu.memory_space<vmem>>, vector<1x1x128xf32>
    %218 = vector.shape_cast %217 : vector<1x1x128xf32> to vector<128xf32>
    %219 = vector.shape_cast %218 : vector<128xf32> to vector<1x1x128xf32>
    %220 = vector.broadcast %219 : vector<1x1x128xf32> to vector<16x16x128xf32>
    %221 = arith.mulf %216, %220 : vector<16x16x128xf32>
    %222 = arith.addf %213, %221 : vector<16x16x128xf32>
    %c1_179 = arith.constant 1 : index
    %c0_180 = arith.constant 0 : index
    %c0_181 = arith.constant 0 : index
    %223 = vector.load %arg13[%c1_179, %c0_180, %c0_181] : memref<18x24x128xf32, #tpu.memory_space<vmem>>, vector<16x16x128xf32>
    %cst_182 = arith.constant 0.000000e+00 : f32
    %224 = vector.broadcast %cst_182 : f32 to vector<16x16x128xf32>
    %225 = arith.maximumf %223, %224 : vector<16x16x128xf32>
    %c1_183 = arith.constant 1 : index
    %c0_184 = arith.constant 0 : index
    %c0_185 = arith.constant 0 : index
    %226 = vector.load %arg8[%c1_183, %c0_184, %c0_185] : memref<3x3x128xf32, #tpu.memory_space<vmem>>, vector<1x1x128xf32>
    %227 = vector.shape_cast %226 : vector<1x1x128xf32> to vector<128xf32>
    %228 = vector.shape_cast %227 : vector<128xf32> to vector<1x1x128xf32>
    %229 = vector.broadcast %228 : vector<1x1x128xf32> to vector<16x16x128xf32>
    %230 = arith.mulf %225, %229 : vector<16x16x128xf32>
    %231 = arith.addf %222, %230 : vector<16x16x128xf32>
    %c1_186 = arith.constant 1 : index
    %c1_187 = arith.constant 1 : index
    %c0_188 = arith.constant 0 : index
    %232 = vector.load %arg13[%c1_186, %c1_187, %c0_188] : memref<18x24x128xf32, #tpu.memory_space<vmem>>, vector<16x16x128xf32>
    %cst_189 = arith.constant 0.000000e+00 : f32
    %233 = vector.broadcast %cst_189 : f32 to vector<16x16x128xf32>
    %234 = arith.maximumf %232, %233 : vector<16x16x128xf32>
    %c1_190 = arith.constant 1 : index
    %c1_191 = arith.constant 1 : index
    %c0_192 = arith.constant 0 : index
    %235 = vector.load %arg8[%c1_190, %c1_191, %c0_192] : memref<3x3x128xf32, #tpu.memory_space<vmem>>, vector<1x1x128xf32>
    %236 = vector.shape_cast %235 : vector<1x1x128xf32> to vector<128xf32>
    %237 = vector.shape_cast %236 : vector<128xf32> to vector<1x1x128xf32>
    %238 = vector.broadcast %237 : vector<1x1x128xf32> to vector<16x16x128xf32>
    %239 = arith.mulf %234, %238 : vector<16x16x128xf32>
    %240 = arith.addf %231, %239 : vector<16x16x128xf32>
    %c1_193 = arith.constant 1 : index
    %c2_194 = arith.constant 2 : index
    %c0_195 = arith.constant 0 : index
    %241 = vector.load %arg13[%c1_193, %c2_194, %c0_195] : memref<18x24x128xf32, #tpu.memory_space<vmem>>, vector<16x16x128xf32>
    %cst_196 = arith.constant 0.000000e+00 : f32
    %242 = vector.broadcast %cst_196 : f32 to vector<16x16x128xf32>
    %243 = arith.maximumf %241, %242 : vector<16x16x128xf32>
    %c1_197 = arith.constant 1 : index
    %c2_198 = arith.constant 2 : index
    %c0_199 = arith.constant 0 : index
    %244 = vector.load %arg8[%c1_197, %c2_198, %c0_199] : memref<3x3x128xf32, #tpu.memory_space<vmem>>, vector<1x1x128xf32>
    %245 = vector.shape_cast %244 : vector<1x1x128xf32> to vector<128xf32>
    %246 = vector.shape_cast %245 : vector<128xf32> to vector<1x1x128xf32>
    %247 = vector.broadcast %246 : vector<1x1x128xf32> to vector<16x16x128xf32>
    %248 = arith.mulf %243, %247 : vector<16x16x128xf32>
    %249 = arith.addf %240, %248 : vector<16x16x128xf32>
    %c2_200 = arith.constant 2 : index
    %c0_201 = arith.constant 0 : index
    %c0_202 = arith.constant 0 : index
    %250 = vector.load %arg13[%c2_200, %c0_201, %c0_202] : memref<18x24x128xf32, #tpu.memory_space<vmem>>, vector<16x16x128xf32>
    %cst_203 = arith.constant 0.000000e+00 : f32
    %251 = vector.broadcast %cst_203 : f32 to vector<16x16x128xf32>
    %252 = arith.maximumf %250, %251 : vector<16x16x128xf32>
    %c2_204 = arith.constant 2 : index
    %c0_205 = arith.constant 0 : index
    %c0_206 = arith.constant 0 : index
    %253 = vector.load %arg8[%c2_204, %c0_205, %c0_206] : memref<3x3x128xf32, #tpu.memory_space<vmem>>, vector<1x1x128xf32>
    %254 = vector.shape_cast %253 : vector<1x1x128xf32> to vector<128xf32>
    %255 = vector.shape_cast %254 : vector<128xf32> to vector<1x1x128xf32>
    %256 = vector.broadcast %255 : vector<1x1x128xf32> to vector<16x16x128xf32>
    %257 = arith.mulf %252, %256 : vector<16x16x128xf32>
    %258 = arith.addf %249, %257 : vector<16x16x128xf32>
    %c2_207 = arith.constant 2 : index
    %c1_208 = arith.constant 1 : index
    %c0_209 = arith.constant 0 : index
    %259 = vector.load %arg13[%c2_207, %c1_208, %c0_209] : memref<18x24x128xf32, #tpu.memory_space<vmem>>, vector<16x16x128xf32>
    %cst_210 = arith.constant 0.000000e+00 : f32
    %260 = vector.broadcast %cst_210 : f32 to vector<16x16x128xf32>
    %261 = arith.maximumf %259, %260 : vector<16x16x128xf32>
    %c2_211 = arith.constant 2 : index
    %c1_212 = arith.constant 1 : index
    %c0_213 = arith.constant 0 : index
    %262 = vector.load %arg8[%c2_211, %c1_212, %c0_213] : memref<3x3x128xf32, #tpu.memory_space<vmem>>, vector<1x1x128xf32>
    %263 = vector.shape_cast %262 : vector<1x1x128xf32> to vector<128xf32>
    %264 = vector.shape_cast %263 : vector<128xf32> to vector<1x1x128xf32>
    %265 = vector.broadcast %264 : vector<1x1x128xf32> to vector<16x16x128xf32>
    %266 = arith.mulf %261, %265 : vector<16x16x128xf32>
    %267 = arith.addf %258, %266 : vector<16x16x128xf32>
    %c2_214 = arith.constant 2 : index
    %c2_215 = arith.constant 2 : index
    %c0_216 = arith.constant 0 : index
    %268 = vector.load %arg13[%c2_214, %c2_215, %c0_216] : memref<18x24x128xf32, #tpu.memory_space<vmem>>, vector<16x16x128xf32>
    %cst_217 = arith.constant 0.000000e+00 : f32
    %269 = vector.broadcast %cst_217 : f32 to vector<16x16x128xf32>
    %270 = arith.maximumf %268, %269 : vector<16x16x128xf32>
    %c2_218 = arith.constant 2 : index
    %c2_219 = arith.constant 2 : index
    %c0_220 = arith.constant 0 : index
    %271 = vector.load %arg8[%c2_218, %c2_219, %c0_220] : memref<3x3x128xf32, #tpu.memory_space<vmem>>, vector<1x1x128xf32>
    %272 = vector.shape_cast %271 : vector<1x1x128xf32> to vector<128xf32>
    %273 = vector.shape_cast %272 : vector<128xf32> to vector<1x1x128xf32>
    %274 = vector.broadcast %273 : vector<1x1x128xf32> to vector<16x16x128xf32>
    %275 = arith.mulf %270, %274 : vector<16x16x128xf32>
    %276 = arith.addf %267, %275 : vector<16x16x128xf32>
    %277 = vector.shape_cast %276 : vector<16x16x128xf32> to vector<256x128xf32>
    %278 = arith.truncf %277 : vector<256x128xf32> to vector<256x128xbf16>
    %c0_221 = arith.constant 0 : index
    %c0_222 = arith.constant 0 : index
    %279 = vector.load %arg9[%c0_221, %c0_222] : memref<128x128xbf16, #tpu.memory_space<vmem>>, vector<128x128xbf16>
    %cst_223 = arith.constant dense<0.000000e+00> : vector<256x128xf32>
    %280 = tpu.matmul %278, %279, %cst_223 {dimension_numbers = #tpu.dot_dimension_numbers<[1], [0], [0], [1], [0, 0, 1, 1], [], []>} : vector<256x128xbf16>, vector<128x128xbf16>, vector<256x128xf32> -> vector<256x128xf32>
    %c0_224 = arith.constant 0 : index
    %c0_225 = arith.constant 0 : index
    %281 = vector.load %arg10[%c0_224, %c0_225] : memref<1x128xf32, #tpu.memory_space<vmem>>, vector<1x128xf32>
    %282 = vector.broadcast %281 : vector<1x128xf32> to vector<256x128xf32>
    %283 = arith.addf %280, %282 : vector<256x128xf32>
    %284 = vector.shape_cast %283 : vector<256x128xf32> to vector<16x16x128xf32>
    %c0_226 = arith.constant 0 : index
    %c0_227 = arith.constant 0 : index
    %c0_228 = arith.constant 0 : index
    %c0_229 = arith.constant 0 : index
    %285 = vector.load %arg11[%c0_226, %c0_227, %c0_228, %c0_229] : memref<1x16x16x128xf32, #tpu.memory_space<vmem>>, vector<1x16x16x128xf32>
    %286 = vector.shape_cast %285 : vector<1x16x16x128xf32> to vector<16x16x128xf32>
    %287 = vector.shape_cast %284 : vector<16x16x128xf32> to vector<1x16x16x128xf32>
    tpu.vector_store %arg11[%c0_226, %c0_227, %c0_228, %c0_229], %287 {strides = array<i32>} : memref<1x16x16x128xf32, #tpu.memory_space<vmem>>, vector<1x16x16x128xf32>,
    return
  }
  func.func @transform_0(%arg0: i32) -> (i32, i32, i32, i32) {
    %c0_i32 = arith.constant 0 : i32
    %c0_i32_0 = arith.constant 0 : i32
    %c0_i32_1 = arith.constant 0 : i32
    %c0_i32_2 = arith.constant 0 : i32
    return %arg0, %c0_i32, %c0_i32_0, %c0_i32_1 : i32, i32, i32, i32
  }
  func.func @transform_1(%arg0: i32) -> (i32, i32, i32) {
    %c0_i32 = arith.constant 0 : i32
    %c0_i32_0 = arith.constant 0 : i32
    %c0_i32_1 = arith.constant 0 : i32
    %c0_i32_2 = arith.constant 0 : i32
    return %c0_i32, %c0_i32_0, %c0_i32_1 : i32, i32, i32
  }
  func.func @transform_2(%arg0: i32) -> (i32, i32) {
    %c0_i32 = arith.constant 0 : i32
    %c0_i32_0 = arith.constant 0 : i32
    %c0_i32_1 = arith.constant 0 : i32
    return %c0_i32, %c0_i32_0 : i32, i32
  }
  func.func @transform_3(%arg0: i32) -> (i32, i32) {
    %c0_i32 = arith.constant 0 : i32
    %c0_i32_0 = arith.constant 0 : i32
    %c0_i32_1 = arith.constant 0 : i32
    return %c0_i32, %c0_i32_0 : i32, i32
  }
  func.func @transform_4(%arg0: i32) -> (i32, i32, i32) {
    %c0_i32 = arith.constant 0 : i32
    %c0_i32_0 = arith.constant 0 : i32
    %c0_i32_1 = arith.constant 0 : i32
    %c0_i32_2 = arith.constant 0 : i32
    return %c0_i32, %c0_i32_0, %c0_i32_1 : i32, i32, i32
  }
  func.func @transform_5(%arg0: i32) -> (i32, i32) {
    %c0_i32 = arith.constant 0 : i32
    %c0_i32_0 = arith.constant 0 : i32
    %c0_i32_1 = arith.constant 0 : i32
    return %c0_i32, %c0_i32_0 : i32, i32
  }
  func.func @transform_6(%arg0: i32) -> (i32, i32) {
    %c0_i32 = arith.constant 0 : i32
    %c0_i32_0 = arith.constant 0 : i32
    %c0_i32_1 = arith.constant 0 : i32
    return %c0_i32, %c0_i32_0 : i32, i32
  }
  func.func @transform_7(%arg0: i32) -> (i32, i32, i32) {
    %c0_i32 = arith.constant 0 : i32
    %c0_i32_0 = arith.constant 0 : i32
    %c0_i32_1 = arith.constant 0 : i32
    %c0_i32_2 = arith.constant 0 : i32
    return %c0_i32, %c0_i32_0, %c0_i32_1 : i32, i32, i32
  }
  func.func @transform_8(%arg0: i32) -> (i32, i32) {
    %c0_i32 = arith.constant 0 : i32
    %c0_i32_0 = arith.constant 0 : i32
    %c0_i32_1 = arith.constant 0 : i32
    return %c0_i32, %c0_i32_0 : i32, i32
  }
  func.func @transform_9(%arg0: i32) -> (i32, i32) {
    %c0_i32 = arith.constant 0 : i32
    %c0_i32_0 = arith.constant 0 : i32
    %c0_i32_1 = arith.constant 0 : i32
    return %c0_i32, %c0_i32_0 : i32, i32
  }
  func.func @transform_10(%arg0: i32) -> (i32, i32, i32, i32) {
    %c0_i32 = arith.constant 0 : i32
    %c0_i32_0 = arith.constant 0 : i32
    %c0_i32_1 = arith.constant 0 : i32
    %c0_i32_2 = arith.constant 0 : i32
    return %arg0, %c0_i32, %c0_i32_0, %c0_i32_1 : i32, i32, i32, i32
  }
}

</mosaic_0001>

<llo_original>
// kernel: tpu_custom_call.1
$region0: #{tpu_custom_call.1}
  #allocation0 [shape = 'u32[]', space=smem, size = 0x4, offset = 0x4, fixed_abs, tag = 'smem constant byte address 0x4 - core index']
  #allocation1 [shape = 'u32[144,128]{1,0:T(1,128)}', space=vmem, size = 0x12000, scoped, tag = 'internal scratch']
  #allocation2 [shape = 'f32[18,24,128]{2,1,0:T(8,128)}', space=vmem, size = 0x36000, scoped, tag = 'scratch operand']
  #allocation3 [shape = 'f32[18,24,128]{2,1,0:T(8,128)}', space=vmem, size = 0x36000, scoped, tag = 'scratch operand']
  %s0 = inlined_call_operand.hbm [shape: f32[2,18,24,128], index: 0, kind: input, shape index: {}]
  %s1 = inlined_call_operand.hbm [shape: f32[3,3,128], index: 1, kind: input, shape index: {}]
  %s2 = inlined_call_operand.hbm [shape: bf16[128,128], index: 2, kind: input, shape index: {}]
  %s3 = inlined_call_operand.hbm [shape: f32[1,128], index: 3, kind: input, shape index: {}]
  %s4 = inlined_call_operand.hbm [shape: f32[3,3,128], index: 4, kind: input, shape index: {}]
  %s5 = inlined_call_operand.hbm [shape: bf16[128,128], index: 5, kind: input, shape index: {}]
  %s6 = inlined_call_operand.hbm [shape: f32[1,128], index: 6, kind: input, shape index: {}]
  %s7 = inlined_call_operand.vmem [shape: f32[3,3,128], index: 7, kind: input, shape index: {}]
  %s8 = inlined_call_operand.hbm [shape: bf16[128,128], index: 8, kind: input, shape index: {}]
  %s9 = inlined_call_operand.vmem [shape: f32[1,128], index: 9, kind: input, shape index: {}]
  %s10 = inlined_call_operand.hbm [shape: f32[2,16,16,128], index: 10, kind: output, shape index: {}]
  %s11 = sld [smem:[#allocation0]]
  $region105: #{tpu_custom_call.1} parent=0
    _
  %s13 = ssub.s32 1, %s11
  %s14 = scalar_select 0, %s13, %s11
  $region1: #{tpu_custom_call.1} parent=0
    #allocation4 [shape = 'u8[442368]{0}', space=vmem, size = 0x6c000, scoped, tag = 'input window, operand 0']
    #allocation5 [shape = 's32[2]{0}', space=sflag, size = 0x8, scoped, tag = 'scoped memory for tpu_custom_call.1']
    #allocation6 [shape = 's32[2]{0}', space=sflag, size = 0x8, scoped, tag = 'scoped memory for tpu_custom_call.1']
    #allocation7 [shape = 'u8[6144]{0}', space=vmem, size = 0x1800, scoped, tag = 'input window, operand 1, single buffered']
    #allocation8 [shape = 's32[1]{0}', space=sflag, size = 0x4, scoped, tag = 'scoped memory for tpu_custom_call.1']
    #allocation9 [shape = 'u8[32768]{0}', space=vmem, size = 0x8000, scoped, tag = 'input window, operand 2, single buffered']
    #allocation10 [shape = 'u8[512]{0}', space=vmem, size = 0x400, scoped, tag = 'input window, operand 3, single buffered']
    #allocation11 [shape = 's32[1]{0}', space=sflag, size = 0x4, scoped, tag = 'scoped memory for tpu_custom_call.1']
    #allocation12 [shape = 'u8[6144]{0}', space=vmem, size = 0x1800, scoped, tag = 'input window, operand 4, single buffered']
    #allocation13 [shape = 'u8[32768]{0}', space=vmem, size = 0x8000, scoped, tag = 'input window, operand 5, single buffered']
    #allocation14 [shape = 's32[1]{0}', space=sflag, size = 0x4, scoped, tag = 'scoped memory for tpu_custom_call.1']
    #allocation15 [shape = 'u8[512]{0}', space=vmem, size = 0x400, scoped, tag = 'input window, operand 6, single buffered']
    #allocation16 [shape = 'u8[32768]{0}', space=vmem, size = 0x8000, scoped, tag = 'input window, operand 8, single buffered']
    #allocation17 [shape = 's32[1]{0}', space=sflag, size = 0x4, scoped, tag = 'scoped memory for tpu_custom_call.1']
    #allocation18 [shape = 'u8[262144]{0}', space=vmem, size = 0x40000, scoped, tag = 'output window, operand 0']
    %15 = vsyncpa [#allocation5], 0
    %s16 = scalar_lea.sflag [#allocation5], 1
    %17 = vsyncpa %s16, 0
    %18 = vsyncpa [#allocation8], 0
    %19 = vsyncpa [#allocation11], 0
    %20 = vsyncpa [#allocation14], 0
    %21 = vsyncpa [#allocation17], 0
    %22 = vsyncpa [#allocation6], 0
    %s23 = scalar_lea.sflag [#allocation6], 1
    %24 = vsyncpa %s23, 0
    loop: start=0, step=1, limit=4
    $region2: #{tpu_custom_call.1} parent=1 // loop_pre_header
      _
    $region3: #{tpu_custom_call.1} parent=1 // loop_header
      %s26 = sphi 0, %s30
      %p27 = scmp.ge.s32.totalorder %s26, 4
      %s36 = sphi 0, %s38
      %s39 = sphi 0, %s36
      %s40 = sphi 0, %s39
      %s56 = sphi 0, %s40
      %s60 = sphi 0, %s60
      %s62 = sphi 0, %s60
      %s63 = sphi 0, %s62
      %s77 = sphi 0, %s63
      %s81 = sphi 0, %s81
      %s83 = sphi 0, %s81
      %s84 = sphi 0, %s83
      %s98 = sphi 0, %s84
      %s102 = sphi 0, %s102
      %s104 = sphi 0, %s102
      %s105 = sphi 0, %s104
      %s119 = sphi 0, %s105
      %s123 = sphi 0, %s123
      %s125 = sphi 0, %s123
      %s126 = sphi 0, %s125
      %s140 = sphi 0, %s126
      %s144 = sphi 0, %s144
      %s146 = sphi 0, %s144
      %s147 = sphi 0, %s146
      %s161 = sphi 0, %s147
      %s165 = sphi 0, %s165
      %s167 = sphi 0, %s165
      %s168 = sphi 0, %s167
      %s182 = sphi 0, %s168
      %s186 = sphi 0, %s186
      %s188 = sphi 0, %s186
      %s189 = sphi 0, %s188
      %s203 = sphi 0, %s189
      %s207 = sphi 0, %s207
      %s209 = sphi 0, %s207
      %s210 = sphi 0, %s209
      %s224 = sphi 0, %s210
      %s228 = sphi 0, %s228
      %s230 = sphi 0, %s228
      %s231 = sphi 0, %s230
      %s245 = sphi 0, %s231
      %s251 = sphi 0, %s253
      %s254 = sphi 0, %s251
      %s255 = sphi 0, %s254
      %s271 = sphi 0, %s255
    $region4: #{tpu_custom_call.1} parent=1 // loop_header_branch
      %29 = sbr.rel (%p27) target = $region8
    $region5: #{tpu_custom_call.1} parent=1 // loop_body
      %s31 = ssub.s32 %s26, 1
      %s32 = ssub.s32 %s26, 2
      %s33 = sadd.s32 %s26, 1
      %s34 = ssub.s32 %s26, %s33
      %p35 = scmp.eq.s32.totalorder %s34, 0
      %s37 = sadd.s32 %s36, 1
      %s38 = scalar_select %p35, %s36, %s37
      %p41 = pneg %p35
      %p42 = scmp.eq.s32.totalorder %s26, 1
      %p43 = por %p41, %p42
      %p44 = scmp.ne.s32.totalorder %s36, %s39
      %p45 = scmp.eq.s32.totalorder %s26, 0
      %p46 = por %p44, %p45
      %p47 = scmp.ne.s32.totalorder %s36, %s39
      %p48 = scmp.eq.s32.totalorder %s31, 1
      %p49 = por %p47, %p48
      %p50 = scmp.ne.s32.totalorder %s39, %s40
      %p51 = scmp.eq.s32.totalorder %s31, 0
      %p52 = por %p50, %p51
      %p53 = scmp.ne.s32.totalorder %s39, %s40
      %p54 = scmp.eq.s32.totalorder %s32, 1
      %p55 = por %p53, %p54
      %p57 = scmp.ne.s32.totalorder %s40, %s56
      %p58 = scmp.eq.s32.totalorder %s32, 0
      %p59 = por %p57, %p58
      %s61 = sadd.s32 %s60, 1
      %p64 = scmp.eq.s32.totalorder %s26, 1
      %p65 = scmp.ne.s32.totalorder %s60, %s62
      %p66 = scmp.eq.s32.totalorder %s26, 0
      %p67 = por %p65, %p66
      %p68 = scmp.ne.s32.totalorder %s60, %s62
      %p69 = scmp.eq.s32.totalorder %s31, 1
      %p70 = por %p68, %p69
      %p71 = scmp.ne.s32.totalorder %s62, %s63
      %p72 = scmp.eq.s32.totalorder %s31, 0
      %p73 = por %p71, %p72
      %p74 = scmp.ne.s32.totalorder %s62, %s63
      %p75 = scmp.eq.s32.totalorder %s32, 1
      %p76 = por %p74, %p75
      %p78 = scmp.ne.s32.totalorder %s63, %s77
      %p79 = scmp.eq.s32.totalorder %s32, 0
      %p80 = por %p78, %p79
      %s82 = sadd.s32 %s81, 1
      %p85 = scmp.eq.s32.totalorder %s26, 1
      %p86 = scmp.ne.s32.totalorder %s81, %s83
      %p87 = scmp.eq.s32.totalorder %s26, 0
      %p88 = por %p86, %p87
      %p89 = scmp.ne.s32.totalorder %s81, %s83
      %p90 = scmp.eq.s32.totalorder %s31, 1
      %p91 = por %p89, %p90
      %p92 = scmp.ne.s32.totalorder %s83, %s84
      %p93 = scmp.eq.s32.totalorder %s31, 0
      %p94 = por %p92, %p93
      %p95 = scmp.ne.s32.totalorder %s83, %s84
      %p96 = scmp.eq.s32.totalorder %s32, 1
      %p97 = por %p95, %p96
      %p99 = scmp.ne.s32.totalorder %s84, %s98
      %p100 = scmp.eq.s32.totalorder %s32, 0
      %p101 = por %p99, %p100
      %s103 = sadd.s32 %s102, 1
      %p106 = scmp.eq.s32.totalorder %s26, 1
      %p107 = scmp.ne.s32.totalorder %s102, %s104
      %p108 = scmp.eq.s32.totalorder %s26, 0
      %p109 = por %p107, %p108
      %p110 = scmp.ne.s32.totalorder %s102, %s104
      %p111 = scmp.eq.s32.totalorder %s31, 1
      %p112 = por %p110, %p111
      %p113 = scmp.ne.s32.totalorder %s104, %s105
      %p114 = scmp.eq.s32.totalorder %s31, 0
      %p115 = por %p113, %p114
      %p116 = scmp.ne.s32.totalorder %s104, %s105
      %p117 = scmp.eq.s32.totalorder %s32, 1
      %p118 = por %p116, %p117
      %p120 = scmp.ne.s32.totalorder %s105, %s119
      %p121 = scmp.eq.s32.totalorder %s32, 0
      %p122 = por %p120, %p121
      %s124 = sadd.s32 %s123, 1
      %p127 = scmp.eq.s32.totalorder %s26, 1
      %p128 = scmp.ne.s32.totalorder %s123, %s125
      %p129 = scmp.eq.s32.totalorder %s26, 0
      %p130 = por %p128, %p129
      %p131 = scmp.ne.s32.totalorder %s123, %s125
      %p132 = scmp.eq.s32.totalorder %s31, 1
      %p133 = por %p131, %p132
      %p134 = scmp.ne.s32.totalorder %s125, %s126
      %p135 = scmp.eq.s32.totalorder %s31, 0
      %p136 = por %p134, %p135
      %p137 = scmp.ne.s32.totalorder %s125, %s126
      %p138 = scmp.eq.s32.totalorder %s32, 1
      %p139 = por %p137, %p138
      %p141 = scmp.ne.s32.totalorder %s126, %s140
      %p142 = scmp.eq.s32.totalorder %s32, 0
      %p143 = por %p141, %p142
      %s145 = sadd.s32 %s144, 1
      %p148 = scmp.eq.s32.totalorder %s26, 1
      %p149 = scmp.ne.s32.totalorder %s144, %s146
      %p150 = scmp.eq.s32.totalorder %s26, 0
      %p151 = por %p149, %p150
      %p152 = scmp.ne.s32.totalorder %s144, %s146
      %p153 = scmp.eq.s32.totalorder %s31, 1
      %p154 = por %p152, %p153
      %p155 = scmp.ne.s32.totalorder %s146, %s147
      %p156 = scmp.eq.s32.totalorder %s31, 0
      %p157 = por %p155, %p156
      %p158 = scmp.ne.s32.totalorder %s146, %s147
      %p159 = scmp.eq.s32.totalorder %s32, 1
      %p160 = por %p158, %p159
      %p162 = scmp.ne.s32.totalorder %s147, %s161
      %p163 = scmp.eq.s32.totalorder %s32, 0
      %p164 = por %p162, %p163
      %s166 = sadd.s32 %s165, 1
      %p169 = scmp.eq.s32.totalorder %s26, 1
      %p170 = scmp.ne.s32.totalorder %s165, %s167
      %p171 = scmp.eq.s32.totalorder %s26, 0
      %p172 = por %p170, %p171
      %p173 = scmp.ne.s32.totalorder %s165, %s167
      %p174 = scmp.eq.s32.totalorder %s31, 1
      %p175 = por %p173, %p174
      %p176 = scmp.ne.s32.totalorder %s167, %s168
      %p177 = scmp.eq.s32.totalorder %s31, 0
      %p178 = por %p176, %p177
      %p179 = scmp.ne.s32.totalorder %s167, %s168
      %p180 = scmp.eq.s32.totalorder %s32, 1
      %p181 = por %p179, %p180
      %p183 = scmp.ne.s32.totalorder %s168, %s182
      %p184 = scmp.eq.s32.totalorder %s32, 0
      %p185 = por %p183, %p184
      %s187 = sadd.s32 %s186, 1
      %p190 = scmp.eq.s32.totalorder %s26, 1
      %p191 = scmp.ne.s32.totalorder %s186, %s188
      %p192 = scmp.eq.s32.totalorder %s26, 0
      %p193 = por %p191, %p192
      %p194 = scmp.ne.s32.totalorder %s186, %s188
      %p195 = scmp.eq.s32.totalorder %s31, 1
      %p196 = por %p194, %p195
      %p197 = scmp.ne.s32.totalorder %s188, %s189
      %p198 = scmp.eq.s32.totalorder %s31, 0
      %p199 = por %p197, %p198
      %p200 = scmp.ne.s32.totalorder %s188, %s189
      %p201 = scmp.eq.s32.totalorder %s32, 1
      %p202 = por %p200, %p201
      %p204 = scmp.ne.s32.totalorder %s189, %s203
      %p205 = scmp.eq.s32.totalorder %s32, 0
      %p206 = por %p204, %p205
      %s208 = sadd.s32 %s207, 1
      %p211 = scmp.eq.s32.totalorder %s26, 1
      %p212 = scmp.ne.s32.totalorder %s207, %s209
      %p213 = scmp.eq.s32.totalorder %s26, 0
      %p214 = por %p212, %p213
      %p215 = scmp.ne.s32.totalorder %s207, %s209
      %p216 = scmp.eq.s32.totalorder %s31, 1
      %p217 = por %p215, %p216
      %p218 = scmp.ne.s32.totalorder %s209, %s210
      %p219 = scmp.eq.s32.totalorder %s31, 0
      %p220 = por %p218, %p219
      %p221 = scmp.ne.s32.totalorder %s209, %s210
      %p222 = scmp.eq.s32.totalorder %s32, 1
      %p223 = por %p221, %p222
      %p225 = scmp.ne.s32.totalorder %s210, %s224
      %p226 = scmp.eq.s32.totalorder %s32, 0
      %p227 = por %p225, %p226
      %s229 = sadd.s32 %s228, 1
      %p232 = scmp.eq.s32.totalorder %s26, 1
      %p233 = scmp.ne.s32.totalorder %s228, %s230
      %p234 = scmp.eq.s32.totalorder %s26, 0
      %p235 = por %p233, %p234
      %p236 = scmp.ne.s32.totalorder %s228, %s230
      %p237 = scmp.eq.s32.totalorder %s31, 1
      %p238 = por %p236, %p237
      %p239 = scmp.ne.s32.totalorder %s230, %s231
      %p240 = scmp.eq.s32.totalorder %s31, 0
      %p241 = por %p239, %p240
      %p242 = scmp.ne.s32.totalorder %s230, %s231
      %p243 = scmp.eq.s32.totalorder %s32, 1
      %p244 = por %p242, %p243
      %p246 = scmp.ne.s32.totalorder %s231, %s245
      %p247 = scmp.eq.s32.totalorder %s32, 0
      %p248 = por %p246, %p247
      %s249 = ssub.s32 %s26, %s33
      %p250 = scmp.eq.s32.totalorder %s249, 0
      %s252 = sadd.s32 %s251, 1
      %s253 = scalar_select %p250, %s251, %s252
      %p256 = pneg %p250
      %p257 = scmp.eq.s32.totalorder %s26, 1
      %p258 = por %p256, %p257
      %p259 = scmp.ne.s32.totalorder %s251, %s254
      %p260 = scmp.eq.s32.totalorder %s26, 0
      %p261 = por %p259, %p260
      %p262 = scmp.ne.s32.totalorder %s251, %s254
      %p263 = scmp.eq.s32.totalorder %s31, 1
      %p264 = por %p262, %p263
      %p265 = scmp.ne.s32.totalorder %s254, %s255
      %p266 = scmp.eq.s32.totalorder %s31, 0
      %p267 = por %p265, %p266
      %p268 = scmp.ne.s32.totalorder %s254, %s255
      %p269 = scmp.eq.s32.totalorder %s32, 1
      %p270 = por %p268, %p269
      %p272 = scmp.ne.s32.totalorder %s255, %s271
      %p273 = scmp.eq.s32.totalorder %s32, 0
      %p274 = por %p272, %p273
      %p275 = scmp.le.s32.totalorder 1, %s26
      %p276 = scmp.lt.s32.totalorder %s26, 3
      %p277 = pnand %p275, %p276
      %p278 = pneg %p277
      // Predicated region
      $region9: #{tpu_custom_call.1} parent=5 // pred_check
        _
      $region10: #{tpu_custom_call.1} parent=5 // pred_check_branch
        %280 = sbr.rel (%p277) target = $region12
      $region11: #{tpu_custom_call.1} parent=5 // pred_region
        %s281 = ssub.s32 %s26, 1
        // Predicated region
        $region13: #{tpu_custom_call.1} parent=11 // pred_check
          %p282 = pneg %p73
        $region14: #{tpu_custom_call.1} parent=11 // pred_check_branch
          %284 = sbr.rel (%p282) target = $region16
        $region15: #{tpu_custom_call.1} parent=11 // pred_region
          %s286 = ssub.s32 192, 192
          %287 = vsyncadd [#allocation8], %s286
          %s288 = sshll.u32 [#allocation7], 4
          %s289 = int_to_ptr.vmem [resolvable:$true] %s288
          %294 = dma.hbm_to_vmem [thread:$0]  %s1, 192, %s289, [#allocation8], 64, 64, 4
        $region16: #{tpu_custom_call.1} parent=11 // pred_fallthru
          _
        // Predicated region
        $region17: #{tpu_custom_call.1} parent=11 // pred_check
          %p295 = pneg %p94
        $region18: #{tpu_custom_call.1} parent=11 // pred_check_branch
          %297 = sbr.rel (%p295) target = $region20
        $region19: #{tpu_custom_call.1} parent=11 // pred_region
          %s299 = ssub.s32 1024, 1024
          %300 = vsyncadd [#allocation8], %s299
          %s301 = sshll.u32 [#allocation9], 4
          %s302 = int_to_ptr.vmem [resolvable:$true] %s301
          %307 = dma.hbm_to_vmem [thread:$0]  %s2, 1024, %s302, [#allocation8], 64, 64, 4
        $region20: #{tpu_custom_call.1} parent=11 // pred_fallthru
          _
        // Predicated region
        $region21: #{tpu_custom_call.1} parent=11 // pred_check
          %p308 = pneg %p115
        $region22: #{tpu_custom_call.1} parent=11 // pred_check_branch
          %310 = sbr.rel (%p308) target = $region24
        $region23: #{tpu_custom_call.1} parent=11 // pred_region
          %s312 = ssub.s32 16, 16
          %313 = vsyncadd [#allocation11], %s312
          %s315 = sshll.u32 [#allocation10], 4
          %s316 = int_to_ptr.vmem [resolvable:$true] %s315
          %318 = dma.hbm_to_vmem [thread:$0]  %s3, 16, %s316, [#allocation11]
        $region24: #{tpu_custom_call.1} parent=11 // pred_fallthru
          _
        // Predicated region
        $region25: #{tpu_custom_call.1} parent=11 // pred_check
          %p319 = pneg %p136
        $region26: #{tpu_custom_call.1} parent=11 // pred_check_branch
          %321 = sbr.rel (%p319) target = $region28
        $region27: #{tpu_custom_call.1} parent=11 // pred_region
          %s323 = ssub.s32 192, 192
          %324 = vsyncadd [#allocation11], %s323
          %s325 = sshll.u32 [#allocation12], 4
          %s326 = int_to_ptr.vmem [resolvable:$true] %s325
          %331 = dma.hbm_to_vmem [thread:$0]  %s4, 192, %s326, [#allocation11], 64, 64, 4
        $region28: #{tpu_custom_call.1} parent=11 // pred_fallthru
          _
        // Predicated region
        $region29: #{tpu_custom_call.1} parent=11 // pred_check
          %p332 = pneg %p157
        $region30: #{tpu_custom_call.1} parent=11 // pred_check_branch
          %334 = sbr.rel (%p332) target = $region32
        $region31: #{tpu_custom_call.1} parent=11 // pred_region
          %s336 = ssub.s32 1024, 1024
          %337 = vsyncadd [#allocation14], %s336
          %s338 = sshll.u32 [#allocation13], 4
          %s339 = int_to_ptr.vmem [resolvable:$true] %s338
          %344 = dma.hbm_to_vmem [thread:$0]  %s5, 1024, %s339, [#allocation14], 64, 64, 4
        $region32: #{tpu_custom_call.1} parent=11 // pred_fallthru
          _
        // Predicated region
        $region33: #{tpu_custom_call.1} parent=11 // pred_check
          %p345 = pneg %p178
        $region34: #{tpu_custom_call.1} parent=11 // pred_check_branch
          %347 = sbr.rel (%p345) target = $region36
        $region35: #{tpu_custom_call.1} parent=11 // pred_region
          %s349 = ssub.s32 16, 16
          %350 = vsyncadd [#allocation14], %s349
          %s352 = sshll.u32 [#allocation15], 4
          %s353 = int_to_ptr.vmem [resolvable:$true] %s352
          %355 = dma.hbm_to_vmem [thread:$0]  %s6, 16, %s353, [#allocation14]
        $region36: #{tpu_custom_call.1} parent=11 // pred_fallthru
          _
        // Predicated region
        $region37: #{tpu_custom_call.1} parent=11 // pred_check
          %p356 = pneg %p199
        $region38: #{tpu_custom_call.1} parent=11 // pred_check_branch
          %358 = sbr.rel (%p356) target = $region40
        $region39: #{tpu_custom_call.1} parent=11 // pred_region
          _
        $region40: #{tpu_custom_call.1} parent=11 // pred_fallthru
          _
        // Predicated region
        $region41: #{tpu_custom_call.1} parent=11 // pred_check
          %p359 = pneg %p220
        $region42: #{tpu_custom_call.1} parent=11 // pred_check_branch
          %361 = sbr.rel (%p359) target = $region44
        $region43: #{tpu_custom_call.1} parent=11 // pred_region
          %s363 = ssub.s32 1024, 1024
          %364 = vsyncadd [#allocation17], %s363
          %s365 = sshll.u32 [#allocation16], 4
          %s366 = int_to_ptr.vmem [resolvable:$true] %s365
          %371 = dma.hbm_to_vmem [thread:$0]  %s8, 1024, %s366, [#allocation17], 64, 64, 4
        $region44: #{tpu_custom_call.1} parent=11 // pred_fallthru
          _
        // Predicated region
        $region45: #{tpu_custom_call.1} parent=11 // pred_check
          %p372 = pneg %p241
        $region46: #{tpu_custom_call.1} parent=11 // pred_check_branch
          %374 = sbr.rel (%p372) target = $region48
        $region47: #{tpu_custom_call.1} parent=11 // pred_region
          _
        $region48: #{tpu_custom_call.1} parent=11 // pred_fallthru
          _
      $region12: #{tpu_custom_call.1} parent=5 // pred_fallthru
        _
      %p375 = scmp.lt.s32.totalorder %s26, 2
      // Predicated region
      $region49: #{tpu_custom_call.1} parent=5 // pred_check
        %p376 = pneg %p375
      $region50: #{tpu_custom_call.1} parent=5 // pred_check_branch
        %378 = sbr.rel (%p376) target = $region52
      $region51: #{tpu_custom_call.1} parent=5 // pred_region
        // Predicated region
        $region53: #{tpu_custom_call.1} parent=51 // pred_check
          %p379 = pneg %p46
        $region54: #{tpu_custom_call.1} parent=51 // pred_check_branch
          %381 = sbr.rel (%p379) target = $region56
        $region55: #{tpu_custom_call.1} parent=51 // pred_region
          %s382 = sand.u32 %s36, 1
          %s383 = scalar_lea.sflag [#allocation5], %s382
          %s384 = sand.u32 %s36, 1
          %s385 = smul.addr %s384, 432
          %s386 = scalar_lea.vmem [#allocation4], %s385
          %s388 = ssub.s32 6912, 6912
          %389 = vsyncadd %s383, %s388
          %s390 = smul.addr %s26, 54
          %s391 = smul.addr %s390, 128
          %s392 = scalar_lea.hbm %s0, %s391
          %s393 = sshll.u32 %s386, 4
          %s394 = int_to_ptr.vmem [resolvable:$true] %s393
          %399 = dma.hbm_to_vmem [thread:$0]  %s392, 6912, %s394, %s383, 128, 128, 8
        $region56: #{tpu_custom_call.1} parent=51 // pred_fallthru
          _
      $region52: #{tpu_custom_call.1} parent=5 // pred_fallthru
        _
      %p400 = scmp.le.s32.totalorder 1, %s26
      %p401 = scmp.lt.s32.totalorder %s26, 3
      %p402 = pnand %p400, %p401
      %p403 = pneg %p402
      // Predicated region
      $region57: #{tpu_custom_call.1} parent=5 // pred_check
        _
      $region58: #{tpu_custom_call.1} parent=5 // pred_check_branch
        %405 = sbr.rel (%p402) target = $region60
      $region59: #{tpu_custom_call.1} parent=5 // pred_region
        %s406 = ssub.s32 %s26, 1
        %s407 = sand.u32 %s39, 1
        %s408 = scalar_lea.sflag [#allocation5], %s407
        %s409 = sand.u32 %s39, 1
        %s410 = smul.addr %s409, 432
        %s411 = scalar_lea.vmem [#allocation4], %s410
        // Predicated region
        $region61: #{tpu_custom_call.1} parent=59 // pred_check
          %p412 = pneg %p52
        $region62: #{tpu_custom_call.1} parent=59 // pred_check_branch
          %414 = sbr.rel (%p412) target = $region64
        $region63: #{tpu_custom_call.1} parent=59 // pred_region
          %415 = dma.done %s408, 6912
        $region64: #{tpu_custom_call.1} parent=59 // pred_fallthru
          _
        // Predicated region
        $region65: #{tpu_custom_call.1} parent=59 // pred_check
          %p416 = pneg %p73
        $region66: #{tpu_custom_call.1} parent=59 // pred_check_branch
          %418 = sbr.rel (%p416) target = $region68
        $region67: #{tpu_custom_call.1} parent=59 // pred_region
          %419 = dma.done [#allocation8], 192
        $region68: #{tpu_custom_call.1} parent=59 // pred_fallthru
          _
        // Predicated region
        $region69: #{tpu_custom_call.1} parent=59 // pred_check
          %p420 = pneg %p94
        $region70: #{tpu_custom_call.1} parent=59 // pred_check_branch
          %422 = sbr.rel (%p420) target = $region72
        $region71: #{tpu_custom_call.1} parent=59 // pred_region
          %423 = dma.done [#allocation8], 1024
        $region72: #{tpu_custom_call.1} parent=59 // pred_fallthru
          _
        // Predicated region
        $region73: #{tpu_custom_call.1} parent=59 // pred_check
          %p424 = pneg %p115
        $region74: #{tpu_custom_call.1} parent=59 // pred_check_branch
          %426 = sbr.rel (%p424) target = $region76
        $region75: #{tpu_custom_call.1} parent=59 // pred_region
          %427 = dma.done [#allocation11], 16
        $region76: #{tpu_custom_call.1} parent=59 // pred_fallthru
          _
        // Predicated region
        $region77: #{tpu_custom_call.1} parent=59 // pred_check
          %p428 = pneg %p136
        $region78: #{tpu_custom_call.1} parent=59 // pred_check_branch
          %430 = sbr.rel (%p428) target = $region80
        $region79: #{tpu_custom_call.1} parent=59 // pred_region
          %431 = dma.done [#allocation11], 192
        $region80: #{tpu_custom_call.1} parent=59 // pred_fallthru
          _
        // Predicated region
        $region81: #{tpu_custom_call.1} parent=59 // pred_check
          %p432 = pneg %p157
        $region82: #{tpu_custom_call.1} parent=59 // pred_check_branch
          %434 = sbr.rel (%p432) target = $region84
        $region83: #{tpu_custom_call.1} parent=59 // pred_region
          %435 = dma.done [#allocation14], 1024
        $region84: #{tpu_custom_call.1} parent=59 // pred_fallthru
          _
        // Predicated region
        $region85: #{tpu_custom_call.1} parent=59 // pred_check
          %p436 = pneg %p178
        $region86: #{tpu_custom_call.1} parent=59 // pred_check_branch
          %438 = sbr.rel (%p436) target = $region88
        $region87: #{tpu_custom_call.1} parent=59 // pred_region
          %439 = dma.done [#allocation14], 16
        $region88: #{tpu_custom_call.1} parent=59 // pred_fallthru
          _
        // Predicated region
        $region89: #{tpu_custom_call.1} parent=59 // pred_check
          %p440 = pneg %p220
        $region90: #{tpu_custom_call.1} parent=59 // pred_check_branch
          %442 = sbr.rel (%p440) target = $region92
        $region91: #{tpu_custom_call.1} parent=59 // pred_region
          %443 = dma.done [#allocation17], 1024
        $region92: #{tpu_custom_call.1} parent=59 // pred_fallthru
          _
        %s444 = sand.u32 %s39, 1
        %s445 = scalar_lea.sflag [#allocation5], %s444
        %s446 = sand.u32 %s39, 1
        %s447 = smul.addr %s446, 432
        %s448 = scalar_lea.vmem [#allocation4], %s447
        %p449 = pneg %p52
        %p450 = pneg %p49
        %p451 = pneg %p73
        %p452 = pneg %p70
        %p453 = pneg %p94
        %p454 = pneg %p91
        %p455 = pneg %p115
        %p456 = pneg %p112
        %p457 = pneg %p136
        %p458 = pneg %p133
        %p459 = pneg %p157
        %p460 = pneg %p154
        %p461 = pneg %p178
        %p462 = pneg %p175
        %p463 = pneg %p199
        %p464 = pneg %p196
        %p465 = pneg %p220
        %p466 = pneg %p217
        %p467 = pneg %p241
        %p468 = pneg %p238
        %p469 = pneg %p267
        %p470 = pneg %p264
        %s471 = sand.u32 %s254, 1
        %s472 = scalar_lea.sflag [#allocation6], %s471
        %s473 = sand.u32 %s254, 1
        %s474 = smul.addr %s473, 256
        %s475 = scalar_lea.vmem [#allocation18], %s474
        %v477 = vld [vmem:[%s411] sm:$0xff]
        %v478 = vld [vmem:[%s411 + $0x8] sm:$0xff]
        %v479 = vld [vmem:[%s411 + $0x18] sm:$0xff]
        %v480 = vld [vmem:[%s411 + $0x20] sm:$0xff]
        %v481 = vld [vmem:[%s411 + $0x30] sm:$0xff]
        %v482 = vld [vmem:[%s411 + $0x38] sm:$0xff]
        %v483 = vld [vmem:[%s411 + $0x48] sm:$0xff]
        %v484 = vld [vmem:[%s411 + $0x50] sm:$0xff]
        %v485 = vld [vmem:[%s411 + $0x60] sm:$0xff]
        %v486 = vld [vmem:[%s411 + $0x68] sm:$0xff]
        %v487 = vld [vmem:[%s411 + $0x78] sm:$0xff]
        %v488 = vld [vmem:[%s411 + $0x80] sm:$0xff]
        %v489 = vld [vmem:[%s411 + $0x90] sm:$0xff]
        %v490 = vld [vmem:[%s411 + $0x98] sm:$0xff]
        %v491 = vld [vmem:[%s411 + $0xa8] sm:$0xff]
        %v492 = vld [vmem:[%s411 + $0xb0] sm:$0xff]
        %v493 = vld [vmem:[%s411 + $0xc0] sm:$0xff]
        %v494 = vld [vmem:[%s411 + $0xc8] sm:$0xff]
        %v495 = vld [vmem:[%s411 + $0xd8] sm:$0xff]
        %v496 = vld [vmem:[%s411 + $0xe0] sm:$0xff]
        %v497 = vld [vmem:[%s411 + $0xf0] sm:$0xff]
        %v498 = vld [vmem:[%s411 + $0xf8] sm:$0xff]
        %v499 = vld [vmem:[%s411 + $0x108] sm:$0xff]
        %v500 = vld [vmem:[%s411 + $0x110] sm:$0xff]
        %v501 = vld [vmem:[%s411 + $0x120] sm:$0xff]
        %v502 = vld [vmem:[%s411 + $0x128] sm:$0xff]
        %v503 = vld [vmem:[%s411 + $0x138] sm:$0xff]
        %v504 = vld [vmem:[%s411 + $0x140] sm:$0xff]
        %v505 = vld [vmem:[%s411 + $0x150] sm:$0xff]
        %v506 = vld [vmem:[%s411 + $0x158] sm:$0xff]
        %v507 = vld [vmem:[%s411 + $0x168] sm:$0xff]
        %v508 = vld [vmem:[%s411 + $0x170] sm:$0xff]
        %v509 = vmax.f32 %v477, 0.0
        %v510 = vmax.f32 %v478, 0.0
        %v511 = vmax.f32 %v479, 0.0
        %v512 = vmax.f32 %v480, 0.0
        %v513 = vmax.f32 %v481, 0.0
        %v514 = vmax.f32 %v482, 0.0
        %v515 = vmax.f32 %v483, 0.0
        %v516 = vmax.f32 %v484, 0.0
        %v517 = vmax.f32 %v485, 0.0
        %v518 = vmax.f32 %v486, 0.0
        %v519 = vmax.f32 %v487, 0.0
        %v520 = vmax.f32 %v488, 0.0
        %v521 = vmax.f32 %v489, 0.0
        %v522 = vmax.f32 %v490, 0.0
        %v523 = vmax.f32 %v491, 0.0
        %v524 = vmax.f32 %v492, 0.0
        %v525 = vmax.f32 %v493, 0.0
        %v526 = vmax.f32 %v494, 0.0
        %v527 = vmax.f32 %v495, 0.0
        %v528 = vmax.f32 %v496, 0.0
        %v529 = vmax.f32 %v497, 0.0
        %v530 = vmax.f32 %v498, 0.0
        %v531 = vmax.f32 %v499, 0.0
        %v532 = vmax.f32 %v500, 0.0
        %v533 = vmax.f32 %v501, 0.0
        %v534 = vmax.f32 %v502, 0.0
        %v535 = vmax.f32 %v503, 0.0
        %v536 = vmax.f32 %v504, 0.0
        %v537 = vmax.f32 %v505, 0.0
        %v538 = vmax.f32 %v506, 0.0
        %v539 = vmax.f32 %v507, 0.0
        %v540 = vmax.f32 %v508, 0.0
        %v541 = vld [vmem:[#allocation7] sm:$0x1]
        %v542 = vlaneseq
        %v543 = vshrl.u32 %v542, 7
        %v544 = vsub.s32 0, %v543
        %v545 = vrot.slane %v541, %v544
        %v546 = vmul.f32 %v509, %v545
        %v547 = vmul.f32 %v510, %v545
        %v548 = vmul.f32 %v511, %v545
        %v549 = vmul.f32 %v512, %v545
        %v550 = vmul.f32 %v513, %v545
        %v551 = vmul.f32 %v514, %v545
        %v552 = vmul.f32 %v515, %v545
        %v553 = vmul.f32 %v516, %v545
        %v554 = vmul.f32 %v517, %v545
        %v555 = vmul.f32 %v518, %v545
        %v556 = vmul.f32 %v519, %v545
        %v557 = vmul.f32 %v520, %v545
        %v558 = vmul.f32 %v521, %v545
        %v559 = vmul.f32 %v522, %v545
        %v560 = vmul.f32 %v523, %v545
        %v561 = vmul.f32 %v524, %v545
        %v562 = vmul.f32 %v525, %v545
        %v563 = vmul.f32 %v526, %v545
        %v564 = vmul.f32 %v527, %v545
        %v565 = vmul.f32 %v528, %v545
        %v566 = vmul.f32 %v529, %v545
        %v567 = vmul.f32 %v530, %v545
        %v568 = vmul.f32 %v531, %v545
        %v569 = vmul.f32 %v532, %v545
        %v570 = vmul.f32 %v533, %v545
        %v571 = vmul.f32 %v534, %v545
        %v572 = vmul.f32 %v535, %v545
        %v573 = vmul.f32 %v536, %v545
        %v574 = vmul.f32 %v537, %v545
        %v575 = vmul.f32 %v538, %v545
        %v576 = vmul.f32 %v539, %v545
        %v577 = vmul.f32 %v540, %v545
        %v578 = vadd.f32 %v546, 0.0
        %v579 = vadd.f32 %v547, 0.0
        %v580 = vadd.f32 %v548, 0.0
        %v581 = vadd.f32 %v549, 0.0
        %v582 = vadd.f32 %v550, 0.0
        %v583 = vadd.f32 %v551, 0.0
        %v584 = vadd.f32 %v552, 0.0
        %v585 = vadd.f32 %v553, 0.0
        %v586 = vadd.f32 %v554, 0.0
        %v587 = vadd.f32 %v555, 0.0
        %v588 = vadd.f32 %v556, 0.0
        %v589 = vadd.f32 %v557, 0.0
        %v590 = vadd.f32 %v558, 0.0
        %v591 = vadd.f32 %v559, 0.0
        %v592 = vadd.f32 %v560, 0.0
        %v593 = vadd.f32 %v561, 0.0
        %v594 = vadd.f32 %v562, 0.0
        %v595 = vadd.f32 %v563, 0.0
        %v596 = vadd.f32 %v564, 0.0
        %v597 = vadd.f32 %v565, 0.0
        %v598 = vadd.f32 %v566, 0.0
        %v599 = vadd.f32 %v567, 0.0
        %v600 = vadd.f32 %v568, 0.0
        %v601 = vadd.f32 %v569, 0.0
        %v602 = vadd.f32 %v570, 0.0
        %v603 = vadd.f32 %v571, 0.0
        %v604 = vadd.f32 %v572, 0.0
        %v605 = vadd.f32 %v573, 0.0
        %v606 = vadd.f32 %v574, 0.0
        %v607 = vadd.f32 %v575, 0.0
        %v608 = vadd.f32 %v576, 0.0
        %v609 = vadd.f32 %v577, 0.0
        %v610 = vld [vmem:[%s411 + $0x1] sm:$0xff]
        %v611 = vld [vmem:[%s411 + $0x9] sm:$0xff]
        %v612 = vld [vmem:[%s411 + $0x19] sm:$0xff]
        %v613 = vld [vmem:[%s411 + $0x21] sm:$0xff]
        %v614 = vld [vmem:[%s411 + $0x31] sm:$0xff]
        %v615 = vld [vmem:[%s411 + $0x39] sm:$0xff]
        %v616 = vld [vmem:[%s411 + $0x49] sm:$0xff]
        %v617 = vld [vmem:[%s411 + $0x51] sm:$0xff]
        %v618 = vld [vmem:[%s411 + $0x61] sm:$0xff]
        %v619 = vld [vmem:[%s411 + $0x69] sm:$0xff]
        %v620 = vld [vmem:[%s411 + $0x79] sm:$0xff]
        %v621 = vld [vmem:[%s411 + $0x81] sm:$0xff]
        %v622 = vld [vmem:[%s411 + $0x91] sm:$0xff]
        %v623 = vld [vmem:[%s411 + $0x99] sm:$0xff]
        %v624 = vld [vmem:[%s411 + $0xa9] sm:$0xff]
        %v625 = vld [vmem:[%s411 + $0xb1] sm:$0xff]
        %v626 = vld [vmem:[%s411 + $0xc1] sm:$0xff]
        %v627 = vld [vmem:[%s411 + $0xc9] sm:$0xff]
        %v628 = vld [vmem:[%s411 + $0xd9] sm:$0xff]
        %v629 = vld [vmem:[%s411 + $0xe1] sm:$0xff]
        %v630 = vld [vmem:[%s411 + $0xf1] sm:$0xff]
        %v631 = vld [vmem:[%s411 + $0xf9] sm:$0xff]
        %v632 = vld [vmem:[%s411 + $0x109] sm:$0xff]
        %v633 = vld [vmem:[%s411 + $0x111] sm:$0xff]
        %v634 = vld [vmem:[%s411 + $0x121] sm:$0xff]
        %v635 = vld [vmem:[%s411 + $0x129] sm:$0xff]
        %v636 = vld [vmem:[%s411 + $0x139] sm:$0xff]
        %v637 = vld [vmem:[%s411 + $0x141] sm:$0xff]
        %v638 = vld [vmem:[%s411 + $0x151] sm:$0xff]
        %v639 = vld [vmem:[%s411 + $0x159] sm:$0xff]
        %v640 = vld [vmem:[%s411 + $0x169] sm:$0xff]
        %v641 = vld [vmem:[%s411 + $0x171] sm:$0xff]
        %v642 = vmax.f32 %v610, 0.0
        %v643 = vmax.f32 %v611, 0.0
        %v644 = vmax.f32 %v612, 0.0
        %v645 = vmax.f32 %v613, 0.0
        %v646 = vmax.f32 %v614, 0.0
        %v647 = vmax.f32 %v615, 0.0
        %v648 = vmax.f32 %v616, 0.0
        %v649 = vmax.f32 %v617, 0.0
        %v650 = vmax.f32 %v618, 0.0
        %v651 = vmax.f32 %v619, 0.0
        %v652 = vmax.f32 %v620, 0.0
        %v653 = vmax.f32 %v621, 0.0
        %v654 = vmax.f32 %v622, 0.0
        %v655 = vmax.f32 %v623, 0.0
        %v656 = vmax.f32 %v624, 0.0
        %v657 = vmax.f32 %v625, 0.0
        %v658 = vmax.f32 %v626, 0.0
        %v659 = vmax.f32 %v627, 0.0
        %v660 = vmax.f32 %v628, 0.0
        %v661 = vmax.f32 %v629, 0.0
        %v662 = vmax.f32 %v630, 0.0
        %v663 = vmax.f32 %v631, 0.0
        %v664 = vmax.f32 %v632, 0.0
        %v665 = vmax.f32 %v633, 0.0
        %v666 = vmax.f32 %v634, 0.0
        %v667 = vmax.f32 %v635, 0.0
        %v668 = vmax.f32 %v636, 0.0
        %v669 = vmax.f32 %v637, 0.0
        %v670 = vmax.f32 %v638, 0.0
        %v671 = vmax.f32 %v639, 0.0
        %v672 = vmax.f32 %v640, 0.0
        %v673 = vmax.f32 %v641, 0.0
        %v674 = vld [vmem:[#allocation7 + $0x1] sm:$0x1]
        %v675 = vlaneseq
        %v676 = vshrl.u32 %v675, 7
        %v677 = vsub.s32 0, %v676
        %v678 = vrot.slane %v674, %v677
        %v679 = vmul.f32 %v642, %v678
        %v680 = vmul.f32 %v643, %v678
        %v681 = vmul.f32 %v644, %v678
        %v682 = vmul.f32 %v645, %v678
        %v683 = vmul.f32 %v646, %v678
        %v684 = vmul.f32 %v647, %v678
        %v685 = vmul.f32 %v648, %v678
        %v686 = vmul.f32 %v649, %v678
        %v687 = vmul.f32 %v650, %v678
        %v688 = vmul.f32 %v651, %v678
        %v689 = vmul.f32 %v652, %v678
        %v690 = vmul.f32 %v653, %v678
        %v691 = vmul.f32 %v654, %v678
        %v692 = vmul.f32 %v655, %v678
        %v693 = vmul.f32 %v656, %v678
        %v694 = vmul.f32 %v657, %v678
        %v695 = vmul.f32 %v658, %v678
        %v696 = vmul.f32 %v659, %v678
        %v697 = vmul.f32 %v660, %v678
        %v698 = vmul.f32 %v661, %v678
        %v699 = vmul.f32 %v662, %v678
        %v700 = vmul.f32 %v663, %v678
        %v701 = vmul.f32 %v664, %v678
        %v702 = vmul.f32 %v665, %v678
        %v703 = vmul.f32 %v666, %v678
        %v704 = vmul.f32 %v667, %v678
        %v705 = vmul.f32 %v668, %v678
        %v706 = vmul.f32 %v669, %v678
        %v707 = vmul.f32 %v670, %v678
        %v708 = vmul.f32 %v671, %v678
        %v709 = vmul.f32 %v672, %v678
        %v710 = vmul.f32 %v673, %v678
        %v711 = vadd.f32 %v578, %v679
        %v712 = vadd.f32 %v579, %v680
        %v713 = vadd.f32 %v580, %v681
        %v714 = vadd.f32 %v581, %v682
        %v715 = vadd.f32 %v582, %v683
        %v716 = vadd.f32 %v583, %v684
        %v717 = vadd.f32 %v584, %v685
        %v718 = vadd.f32 %v585, %v686
        %v719 = vadd.f32 %v586, %v687
        %v720 = vadd.f32 %v587, %v688
        %v721 = vadd.f32 %v588, %v689
        %v722 = vadd.f32 %v589, %v690
        %v723 = vadd.f32 %v590, %v691
        %v724 = vadd.f32 %v591, %v692
        %v725 = vadd.f32 %v592, %v693
        %v726 = vadd.f32 %v593, %v694
        %v727 = vadd.f32 %v594, %v695
        %v728 = vadd.f32 %v595, %v696
        %v729 = vadd.f32 %v596, %v697
        %v730 = vadd.f32 %v597, %v698
        %v731 = vadd.f32 %v598, %v699
        %v732 = vadd.f32 %v599, %v700
        %v733 = vadd.f32 %v600, %v701
        %v734 = vadd.f32 %v601, %v702
        %v735 = vadd.f32 %v602, %v703
        %v736 = vadd.f32 %v603, %v704
        %v737 = vadd.f32 %v604, %v705
        %v738 = vadd.f32 %v605, %v706
        %v739 = vadd.f32 %v606, %v707
        %v740 = vadd.f32 %v607, %v708
        %v741 = vadd.f32 %v608, %v709
        %v742 = vadd.f32 %v609, %v710
        %v743 = vld [vmem:[%s411 + $0x2] sm:$0xff]
        %v744 = vld [vmem:[%s411 + $0xa] sm:$0xff]
        %v745 = vld [vmem:[%s411 + $0x1a] sm:$0xff]
        %v746 = vld [vmem:[%s411 + $0x22] sm:$0xff]
        %v747 = vld [vmem:[%s411 + $0x32] sm:$0xff]
        %v748 = vld [vmem:[%s411 + $0x3a] sm:$0xff]
        %v749 = vld [vmem:[%s411 + $0x4a] sm:$0xff]
        %v750 = vld [vmem:[%s411 + $0x52] sm:$0xff]
        %v751 = vld [vmem:[%s411 + $0x62] sm:$0xff]
        %v752 = vld [vmem:[%s411 + $0x6a] sm:$0xff]
        %v753 = vld [vmem:[%s411 + $0x7a] sm:$0xff]
        %v754 = vld [vmem:[%s411 + $0x82] sm:$0xff]
        %v755 = vld [vmem:[%s411 + $0x92] sm:$0xff]
        %v756 = vld [vmem:[%s411 + $0x9a] sm:$0xff]
        %v757 = vld [vmem:[%s411 + $0xaa] sm:$0xff]
        %v758 = vld [vmem:[%s411 + $0xb2] sm:$0xff]
        %v759 = vld [vmem:[%s411 + $0xc2] sm:$0xff]
        %v760 = vld [vmem:[%s411 + $0xca] sm:$0xff]
        %v761 = vld [vmem:[%s411 + $0xda] sm:$0xff]
        %v762 = vld [vmem:[%s411 + $0xe2] sm:$0xff]
        %v763 = vld [vmem:[%s411 + $0xf2] sm:$0xff]
        %v764 = vld [vmem:[%s411 + $0xfa] sm:$0xff]
        %v765 = vld [vmem:[%s411 + $0x10a] sm:$0xff]
        %v766 = vld [vmem:[%s411 + $0x112] sm:$0xff]
        %v767 = vld [vmem:[%s411 + $0x122] sm:$0xff]
        %v768 = vld [vmem:[%s411 + $0x12a] sm:$0xff]
        %v769 = vld [vmem:[%s411 + $0x13a] sm:$0xff]
        %v770 = vld [vmem:[%s411 + $0x142] sm:$0xff]
        %v771 = vld [vmem:[%s411 + $0x152] sm:$0xff]
        %v772 = vld [vmem:[%s411 + $0x15a] sm:$0xff]
        %v773 = vld [vmem:[%s411 + $0x16a] sm:$0xff]
        %v774 = vld [vmem:[%s411 + $0x172] sm:$0xff]
        %v775 = vmax.f32 %v743, 0.0
        %v776 = vmax.f32 %v744, 0.0
        %v777 = vmax.f32 %v745, 0.0
        %v778 = vmax.f32 %v746, 0.0
        %v779 = vmax.f32 %v747, 0.0
        %v780 = vmax.f32 %v748, 0.0
        %v781 = vmax.f32 %v749, 0.0
        %v782 = vmax.f32 %v750, 0.0
        %v783 = vmax.f32 %v751, 0.0
        %v784 = vmax.f32 %v752, 0.0
        %v785 = vmax.f32 %v753, 0.0
        %v786 = vmax.f32 %v754, 0.0
        %v787 = vmax.f32 %v755, 0.0
        %v788 = vmax.f32 %v756, 0.0
        %v789 = vmax.f32 %v757, 0.0
        %v790 = vmax.f32 %v758, 0.0
        %v791 = vmax.f32 %v759, 0.0
        %v792 = vmax.f32 %v760, 0.0
        %v793 = vmax.f32 %v761, 0.0
        %v794 = vmax.f32 %v762, 0.0
        %v795 = vmax.f32 %v763, 0.0
        %v796 = vmax.f32 %v764, 0.0
        %v797 = vmax.f32 %v765, 0.0
        %v798 = vmax.f32 %v766, 0.0
        %v799 = vmax.f32 %v767, 0.0
        %v800 = vmax.f32 %v768, 0.0
        %v801 = vmax.f32 %v769, 0.0
        %v802 = vmax.f32 %v770, 0.0
        %v803 = vmax.f32 %v771, 0.0
        %v804 = vmax.f32 %v772, 0.0
        %v805 = vmax.f32 %v773, 0.0
        %v806 = vmax.f32 %v774, 0.0
        %v807 = vld [vmem:[#allocation7 + $0x2] sm:$0x1]
        %v808 = vlaneseq
        %v809 = vshrl.u32 %v808, 7
        %v810 = vsub.s32 0, %v809
        %v811 = vrot.slane %v807, %v810
        %v812 = vmul.f32 %v775, %v811
        %v813 = vmul.f32 %v776, %v811
        %v814 = vmul.f32 %v777, %v811
        %v815 = vmul.f32 %v778, %v811
        %v816 = vmul.f32 %v779, %v811
        %v817 = vmul.f32 %v780, %v811
        %v818 = vmul.f32 %v781, %v811
        %v819 = vmul.f32 %v782, %v811
        %v820 = vmul.f32 %v783, %v811
        %v821 = vmul.f32 %v784, %v811
        %v822 = vmul.f32 %v785, %v811
        %v823 = vmul.f32 %v786, %v811
        %v824 = vmul.f32 %v787, %v811
        %v825 = vmul.f32 %v788, %v811
        %v826 = vmul.f32 %v789, %v811
        %v827 = vmul.f32 %v790, %v811
        %v828 = vmul.f32 %v791, %v811
        %v829 = vmul.f32 %v792, %v811
        %v830 = vmul.f32 %v793, %v811
        %v831 = vmul.f32 %v794, %v811
        %v832 = vmul.f32 %v795, %v811
        %v833 = vmul.f32 %v796, %v811
        %v834 = vmul.f32 %v797, %v811
        %v835 = vmul.f32 %v798, %v811
        %v836 = vmul.f32 %v799, %v811
        %v837 = vmul.f32 %v800, %v811
        %v838 = vmul.f32 %v801, %v811
        %v839 = vmul.f32 %v802, %v811
        %v840 = vmul.f32 %v803, %v811
        %v841 = vmul.f32 %v804, %v811
        %v842 = vmul.f32 %v805, %v811
        %v843 = vmul.f32 %v806, %v811
        %v844 = vadd.f32 %v711, %v812
        %v845 = vadd.f32 %v712, %v813
        %v846 = vadd.f32 %v713, %v814
        %v847 = vadd.f32 %v714, %v815
        %v848 = vadd.f32 %v715, %v816
        %v849 = vadd.f32 %v716, %v817
        %v850 = vadd.f32 %v717, %v818
        %v851 = vadd.f32 %v718, %v819
        %v852 = vadd.f32 %v719, %v820
        %v853 = vadd.f32 %v720, %v821
        %v854 = vadd.f32 %v721, %v822
        %v855 = vadd.f32 %v722, %v823
        %v856 = vadd.f32 %v723, %v824
        %v857 = vadd.f32 %v724, %v825
        %v858 = vadd.f32 %v725, %v826
        %v859 = vadd.f32 %v726, %v827
        %v860 = vadd.f32 %v727, %v828
        %v861 = vadd.f32 %v728, %v829
        %v862 = vadd.f32 %v729, %v830
        %v863 = vadd.f32 %v730, %v831
        %v864 = vadd.f32 %v731, %v832
        %v865 = vadd.f32 %v732, %v833
        %v866 = vadd.f32 %v733, %v834
        %v867 = vadd.f32 %v734, %v835
        %v868 = vadd.f32 %v735, %v836
        %v869 = vadd.f32 %v736, %v837
        %v870 = vadd.f32 %v737, %v838
        %v871 = vadd.f32 %v738, %v839
        %v872 = vadd.f32 %v739, %v840
        %v873 = vadd.f32 %v740, %v841
        %v874 = vadd.f32 %v741, %v842
        %v875 = vadd.f32 %v742, %v843
        %s876 = scalar_lea.vmem %s411, 24 [#allocation4]
        %v877 = vld [vmem:[%s876] sm:$0xff]
        %v878 = vld [vmem:[%s876 + $0x8] sm:$0xff]
        %v879 = vld [vmem:[%s876 + $0x18] sm:$0xff]
        %v880 = vld [vmem:[%s876 + $0x20] sm:$0xff]
        %v881 = vld [vmem:[%s876 + $0x30] sm:$0xff]
        %v882 = vld [vmem:[%s876 + $0x38] sm:$0xff]
        %v883 = vld [vmem:[%s876 + $0x48] sm:$0xff]
        %v884 = vld [vmem:[%s876 + $0x50] sm:$0xff]
        %v885 = vld [vmem:[%s876 + $0x60] sm:$0xff]
        %v886 = vld [vmem:[%s876 + $0x68] sm:$0xff]
        %v887 = vld [vmem:[%s876 + $0x78] sm:$0xff]
        %v888 = vld [vmem:[%s876 + $0x80] sm:$0xff]
        %v889 = vld [vmem:[%s876 + $0x90] sm:$0xff]
        %v890 = vld [vmem:[%s876 + $0x98] sm:$0xff]
        %v891 = vld [vmem:[%s876 + $0xa8] sm:$0xff]
        %v892 = vld [vmem:[%s876 + $0xb0] sm:$0xff]
        %v893 = vld [vmem:[%s876 + $0xc0] sm:$0xff]
        %v894 = vld [vmem:[%s876 + $0xc8] sm:$0xff]
        %v895 = vld [vmem:[%s876 + $0xd8] sm:$0xff]
        %v896 = vld [vmem:[%s876 + $0xe0] sm:$0xff]
        %v897 = vld [vmem:[%s876 + $0xf0] sm:$0xff]
        %v898 = vld [vmem:[%s876 + $0xf8] sm:$0xff]
        %v899 = vld [vmem:[%s876 + $0x108] sm:$0xff]
        %v900 = vld [vmem:[%s876 + $0x110] sm:$0xff]
        %v901 = vld [vmem:[%s876 + $0x120] sm:$0xff]
        %v902 = vld [vmem:[%s876 + $0x128] sm:$0xff]
        %v903 = vld [vmem:[%s876 + $0x138] sm:$0xff]
        %v904 = vld [vmem:[%s876 + $0x140] sm:$0xff]
        %v905 = vld [vmem:[%s876 + $0x150] sm:$0xff]
        %v906 = vld [vmem:[%s876 + $0x158] sm:$0xff]
        %v907 = vld [vmem:[%s876 + $0x168] sm:$0xff]
        %v908 = vld [vmem:[%s876 + $0x170] sm:$0xff]
        %v909 = vmax.f32 %v877, 0.0
        %v910 = vmax.f32 %v878, 0.0
        %v911 = vmax.f32 %v879, 0.0
        %v912 = vmax.f32 %v880, 0.0
        %v913 = vmax.f32 %v881, 0.0
        %v914 = vmax.f32 %v882, 0.0
        %v915 = vmax.f32 %v883, 0.0
        %v916 = vmax.f32 %v884, 0.0
        %v917 = vmax.f32 %v885, 0.0
        %v918 = vmax.f32 %v886, 0.0
        %v919 = vmax.f32 %v887, 0.0
        %v920 = vmax.f32 %v888, 0.0
        %v921 = vmax.f32 %v889, 0.0
        %v922 = vmax.f32 %v890, 0.0
        %v923 = vmax.f32 %v891, 0.0
        %v924 = vmax.f32 %v892, 0.0
        %v925 = vmax.f32 %v893, 0.0
        %v926 = vmax.f32 %v894, 0.0
        %v927 = vmax.f32 %v895, 0.0
        %v928 = vmax.f32 %v896, 0.0
        %v929 = vmax.f32 %v897, 0.0
        %v930 = vmax.f32 %v898, 0.0
        %v931 = vmax.f32 %v899, 0.0
        %v932 = vmax.f32 %v900, 0.0
        %v933 = vmax.f32 %v901, 0.0
        %v934 = vmax.f32 %v902, 0.0
        %v935 = vmax.f32 %v903, 0.0
        %v936 = vmax.f32 %v904, 0.0
        %v937 = vmax.f32 %v905, 0.0
        %v938 = vmax.f32 %v906, 0.0
        %v939 = vmax.f32 %v907, 0.0
        %v940 = vmax.f32 %v908, 0.0
        %s941 = scalar_lea.vmem [#allocation7], 4
        %v942 = vld [vmem:[%s941] sm:$0x1]
        %v943 = vlaneseq
        %v944 = vshrl.u32 %v943, 7
        %v945 = vsub.s32 0, %v944
        %v946 = vrot.slane %v942, %v945
        %v947 = vmul.f32 %v909, %v946
        %v948 = vmul.f32 %v910, %v946
        %v949 = vmul.f32 %v911, %v946
        %v950 = vmul.f32 %v912, %v946
        %v951 = vmul.f32 %v913, %v946
        %v952 = vmul.f32 %v914, %v946
        %v953 = vmul.f32 %v915, %v946
        %v954 = vmul.f32 %v916, %v946
        %v955 = vmul.f32 %v917, %v946
        %v956 = vmul.f32 %v918, %v946
        %v957 = vmul.f32 %v919, %v946
        %v958 = vmul.f32 %v920, %v946
        %v959 = vmul.f32 %v921, %v946
        %v960 = vmul.f32 %v922, %v946
        %v961 = vmul.f32 %v923, %v946
        %v962 = vmul.f32 %v924, %v946
        %v963 = vmul.f32 %v925, %v946
        %v964 = vmul.f32 %v926, %v946
        %v965 = vmul.f32 %v927, %v946
        %v966 = vmul.f32 %v928, %v946
        %v967 = vmul.f32 %v929, %v946
        %v968 = vmul.f32 %v930, %v946
        %v969 = vmul.f32 %v931, %v946
        %v970 = vmul.f32 %v932, %v946
        %v971 = vmul.f32 %v933, %v946
        %v972 = vmul.f32 %v934, %v946
        %v973 = vmul.f32 %v935, %v946
        %v974 = vmul.f32 %v936, %v946
        %v975 = vmul.f32 %v937, %v946
        %v976 = vmul.f32 %v938, %v946
        %v977 = vmul.f32 %v939, %v946
        %v978 = vmul.f32 %v940, %v946
        %v979 = vadd.f32 %v844, %v947
        %v980 = vadd.f32 %v845, %v948
        %v981 = vadd.f32 %v846, %v949
        %v982 = vadd.f32 %v847, %v950
        %v983 = vadd.f32 %v848, %v951
        %v984 = vadd.f32 %v849, %v952
        %v985 = vadd.f32 %v850, %v953
        %v986 = vadd.f32 %v851, %v954
        %v987 = vadd.f32 %v852, %v955
        %v988 = vadd.f32 %v853, %v956
        %v989 = vadd.f32 %v854, %v957
        %v990 = vadd.f32 %v855, %v958
        %v991 = vadd.f32 %v856, %v959
        %v992 = vadd.f32 %v857, %v960
        %v993 = vadd.f32 %v858, %v961
        %v994 = vadd.f32 %v859, %v962
        %v995 = vadd.f32 %v860, %v963
        %v996 = vadd.f32 %v861, %v964
        %v997 = vadd.f32 %v862, %v965
        %v998 = vadd.f32 %v863, %v966
        %v999 = vadd.f32 %v864, %v967
        %v1000 = vadd.f32 %v865, %v968
        %v1001 = vadd.f32 %v866, %v969
        %v1002 = vadd.f32 %v867, %v970
        %v1003 = vadd.f32 %v868, %v971
        %v1004 = vadd.f32 %v869, %v972
        %v1005 = vadd.f32 %v870, %v973
        %v1006 = vadd.f32 %v871, %v974
        %v1007 = vadd.f32 %v872, %v975
        %v1008 = vadd.f32 %v873, %v976
        %v1009 = vadd.f32 %v874, %v977
        %v1010 = vadd.f32 %v875, %v978
        %v1011 = vld [vmem:[%s876 + $0x1] sm:$0xff]
        %v1012 = vld [vmem:[%s876 + $0x9] sm:$0xff]
        %v1013 = vld [vmem:[%s876 + $0x19] sm:$0xff]
        %v1014 = vld [vmem:[%s876 + $0x21] sm:$0xff]
        %v1015 = vld [vmem:[%s876 + $0x31] sm:$0xff]
        %v1016 = vld [vmem:[%s876 + $0x39] sm:$0xff]
        %v1017 = vld [vmem:[%s876 + $0x49] sm:$0xff]
        %v1018 = vld [vmem:[%s876 + $0x51] sm:$0xff]
        %v1019 = vld [vmem:[%s876 + $0x61] sm:$0xff]
        %v1020 = vld [vmem:[%s876 + $0x69] sm:$0xff]
        %v1021 = vld [vmem:[%s876 + $0x79] sm:$0xff]
        %v1022 = vld [vmem:[%s876 + $0x81] sm:$0xff]
        %v1023 = vld [vmem:[%s876 + $0x91] sm:$0xff]
        %v1024 = vld [vmem:[%s876 + $0x99] sm:$0xff]
        %v1025 = vld [vmem:[%s876 + $0xa9] sm:$0xff]
        %v1026 = vld [vmem:[%s876 + $0xb1] sm:$0xff]
        %v1027 = vld [vmem:[%s876 + $0xc1] sm:$0xff]
        %v1028 = vld [vmem:[%s876 + $0xc9] sm:$0xff]
        %v1029 = vld [vmem:[%s876 + $0xd9] sm:$0xff]
        %v1030 = vld [vmem:[%s876 + $0xe1] sm:$0xff]
        %v1031 = vld [vmem:[%s876 + $0xf1] sm:$0xff]
        %v1032 = vld [vmem:[%s876 + $0xf9] sm:$0xff]
        %v1033 = vld [vmem:[%s876 + $0x109] sm:$0xff]
        %v1034 = vld [vmem:[%s876 + $0x111] sm:$0xff]
        %v1035 = vld [vmem:[%s876 + $0x121] sm:$0xff]
        %v1036 = vld [vmem:[%s876 + $0x129] sm:$0xff]
        %v1037 = vld [vmem:[%s876 + $0x139] sm:$0xff]
        %v1038 = vld [vmem:[%s876 + $0x141] sm:$0xff]
        %v1039 = vld [vmem:[%s876 + $0x151] sm:$0xff]
        %v1040 = vld [vmem:[%s876 + $0x159] sm:$0xff]
        %v1041 = vld [vmem:[%s876 + $0x169] sm:$0xff]
        %v1042 = vld [vmem:[%s876 + $0x171] sm:$0xff]
        %v1043 = vmax.f32 %v1011, 0.0
        %v1044 = vmax.f32 %v1012, 0.0
        %v1045 = vmax.f32 %v1013, 0.0
        %v1046 = vmax.f32 %v1014, 0.0
        %v1047 = vmax.f32 %v1015, 0.0
        %v1048 = vmax.f32 %v1016, 0.0
        %v1049 = vmax.f32 %v1017, 0.0
        %v1050 = vmax.f32 %v1018, 0.0
        %v1051 = vmax.f32 %v1019, 0.0
        %v1052 = vmax.f32 %v1020, 0.0
        %v1053 = vmax.f32 %v1021, 0.0
        %v1054 = vmax.f32 %v1022, 0.0
        %v1055 = vmax.f32 %v1023, 0.0
        %v1056 = vmax.f32 %v1024, 0.0
        %v1057 = vmax.f32 %v1025, 0.0
        %v1058 = vmax.f32 %v1026, 0.0
        %v1059 = vmax.f32 %v1027, 0.0
        %v1060 = vmax.f32 %v1028, 0.0
        %v1061 = vmax.f32 %v1029, 0.0
        %v1062 = vmax.f32 %v1030, 0.0
        %v1063 = vmax.f32 %v1031, 0.0
        %v1064 = vmax.f32 %v1032, 0.0
        %v1065 = vmax.f32 %v1033, 0.0
        %v1066 = vmax.f32 %v1034, 0.0
        %v1067 = vmax.f32 %v1035, 0.0
        %v1068 = vmax.f32 %v1036, 0.0
        %v1069 = vmax.f32 %v1037, 0.0
        %v1070 = vmax.f32 %v1038, 0.0
        %v1071 = vmax.f32 %v1039, 0.0
        %v1072 = vmax.f32 %v1040, 0.0
        %v1073 = vmax.f32 %v1041, 0.0
        %v1074 = vmax.f32 %v1042, 0.0
        %v1075 = vld [vmem:[%s941 + $0x1] sm:$0x1]
        %v1076 = vlaneseq
        %v1077 = vshrl.u32 %v1076, 7
        %v1078 = vsub.s32 0, %v1077
        %v1079 = vrot.slane %v1075, %v1078
        %v1080 = vmul.f32 %v1043, %v1079
        %v1081 = vmul.f32 %v1044, %v1079
        %v1082 = vmul.f32 %v1045, %v1079
        %v1083 = vmul.f32 %v1046, %v1079
        %v1084 = vmul.f32 %v1047, %v1079
        %v1085 = vmul.f32 %v1048, %v1079
        %v1086 = vmul.f32 %v1049, %v1079
        %v1087 = vmul.f32 %v1050, %v1079
        %v1088 = vmul.f32 %v1051, %v1079
        %v1089 = vmul.f32 %v1052, %v1079
        %v1090 = vmul.f32 %v1053, %v1079
        %v1091 = vmul.f32 %v1054, %v1079
        %v1092 = vmul.f32 %v1055, %v1079
        %v1093 = vmul.f32 %v1056, %v1079
        %v1094 = vmul.f32 %v1057, %v1079
        %v1095 = vmul.f32 %v1058, %v1079
        %v1096 = vmul.f32 %v1059, %v1079
        %v1097 = vmul.f32 %v1060, %v1079
        %v1098 = vmul.f32 %v1061, %v1079
        %v1099 = vmul.f32 %v1062, %v1079
        %v1100 = vmul.f32 %v1063, %v1079
        %v1101 = vmul.f32 %v1064, %v1079
        %v1102 = vmul.f32 %v1065, %v1079
        %v1103 = vmul.f32 %v1066, %v1079
        %v1104 = vmul.f32 %v1067, %v1079
        %v1105 = vmul.f32 %v1068, %v1079
        %v1106 = vmul.f32 %v1069, %v1079
        %v1107 = vmul.f32 %v1070, %v1079
        %v1108 = vmul.f32 %v1071, %v1079
        %v1109 = vmul.f32 %v1072, %v1079
        %v1110 = vmul.f32 %v1073, %v1079
        %v1111 = vmul.f32 %v1074, %v1079
        %v1112 = vadd.f32 %v979, %v1080
        %v1113 = vadd.f32 %v980, %v1081
        %v1114 = vadd.f32 %v981, %v1082
        %v1115 = vadd.f32 %v982, %v1083
        %v1116 = vadd.f32 %v983, %v1084
        %v1117 = vadd.f32 %v984, %v1085
        %v1118 = vadd.f32 %v985, %v1086
        %v1119 = vadd.f32 %v986, %v1087
        %v1120 = vadd.f32 %v987, %v1088
        %v1121 = vadd.f32 %v988, %v1089
        %v1122 = vadd.f32 %v989, %v1090
        %v1123 = vadd.f32 %v990, %v1091
        %v1124 = vadd.f32 %v991, %v1092
        %v1125 = vadd.f32 %v992, %v1093
        %v1126 = vadd.f32 %v993, %v1094
        %v1127 = vadd.f32 %v994, %v1095
        %v1128 = vadd.f32 %v995, %v1096
        %v1129 = vadd.f32 %v996, %v1097
        %v1130 = vadd.f32 %v997, %v1098
        %v1131 = vadd.f32 %v998, %v1099
        %v1132 = vadd.f32 %v999, %v1100
        %v1133 = vadd.f32 %v1000, %v1101
        %v1134 = vadd.f32 %v1001, %v1102
        %v1135 = vadd.f32 %v1002, %v1103
        %v1136 = vadd.f32 %v1003, %v1104
        %v1137 = vadd.f32 %v1004, %v1105
        %v1138 = vadd.f32 %v1005, %v1106
        %v1139 = vadd.f32 %v1006, %v1107
        %v1140 = vadd.f32 %v1007, %v1108
        %v1141 = vadd.f32 %v1008, %v1109
        %v1142 = vadd.f32 %v1009, %v1110
        %v1143 = vadd.f32 %v1010, %v1111
        %v1144 = vld [vmem:[%s876 + $0x2] sm:$0xff]
        %v1145 = vld [vmem:[%s876 + $0xa] sm:$0xff]
        %v1146 = vld [vmem:[%s876 + $0x1a] sm:$0xff]
        %v1147 = vld [vmem:[%s876 + $0x22] sm:$0xff]
        %v1148 = vld [vmem:[%s876 + $0x32] sm:$0xff]
        %v1149 = vld [vmem:[%s876 + $0x3a] sm:$0xff]
        %v1150 = vld [vmem:[%s876 + $0x4a] sm:$0xff]
        %v1151 = vld [vmem:[%s876 + $0x52] sm:$0xff]
        %v1152 = vld [vmem:[%s876 + $0x62] sm:$0xff]
        %v1153 = vld [vmem:[%s876 + $0x6a] sm:$0xff]
        %v1154 = vld [vmem:[%s876 + $0x7a] sm:$0xff]
        %v1155 = vld [vmem:[%s876 + $0x82] sm:$0xff]
        %v1156 = vld [vmem:[%s876 + $0x92] sm:$0xff]
        %v1157 = vld [vmem:[%s876 + $0x9a] sm:$0xff]
        %v1158 = vld [vmem:[%s876 + $0xaa] sm:$0xff]
        %v1159 = vld [vmem:[%s876 + $0xb2] sm:$0xff]
        %v1160 = vld [vmem:[%s876 + $0xc2] sm:$0xff]
        %v1161 = vld [vmem:[%s876 + $0xca] sm:$0xff]
        %v1162 = vld [vmem:[%s876 + $0xda] sm:$0xff]
        %v1163 = vld [vmem:[%s876 + $0xe2] sm:$0xff]
        %v1164 = vld [vmem:[%s876 + $0xf2] sm:$0xff]
        %v1165 = vld [vmem:[%s876 + $0xfa] sm:$0xff]
        %v1166 = vld [vmem:[%s876 + $0x10a] sm:$0xff]
        %v1167 = vld [vmem:[%s876 + $0x112] sm:$0xff]
        %v1168 = vld [vmem:[%s876 + $0x122] sm:$0xff]
        %v1169 = vld [vmem:[%s876 + $0x12a] sm:$0xff]
        %v1170 = vld [vmem:[%s876 + $0x13a] sm:$0xff]
        %v1171 = vld [vmem:[%s876 + $0x142] sm:$0xff]
        %v1172 = vld [vmem:[%s876 + $0x152] sm:$0xff]
        %v1173 = vld [vmem:[%s876 + $0x15a] sm:$0xff]
        %v1174 = vld [vmem:[%s876 + $0x16a] sm:$0xff]
        %v1175 = vld [vmem:[%s876 + $0x172] sm:$0xff]
        %v1176 = vmax.f32 %v1144, 0.0
        %v1177 = vmax.f32 %v1145, 0.0
        %v1178 = vmax.f32 %v1146, 0.0
        %v1179 = vmax.f32 %v1147, 0.0
        %v1180 = vmax.f32 %v1148, 0.0
        %v1181 = vmax.f32 %v1149, 0.0
        %v1182 = vmax.f32 %v1150, 0.0
        %v1183 = vmax.f32 %v1151, 0.0
        %v1184 = vmax.f32 %v1152, 0.0
        %v1185 = vmax.f32 %v1153, 0.0
        %v1186 = vmax.f32 %v1154, 0.0
        %v1187 = vmax.f32 %v1155, 0.0
        %v1188 = vmax.f32 %v1156, 0.0
        %v1189 = vmax.f32 %v1157, 0.0
        %v1190 = vmax.f32 %v1158, 0.0
        %v1191 = vmax.f32 %v1159, 0.0
        %v1192 = vmax.f32 %v1160, 0.0
        %v1193 = vmax.f32 %v1161, 0.0
        %v1194 = vmax.f32 %v1162, 0.0
        %v1195 = vmax.f32 %v1163, 0.0
        %v1196 = vmax.f32 %v1164, 0.0
        %v1197 = vmax.f32 %v1165, 0.0
        %v1198 = vmax.f32 %v1166, 0.0
        %v1199 = vmax.f32 %v1167, 0.0
        %v1200 = vmax.f32 %v1168, 0.0
        %v1201 = vmax.f32 %v1169, 0.0
        %v1202 = vmax.f32 %v1170, 0.0
        %v1203 = vmax.f32 %v1171, 0.0
        %v1204 = vmax.f32 %v1172, 0.0
        %v1205 = vmax.f32 %v1173, 0.0
        %v1206 = vmax.f32 %v1174, 0.0
        %v1207 = vmax.f32 %v1175, 0.0
        %v1208 = vld [vmem:[%s941 + $0x2] sm:$0x1]
        %v1209 = vlaneseq
        %v1210 = vshrl.u32 %v1209, 7
        %v1211 = vsub.s32 0, %v1210
        %v1212 = vrot.slane %v1208, %v1211
        %v1213 = vmul.f32 %v1176, %v1212
        %v1214 = vmul.f32 %v1177, %v1212
        %v1215 = vmul.f32 %v1178, %v1212
        %v1216 = vmul.f32 %v1179, %v1212
        %v1217 = vmul.f32 %v1180, %v1212
        %v1218 = vmul.f32 %v1181, %v1212
        %v1219 = vmul.f32 %v1182, %v1212
        %v1220 = vmul.f32 %v1183, %v1212
        %v1221 = vmul.f32 %v1184, %v1212
        %v1222 = vmul.f32 %v1185, %v1212
        %v1223 = vmul.f32 %v1186, %v1212
        %v1224 = vmul.f32 %v1187, %v1212
        %v1225 = vmul.f32 %v1188, %v1212
        %v1226 = vmul.f32 %v1189, %v1212
        %v1227 = vmul.f32 %v1190, %v1212
        %v1228 = vmul.f32 %v1191, %v1212
        %v1229 = vmul.f32 %v1192, %v1212
        %v1230 = vmul.f32 %v1193, %v1212
        %v1231 = vmul.f32 %v1194, %v1212
        %v1232 = vmul.f32 %v1195, %v1212
        %v1233 = vmul.f32 %v1196, %v1212
        %v1234 = vmul.f32 %v1197, %v1212
        %v1235 = vmul.f32 %v1198, %v1212
        %v1236 = vmul.f32 %v1199, %v1212
        %v1237 = vmul.f32 %v1200, %v1212
        %v1238 = vmul.f32 %v1201, %v1212
        %v1239 = vmul.f32 %v1202, %v1212
        %v1240 = vmul.f32 %v1203, %v1212
        %v1241 = vmul.f32 %v1204, %v1212
        %v1242 = vmul.f32 %v1205, %v1212
        %v1243 = vmul.f32 %v1206, %v1212
        %v1244 = vmul.f32 %v1207, %v1212
        %v1245 = vadd.f32 %v1112, %v1213
        %v1246 = vadd.f32 %v1113, %v1214
        %v1247 = vadd.f32 %v1114, %v1215
        %v1248 = vadd.f32 %v1115, %v1216
        %v1249 = vadd.f32 %v1116, %v1217
        %v1250 = vadd.f32 %v1117, %v1218
        %v1251 = vadd.f32 %v1118, %v1219
        %v1252 = vadd.f32 %v1119, %v1220
        %v1253 = vadd.f32 %v1120, %v1221
        %v1254 = vadd.f32 %v1121, %v1222
        %v1255 = vadd.f32 %v1122, %v1223
        %v1256 = vadd.f32 %v1123, %v1224
        %v1257 = vadd.f32 %v1124, %v1225
        %v1258 = vadd.f32 %v1125, %v1226
        %v1259 = vadd.f32 %v1126, %v1227
        %v1260 = vadd.f32 %v1127, %v1228
        %v1261 = vadd.f32 %v1128, %v1229
        %v1262 = vadd.f32 %v1129, %v1230
        %v1263 = vadd.f32 %v1130, %v1231
        %v1264 = vadd.f32 %v1131, %v1232
        %v1265 = vadd.f32 %v1132, %v1233
        %v1266 = vadd.f32 %v1133, %v1234
        %v1267 = vadd.f32 %v1134, %v1235
        %v1268 = vadd.f32 %v1135, %v1236
        %v1269 = vadd.f32 %v1136, %v1237
        %v1270 = vadd.f32 %v1137, %v1238
        %v1271 = vadd.f32 %v1138, %v1239
        %v1272 = vadd.f32 %v1139, %v1240
        %v1273 = vadd.f32 %v1140, %v1241
        %v1274 = vadd.f32 %v1141, %v1242
        %v1275 = vadd.f32 %v1142, %v1243
        %v1276 = vadd.f32 %v1143, %v1244
        %s1277 = scalar_lea.vmem %s411, 48 [#allocation4]
        %v1278 = vld [vmem:[%s1277] sm:$0xff]
        %v1279 = vld [vmem:[%s1277 + $0x8] sm:$0xff]
        %v1280 = vld [vmem:[%s1277 + $0x18] sm:$0xff]
        %v1281 = vld [vmem:[%s1277 + $0x20] sm:$0xff]
        %v1282 = vld [vmem:[%s1277 + $0x30] sm:$0xff]
        %v1283 = vld [vmem:[%s1277 + $0x38] sm:$0xff]
        %v1284 = vld [vmem:[%s1277 + $0x48] sm:$0xff]
        %v1285 = vld [vmem:[%s1277 + $0x50] sm:$0xff]
        %v1286 = vld [vmem:[%s1277 + $0x60] sm:$0xff]
        %v1287 = vld [vmem:[%s1277 + $0x68] sm:$0xff]
        %v1288 = vld [vmem:[%s1277 + $0x78] sm:$0xff]
        %v1289 = vld [vmem:[%s1277 + $0x80] sm:$0xff]
        %v1290 = vld [vmem:[%s1277 + $0x90] sm:$0xff]
        %v1291 = vld [vmem:[%s1277 + $0x98] sm:$0xff]
        %v1292 = vld [vmem:[%s1277 + $0xa8] sm:$0xff]
        %v1293 = vld [vmem:[%s1277 + $0xb0] sm:$0xff]
        %v1294 = vld [vmem:[%s1277 + $0xc0] sm:$0xff]
        %v1295 = vld [vmem:[%s1277 + $0xc8] sm:$0xff]
        %v1296 = vld [vmem:[%s1277 + $0xd8] sm:$0xff]
        %v1297 = vld [vmem:[%s1277 + $0xe0] sm:$0xff]
        %v1298 = vld [vmem:[%s1277 + $0xf0] sm:$0xff]
        %v1299 = vld [vmem:[%s1277 + $0xf8] sm:$0xff]
        %v1300 = vld [vmem:[%s1277 + $0x108] sm:$0xff]
        %v1301 = vld [vmem:[%s1277 + $0x110] sm:$0xff]
        %v1302 = vld [vmem:[%s1277 + $0x120] sm:$0xff]
        %v1303 = vld [vmem:[%s1277 + $0x128] sm:$0xff]
        %v1304 = vld [vmem:[%s1277 + $0x138] sm:$0xff]
        %v1305 = vld [vmem:[%s1277 + $0x140] sm:$0xff]
        %v1306 = vld [vmem:[%s1277 + $0x150] sm:$0xff]
        %v1307 = vld [vmem:[%s1277 + $0x158] sm:$0xff]
        %v1308 = vld [vmem:[%s1277 + $0x168] sm:$0xff]
        %v1309 = vld [vmem:[%s1277 + $0x170] sm:$0xff]
        %v1310 = vmax.f32 %v1278, 0.0
        %v1311 = vmax.f32 %v1279, 0.0
        %v1312 = vmax.f32 %v1280, 0.0
        %v1313 = vmax.f32 %v1281, 0.0
        %v1314 = vmax.f32 %v1282, 0.0
        %v1315 = vmax.f32 %v1283, 0.0
        %v1316 = vmax.f32 %v1284, 0.0
        %v1317 = vmax.f32 %v1285, 0.0
        %v1318 = vmax.f32 %v1286, 0.0
        %v1319 = vmax.f32 %v1287, 0.0
        %v1320 = vmax.f32 %v1288, 0.0
        %v1321 = vmax.f32 %v1289, 0.0
        %v1322 = vmax.f32 %v1290, 0.0
        %v1323 = vmax.f32 %v1291, 0.0
        %v1324 = vmax.f32 %v1292, 0.0
        %v1325 = vmax.f32 %v1293, 0.0
        %v1326 = vmax.f32 %v1294, 0.0
        %v1327 = vmax.f32 %v1295, 0.0
        %v1328 = vmax.f32 %v1296, 0.0
        %v1329 = vmax.f32 %v1297, 0.0
        %v1330 = vmax.f32 %v1298, 0.0
        %v1331 = vmax.f32 %v1299, 0.0
        %v1332 = vmax.f32 %v1300, 0.0
        %v1333 = vmax.f32 %v1301, 0.0
        %v1334 = vmax.f32 %v1302, 0.0
        %v1335 = vmax.f32 %v1303, 0.0
        %v1336 = vmax.f32 %v1304, 0.0
        %v1337 = vmax.f32 %v1305, 0.0
        %v1338 = vmax.f32 %v1306, 0.0
        %v1339 = vmax.f32 %v1307, 0.0
        %v1340 = vmax.f32 %v1308, 0.0
        %v1341 = vmax.f32 %v1309, 0.0
        %s1342 = scalar_lea.vmem [#allocation7], 8
        %v1343 = vld [vmem:[%s1342] sm:$0x1]
        %v1344 = vlaneseq
        %v1345 = vshrl.u32 %v1344, 7
        %v1346 = vsub.s32 0, %v1345
        %v1347 = vrot.slane %v1343, %v1346
        %v1348 = vmul.f32 %v1310, %v1347
        %v1349 = vmul.f32 %v1311, %v1347
        %v1350 = vmul.f32 %v1312, %v1347
        %v1351 = vmul.f32 %v1313, %v1347
        %v1352 = vmul.f32 %v1314, %v1347
        %v1353 = vmul.f32 %v1315, %v1347
        %v1354 = vmul.f32 %v1316, %v1347
        %v1355 = vmul.f32 %v1317, %v1347
        %v1356 = vmul.f32 %v1318, %v1347
        %v1357 = vmul.f32 %v1319, %v1347
        %v1358 = vmul.f32 %v1320, %v1347
        %v1359 = vmul.f32 %v1321, %v1347
        %v1360 = vmul.f32 %v1322, %v1347
        %v1361 = vmul.f32 %v1323, %v1347
        %v1362 = vmul.f32 %v1324, %v1347
        %v1363 = vmul.f32 %v1325, %v1347
        %v1364 = vmul.f32 %v1326, %v1347
        %v1365 = vmul.f32 %v1327, %v1347
        %v1366 = vmul.f32 %v1328, %v1347
        %v1367 = vmul.f32 %v1329, %v1347
        %v1368 = vmul.f32 %v1330, %v1347
        %v1369 = vmul.f32 %v1331, %v1347
        %v1370 = vmul.f32 %v1332, %v1347
        %v1371 = vmul.f32 %v1333, %v1347
        %v1372 = vmul.f32 %v1334, %v1347
        %v1373 = vmul.f32 %v1335, %v1347
        %v1374 = vmul.f32 %v1336, %v1347
        %v1375 = vmul.f32 %v1337, %v1347
        %v1376 = vmul.f32 %v1338, %v1347
        %v1377 = vmul.f32 %v1339, %v1347
        %v1378 = vmul.f32 %v1340, %v1347
        %v1379 = vmul.f32 %v1341, %v1347
        %v1380 = vadd.f32 %v1245, %v1348
        %v1381 = vadd.f32 %v1246, %v1349
        %v1382 = vadd.f32 %v1247, %v1350
        %v1383 = vadd.f32 %v1248, %v1351
        %v1384 = vadd.f32 %v1249, %v1352
        %v1385 = vadd.f32 %v1250, %v1353
        %v1386 = vadd.f32 %v1251, %v1354
        %v1387 = vadd.f32 %v1252, %v1355
        %v1388 = vadd.f32 %v1253, %v1356
        %v1389 = vadd.f32 %v1254, %v1357
        %v1390 = vadd.f32 %v1255, %v1358
        %v1391 = vadd.f32 %v1256, %v1359
        %v1392 = vadd.f32 %v1257, %v1360
        %v1393 = vadd.f32 %v1258, %v1361
        %v1394 = vadd.f32 %v1259, %v1362
        %v1395 = vadd.f32 %v1260, %v1363
        %v1396 = vadd.f32 %v1261, %v1364
        %v1397 = vadd.f32 %v1262, %v1365
        %v1398 = vadd.f32 %v1263, %v1366
        %v1399 = vadd.f32 %v1264, %v1367
        %v1400 = vadd.f32 %v1265, %v1368
        %v1401 = vadd.f32 %v1266, %v1369
        %v1402 = vadd.f32 %v1267, %v1370
        %v1403 = vadd.f32 %v1268, %v1371
        %v1404 = vadd.f32 %v1269, %v1372
        %v1405 = vadd.f32 %v1270, %v1373
        %v1406 = vadd.f32 %v1271, %v1374
        %v1407 = vadd.f32 %v1272, %v1375
        %v1408 = vadd.f32 %v1273, %v1376
        %v1409 = vadd.f32 %v1274, %v1377
        %v1410 = vadd.f32 %v1275, %v1378
        %v1411 = vadd.f32 %v1276, %v1379
        %v1412 = vld [vmem:[%s1277 + $0x1] sm:$0xff]
        %v1413 = vld [vmem:[%s1277 + $0x9] sm:$0xff]
        %v1414 = vld [vmem:[%s1277 + $0x19] sm:$0xff]
        %v1415 = vld [vmem:[%s1277 + $0x21] sm:$0xff]
        %v1416 = vld [vmem:[%s1277 + $0x31] sm:$0xff]
        %v1417 = vld [vmem:[%s1277 + $0x39] sm:$0xff]
        %v1418 = vld [vmem:[%s1277 + $0x49] sm:$0xff]
        %v1419 = vld [vmem:[%s1277 + $0x51] sm:$0xff]
        %v1420 = vld [vmem:[%s1277 + $0x61] sm:$0xff]
        %v1421 = vld [vmem:[%s1277 + $0x69] sm:$0xff]
        %v1422 = vld [vmem:[%s1277 + $0x79] sm:$0xff]
        %v1423 = vld [vmem:[%s1277 + $0x81] sm:$0xff]
        %v1424 = vld [vmem:[%s1277 + $0x91] sm:$0xff]
        %v1425 = vld [vmem:[%s1277 + $0x99] sm:$0xff]
        %v1426 = vld [vmem:[%s1277 + $0xa9] sm:$0xff]
        %v1427 = vld [vmem:[%s1277 + $0xb1] sm:$0xff]
        %v1428 = vld [vmem:[%s1277 + $0xc1] sm:$0xff]
        %v1429 = vld [vmem:[%s1277 + $0xc9] sm:$0xff]
        %v1430 = vld [vmem:[%s1277 + $0xd9] sm:$0xff]
        %v1431 = vld [vmem:[%s1277 + $0xe1] sm:$0xff]
        %v1432 = vld [vmem:[%s1277 + $0xf1] sm:$0xff]
        %v1433 = vld [vmem:[%s1277 + $0xf9] sm:$0xff]
        %v1434 = vld [vmem:[%s1277 + $0x109] sm:$0xff]
        %v1435 = vld [vmem:[%s1277 + $0x111] sm:$0xff]
        %v1436 = vld [vmem:[%s1277 + $0x121] sm:$0xff]
        %v1437 = vld [vmem:[%s1277 + $0x129] sm:$0xff]
        %v1438 = vld [vmem:[%s1277 + $0x139] sm:$0xff]
        %v1439 = vld [vmem:[%s1277 + $0x141] sm:$0xff]
        %v1440 = vld [vmem:[%s1277 + $0x151] sm:$0xff]
        %v1441 = vld [vmem:[%s1277 + $0x159] sm:$0xff]
        %v1442 = vld [vmem:[%s1277 + $0x169] sm:$0xff]
        %v1443 = vld [vmem:[%s1277 + $0x171] sm:$0xff]
        %v1444 = vmax.f32 %v1412, 0.0
        %v1445 = vmax.f32 %v1413, 0.0
        %v1446 = vmax.f32 %v1414, 0.0
        %v1447 = vmax.f32 %v1415, 0.0
        %v1448 = vmax.f32 %v1416, 0.0
        %v1449 = vmax.f32 %v1417, 0.0
        %v1450 = vmax.f32 %v1418, 0.0
        %v1451 = vmax.f32 %v1419, 0.0
        %v1452 = vmax.f32 %v1420, 0.0
        %v1453 = vmax.f32 %v1421, 0.0
        %v1454 = vmax.f32 %v1422, 0.0
        %v1455 = vmax.f32 %v1423, 0.0
        %v1456 = vmax.f32 %v1424, 0.0
        %v1457 = vmax.f32 %v1425, 0.0
        %v1458 = vmax.f32 %v1426, 0.0
        %v1459 = vmax.f32 %v1427, 0.0
        %v1460 = vmax.f32 %v1428, 0.0
        %v1461 = vmax.f32 %v1429, 0.0
        %v1462 = vmax.f32 %v1430, 0.0
        %v1463 = vmax.f32 %v1431, 0.0
        %v1464 = vmax.f32 %v1432, 0.0
        %v1465 = vmax.f32 %v1433, 0.0
        %v1466 = vmax.f32 %v1434, 0.0
        %v1467 = vmax.f32 %v1435, 0.0
        %v1468 = vmax.f32 %v1436, 0.0
        %v1469 = vmax.f32 %v1437, 0.0
        %v1470 = vmax.f32 %v1438, 0.0
        %v1471 = vmax.f32 %v1439, 0.0
        %v1472 = vmax.f32 %v1440, 0.0
        %v1473 = vmax.f32 %v1441, 0.0
        %v1474 = vmax.f32 %v1442, 0.0
        %v1475 = vmax.f32 %v1443, 0.0
        %v1476 = vld [vmem:[%s1342 + $0x1] sm:$0x1]
        %v1477 = vlaneseq
        %v1478 = vshrl.u32 %v1477, 7
        %v1479 = vsub.s32 0, %v1478
        %v1480 = vrot.slane %v1476, %v1479
        %v1481 = vmul.f32 %v1444, %v1480
        %v1482 = vmul.f32 %v1445, %v1480
        %v1483 = vmul.f32 %v1446, %v1480
        %v1484 = vmul.f32 %v1447, %v1480
        %v1485 = vmul.f32 %v1448, %v1480
        %v1486 = vmul.f32 %v1449, %v1480
        %v1487 = vmul.f32 %v1450, %v1480
        %v1488 = vmul.f32 %v1451, %v1480
        %v1489 = vmul.f32 %v1452, %v1480
        %v1490 = vmul.f32 %v1453, %v1480
        %v1491 = vmul.f32 %v1454, %v1480
        %v1492 = vmul.f32 %v1455, %v1480
        %v1493 = vmul.f32 %v1456, %v1480
        %v1494 = vmul.f32 %v1457, %v1480
        %v1495 = vmul.f32 %v1458, %v1480
        %v1496 = vmul.f32 %v1459, %v1480
        %v1497 = vmul.f32 %v1460, %v1480
        %v1498 = vmul.f32 %v1461, %v1480
        %v1499 = vmul.f32 %v1462, %v1480
        %v1500 = vmul.f32 %v1463, %v1480
        %v1501 = vmul.f32 %v1464, %v1480
        %v1502 = vmul.f32 %v1465, %v1480
        %v1503 = vmul.f32 %v1466, %v1480
        %v1504 = vmul.f32 %v1467, %v1480
        %v1505 = vmul.f32 %v1468, %v1480
        %v1506 = vmul.f32 %v1469, %v1480
        %v1507 = vmul.f32 %v1470, %v1480
        %v1508 = vmul.f32 %v1471, %v1480
        %v1509 = vmul.f32 %v1472, %v1480
        %v1510 = vmul.f32 %v1473, %v1480
        %v1511 = vmul.f32 %v1474, %v1480
        %v1512 = vmul.f32 %v1475, %v1480
        %v1513 = vadd.f32 %v1380, %v1481
        %v1514 = vadd.f32 %v1381, %v1482
        %v1515 = vadd.f32 %v1382, %v1483
        %v1516 = vadd.f32 %v1383, %v1484
        %v1517 = vadd.f32 %v1384, %v1485
        %v1518 = vadd.f32 %v1385, %v1486
        %v1519 = vadd.f32 %v1386, %v1487
        %v1520 = vadd.f32 %v1387, %v1488
        %v1521 = vadd.f32 %v1388, %v1489
        %v1522 = vadd.f32 %v1389, %v1490
        %v1523 = vadd.f32 %v1390, %v1491
        %v1524 = vadd.f32 %v1391, %v1492
        %v1525 = vadd.f32 %v1392, %v1493
        %v1526 = vadd.f32 %v1393, %v1494
        %v1527 = vadd.f32 %v1394, %v1495
        %v1528 = vadd.f32 %v1395, %v1496
        %v1529 = vadd.f32 %v1396, %v1497
        %v1530 = vadd.f32 %v1397, %v1498
        %v1531 = vadd.f32 %v1398, %v1499
        %v1532 = vadd.f32 %v1399, %v1500
        %v1533 = vadd.f32 %v1400, %v1501
        %v1534 = vadd.f32 %v1401, %v1502
        %v1535 = vadd.f32 %v1402, %v1503
        %v1536 = vadd.f32 %v1403, %v1504
        %v1537 = vadd.f32 %v1404, %v1505
        %v1538 = vadd.f32 %v1405, %v1506
        %v1539 = vadd.f32 %v1406, %v1507
        %v1540 = vadd.f32 %v1407, %v1508
        %v1541 = vadd.f32 %v1408, %v1509
        %v1542 = vadd.f32 %v1409, %v1510
        %v1543 = vadd.f32 %v1410, %v1511
        %v1544 = vadd.f32 %v1411, %v1512
        %v1545 = vld [vmem:[%s1277 + $0x2] sm:$0xff]
        %v1546 = vld [vmem:[%s1277 + $0xa] sm:$0xff]
        %v1547 = vld [vmem:[%s1277 + $0x1a] sm:$0xff]
        %v1548 = vld [vmem:[%s1277 + $0x22] sm:$0xff]
        %v1549 = vld [vmem:[%s1277 + $0x32] sm:$0xff]
        %v1550 = vld [vmem:[%s1277 + $0x3a] sm:$0xff]
        %v1551 = vld [vmem:[%s1277 + $0x4a] sm:$0xff]
        %v1552 = vld [vmem:[%s1277 + $0x52] sm:$0xff]
        %v1553 = vld [vmem:[%s1277 + $0x62] sm:$0xff]
        %v1554 = vld [vmem:[%s1277 + $0x6a] sm:$0xff]
        %v1555 = vld [vmem:[%s1277 + $0x7a] sm:$0xff]
        %v1556 = vld [vmem:[%s1277 + $0x82] sm:$0xff]
        %v1557 = vld [vmem:[%s1277 + $0x92] sm:$0xff]
        %v1558 = vld [vmem:[%s1277 + $0x9a] sm:$0xff]
        %v1559 = vld [vmem:[%s1277 + $0xaa] sm:$0xff]
        %v1560 = vld [vmem:[%s1277 + $0xb2] sm:$0xff]
        %v1561 = vld [vmem:[%s1277 + $0xc2] sm:$0xff]
        %v1562 = vld [vmem:[%s1277 + $0xca] sm:$0xff]
        %v1563 = vld [vmem:[%s1277 + $0xda] sm:$0xff]
        %v1564 = vld [vmem:[%s1277 + $0xe2] sm:$0xff]
        %v1565 = vld [vmem:[%s1277 + $0xf2] sm:$0xff]
        %v1566 = vld [vmem:[%s1277 + $0xfa] sm:$0xff]
        %v1567 = vld [vmem:[%s1277 + $0x10a] sm:$0xff]
        %v1568 = vld [vmem:[%s1277 + $0x112] sm:$0xff]
        %v1569 = vld [vmem:[%s1277 + $0x122] sm:$0xff]
        %v1570 = vld [vmem:[%s1277 + $0x12a] sm:$0xff]
        %v1571 = vld [vmem:[%s1277 + $0x13a] sm:$0xff]
        %v1572 = vld [vmem:[%s1277 + $0x142] sm:$0xff]
        %v1573 = vld [vmem:[%s1277 + $0x152] sm:$0xff]
        %v1574 = vld [vmem:[%s1277 + $0x15a] sm:$0xff]
        %v1575 = vld [vmem:[%s1277 + $0x16a] sm:$0xff]
        %v1576 = vld [vmem:[%s1277 + $0x172] sm:$0xff]
        %v1577 = vmax.f32 %v1545, 0.0
        %v1578 = vmax.f32 %v1546, 0.0
        %v1579 = vmax.f32 %v1547, 0.0
        %v1580 = vmax.f32 %v1548, 0.0
        %v1581 = vmax.f32 %v1549, 0.0
        %v1582 = vmax.f32 %v1550, 0.0
        %v1583 = vmax.f32 %v1551, 0.0
        %v1584 = vmax.f32 %v1552, 0.0
        %v1585 = vmax.f32 %v1553, 0.0
        %v1586 = vmax.f32 %v1554, 0.0
        %v1587 = vmax.f32 %v1555, 0.0
        %v1588 = vmax.f32 %v1556, 0.0
        %v1589 = vmax.f32 %v1557, 0.0
        %v1590 = vmax.f32 %v1558, 0.0
        %v1591 = vmax.f32 %v1559, 0.0
        %v1592 = vmax.f32 %v1560, 0.0
        %v1593 = vmax.f32 %v1561, 0.0
        %v1594 = vmax.f32 %v1562, 0.0
        %v1595 = vmax.f32 %v1563, 0.0
        %v1596 = vmax.f32 %v1564, 0.0
        %v1597 = vmax.f32 %v1565, 0.0
        %v1598 = vmax.f32 %v1566, 0.0
        %v1599 = vmax.f32 %v1567, 0.0
        %v1600 = vmax.f32 %v1568, 0.0
        %v1601 = vmax.f32 %v1569, 0.0
        %v1602 = vmax.f32 %v1570, 0.0
        %v1603 = vmax.f32 %v1571, 0.0
        %v1604 = vmax.f32 %v1572, 0.0
        %v1605 = vmax.f32 %v1573, 0.0
        %v1606 = vmax.f32 %v1574, 0.0
        %v1607 = vmax.f32 %v1575, 0.0
        %v1608 = vmax.f32 %v1576, 0.0
        %v1609 = vld [vmem:[%s1342 + $0x2] sm:$0x1]
        %v1610 = vlaneseq
        %v1611 = vshrl.u32 %v1610, 7
        %v1612 = vsub.s32 0, %v1611
        %v1613 = vrot.slane %v1609, %v1612
        %v1614 = vmul.f32 %v1577, %v1613
        %v1615 = vmul.f32 %v1578, %v1613
        %v1616 = vmul.f32 %v1579, %v1613
        %v1617 = vmul.f32 %v1580, %v1613
        %v1618 = vmul.f32 %v1581, %v1613
        %v1619 = vmul.f32 %v1582, %v1613
        %v1620 = vmul.f32 %v1583, %v1613
        %v1621 = vmul.f32 %v1584, %v1613
        %v1622 = vmul.f32 %v1585, %v1613
        %v1623 = vmul.f32 %v1586, %v1613
        %v1624 = vmul.f32 %v1587, %v1613
        %v1625 = vmul.f32 %v1588, %v1613
        %v1626 = vmul.f32 %v1589, %v1613
        %v1627 = vmul.f32 %v1590, %v1613
        %v1628 = vmul.f32 %v1591, %v1613
        %v1629 = vmul.f32 %v1592, %v1613
        %v1630 = vmul.f32 %v1593, %v1613
        %v1631 = vmul.f32 %v1594, %v1613
        %v1632 = vmul.f32 %v1595, %v1613
        %v1633 = vmul.f32 %v1596, %v1613
        %v1634 = vmul.f32 %v1597, %v1613
        %v1635 = vmul.f32 %v1598, %v1613
        %v1636 = vmul.f32 %v1599, %v1613
        %v1637 = vmul.f32 %v1600, %v1613
        %v1638 = vmul.f32 %v1601, %v1613
        %v1639 = vmul.f32 %v1602, %v1613
        %v1640 = vmul.f32 %v1603, %v1613
        %v1641 = vmul.f32 %v1604, %v1613
        %v1642 = vmul.f32 %v1605, %v1613
        %v1643 = vmul.f32 %v1606, %v1613
        %v1644 = vmul.f32 %v1607, %v1613
        %v1645 = vmul.f32 %v1608, %v1613
        %v1646 = vadd.f32 %v1513, %v1614
        %v1647 = vadd.f32 %v1514, %v1615
        %v1648 = vadd.f32 %v1515, %v1616
        %v1649 = vadd.f32 %v1516, %v1617
        %v1650 = vadd.f32 %v1517, %v1618
        %v1651 = vadd.f32 %v1518, %v1619
        %v1652 = vadd.f32 %v1519, %v1620
        %v1653 = vadd.f32 %v1520, %v1621
        %v1654 = vadd.f32 %v1521, %v1622
        %v1655 = vadd.f32 %v1522, %v1623
        %v1656 = vadd.f32 %v1523, %v1624
        %v1657 = vadd.f32 %v1524, %v1625
        %v1658 = vadd.f32 %v1525, %v1626
        %v1659 = vadd.f32 %v1526, %v1627
        %v1660 = vadd.f32 %v1527, %v1628
        %v1661 = vadd.f32 %v1528, %v1629
        %v1662 = vadd.f32 %v1529, %v1630
        %v1663 = vadd.f32 %v1530, %v1631
        %v1664 = vadd.f32 %v1531, %v1632
        %v1665 = vadd.f32 %v1532, %v1633
        %v1666 = vadd.f32 %v1533, %v1634
        %v1667 = vadd.f32 %v1534, %v1635
        %v1668 = vadd.f32 %v1535, %v1636
        %v1669 = vadd.f32 %v1536, %v1637
        %v1670 = vadd.f32 %v1537, %v1638
        %v1671 = vadd.f32 %v1538, %v1639
        %v1672 = vadd.f32 %v1539, %v1640
        %v1673 = vadd.f32 %v1540, %v1641
        %v1674 = vadd.f32 %v1541, %v1642
        %v1675 = vadd.f32 %v1542, %v1643
        %v1676 = vadd.f32 %v1543, %v1644
        %v1677 = vadd.f32 %v1544, %v1645
        %v1678 = vpack.c.bf16 %v1647, %v1646
        %v1679 = vpack.c.bf16 %v1649, %v1648
        %v1680 = vpack.c.bf16 %v1651, %v1650
        %v1681 = vpack.c.bf16 %v1653, %v1652
        %v1682 = vpack.c.bf16 %v1655, %v1654
        %v1683 = vpack.c.bf16 %v1657, %v1656
        %v1684 = vpack.c.bf16 %v1659, %v1658
        %v1685 = vpack.c.bf16 %v1661, %v1660
        %v1686 = vpack.c.bf16 %v1663, %v1662
        %v1687 = vpack.c.bf16 %v1665, %v1664
        %v1688 = vpack.c.bf16 %v1667, %v1666
        %v1689 = vpack.c.bf16 %v1669, %v1668
        %v1690 = vpack.c.bf16 %v1671, %v1670
        %v1691 = vpack.c.bf16 %v1673, %v1672
        %v1692 = vpack.c.bf16 %v1675, %v1674
        %v1693 = vpack.c.bf16 %v1677, %v1676
        %v1694 = vld [vmem:[#allocation9] sm:$0xf]
        %v1695 = vld [vmem:[#allocation9 + $0x4] sm:$0xf]
        %v1696 = vld [vmem:[#allocation9 + $0x8] sm:$0xf]
        %v1697 = vld [vmem:[#allocation9 + $0xc] sm:$0xf]
        %v1698 = vld [vmem:[#allocation9 + $0x10] sm:$0xf]
        %v1699 = vld [vmem:[#allocation9 + $0x14] sm:$0xf]
        %v1700 = vld [vmem:[#allocation9 + $0x18] sm:$0xf]
        %v1701 = vld [vmem:[#allocation9 + $0x1c] sm:$0xf]
        %v1702 = vld [vmem:[#allocation9 + $0x20] sm:$0xf]
        %v1703 = vld [vmem:[#allocation9 + $0x24] sm:$0xf]
        %v1704 = vld [vmem:[#allocation9 + $0x28] sm:$0xf]
        %v1705 = vld [vmem:[#allocation9 + $0x2c] sm:$0xf]
        %v1706 = vld [vmem:[#allocation9 + $0x30] sm:$0xf]
        %v1707 = vld [vmem:[#allocation9 + $0x34] sm:$0xf]
        %v1708 = vld [vmem:[#allocation9 + $0x38] sm:$0xf]
        %v1709 = vld [vmem:[#allocation9 + $0x3c] sm:$0xf]
        %v1710 = vld [vmem:[#allocation10] sm:$0x1]
        %v1712 = vlaneseq
        %v1713 = vshrl.u32 %v1712, 7
        %v1714 = vsub.s32 0, %v1713
        %v1715 = vrot.slane %v1710, %v1714
        %v1733 = vunpack.c.l.b16 %v1694
        %v1734 = vunpack.c.l.b16 %v1695
        %v1735 = vunpack.c.l.b16 %v1696
        %v1736 = vunpack.c.l.b16 %v1697
        %v1737 = vunpack.c.l.b16 %v1698
        %v1738 = vunpack.c.l.b16 %v1699
        %v1739 = vunpack.c.l.b16 %v1700
        %v1740 = vunpack.c.l.b16 %v1701
        %v1741 = vunpack.c.l.b16 %v1702
        %v1742 = vunpack.c.l.b16 %v1703
        %v1743 = vunpack.c.l.b16 %v1704
        %v1744 = vunpack.c.l.b16 %v1705
        %v1745 = vunpack.c.l.b16 %v1706
        %v1746 = vunpack.c.l.b16 %v1707
        %v1747 = vunpack.c.l.b16 %v1708
        %v1748 = vunpack.c.l.b16 %v1709
        %v1749 = vpack.c.b16 %v1734, %v1733
        %v1750 = vpack.c.b16 %v1736, %v1735
        %v1751 = vpack.c.b16 %v1738, %v1737
        %v1752 = vpack.c.b16 %v1740, %v1739
        %v1753 = vpack.c.b16 %v1742, %v1741
        %v1754 = vpack.c.b16 %v1744, %v1743
        %v1755 = vpack.c.b16 %v1746, %v1745
        %v1756 = vpack.c.b16 %v1748, %v1747
        %1765 = vmatprep.subr.bf16.mxu0 0
        %1766 = vmatpush1.bf16.msra.mxu0 %v1756
        %1767 = vmatprep.subr.bf16.mxu0 0
        %1768 = vmatpush1.bf16.msra.mxu0 %v1755
        %1769 = vmatprep.subr.bf16.mxu0 0
        %1770 = vmatpush1.bf16.msra.mxu0 %v1754
        %1771 = vmatprep.subr.bf16.mxu0 0
        %1772 = vmatpush1.bf16.msra.mxu0 %v1753
        %1773 = vmatprep.subr.bf16.mxu0 0
        %1774 = vmatpush1.bf16.msra.mxu0 %v1752
        %1775 = vmatprep.subr.bf16.mxu0 0
        %1776 = vmatpush1.bf16.msra.mxu0 %v1751
        %1777 = vmatprep.subr.bf16.mxu0 0
        %1778 = vmatpush1.bf16.msra.mxu0 %v1750
        %1779 = vmatprep.subr.bf16.mxu0 0
        %1780 = vmatpush1.bf16.msra.mxu0 %v1749
        %1781 = vmatprep.subr.bf16.mxu0 0
        %1782 = vmatpush2.bf16.msra.mxu0 0
        %1783 = vmatprep.subr.bf16.mxu0 0
        %1784 = vmatpush2.bf16.msra.mxu0 0
        %1785 = vmatprep.subr.bf16.mxu0 0
        %1786 = vmatpush2.bf16.msra.mxu0 0
        %1787 = vmatprep.subr.bf16.mxu0 0
        %1788 = vmatpush2.bf16.msra.mxu0 0
        %1789 = vmatprep.subr.bf16.mxu0 0
        %1790 = vmatpush2.bf16.msra.mxu0 0
        %1791 = vmatprep.subr.bf16.mxu0 0
        %1792 = vmatpush2.bf16.msra.mxu0 0
        %1793 = vmatprep.subr.bf16.mxu0 0
        %1794 = vmatpush2.bf16.msra.mxu0 0
        %1795 = vmatprep.subr.bf16.mxu0 0
        %1796 = vmatpush2.bf16.msra.mxu0 0
        %1797 = vmatprep.mubr.bf16.mxu0 0
        %1798 = vmatmul.mubr.bf16.gmra.mxu0 %v1678
        %v1799 = vpop.f32.mrf.mxu0
        %v1800 = vadd.f32 %v1715, %v1799
        %v1801 = vpop.f32.mrf.mxu0
        %v1802 = vpop.f32.mrf.mxu0
        %v1803 = vadd.f32 %v1715, %v1802
        %v1804 = vpop.f32.mrf.mxu0
        %1805 = vmatprep.mubr.bf16.mxu0 0
        %1806 = vmatmul.mubr.bf16.gmra.mxu0 %v1679
        %v1807 = vpop.f32.mrf.mxu0
        %v1808 = vadd.f32 %v1715, %v1807
        %v1809 = vpop.f32.mrf.mxu0
        %v1810 = vpop.f32.mrf.mxu0
        %v1811 = vadd.f32 %v1715, %v1810
        %v1812 = vpop.f32.mrf.mxu0
        %1813 = vmatprep.mubr.bf16.mxu0 0
        %1814 = vmatmul.mubr.bf16.gmra.mxu0 %v1680
        %v1815 = vpop.f32.mrf.mxu0
        %v1816 = vadd.f32 %v1715, %v1815
        %v1817 = vpop.f32.mrf.mxu0
        %v1818 = vpop.f32.mrf.mxu0
        %v1819 = vadd.f32 %v1715, %v1818
        %v1820 = vpop.f32.mrf.mxu0
        %1821 = vmatprep.mubr.bf16.mxu0 0
        %1822 = vmatmul.mubr.bf16.gmra.mxu0 %v1681
        %v1823 = vpop.f32.mrf.mxu0
        %v1824 = vadd.f32 %v1715, %v1823
        %v1825 = vpop.f32.mrf.mxu0
        %v1826 = vpop.f32.mrf.mxu0
        %v1827 = vadd.f32 %v1715, %v1826
        %v1828 = vpop.f32.mrf.mxu0
        %1829 = vmatprep.mubr.bf16.mxu0 0
        %1830 = vmatmul.mubr.bf16.gmra.mxu0 %v1682
        %v1831 = vpop.f32.mrf.mxu0
        %v1832 = vadd.f32 %v1715, %v1831
        %v1833 = vpop.f32.mrf.mxu0
        %v1834 = vpop.f32.mrf.mxu0
        %v1835 = vadd.f32 %v1715, %v1834
        %v1836 = vpop.f32.mrf.mxu0
        %1837 = vmatprep.mubr.bf16.mxu0 0
        %1838 = vmatmul.mubr.bf16.gmra.mxu0 %v1683
        %v1839 = vpop.f32.mrf.mxu0
        %v1840 = vadd.f32 %v1715, %v1839
        %v1841 = vpop.f32.mrf.mxu0
        %v1842 = vpop.f32.mrf.mxu0
        %v1843 = vadd.f32 %v1715, %v1842
        %v1844 = vpop.f32.mrf.mxu0
        %1845 = vmatprep.mubr.bf16.mxu0 0
        %1846 = vmatmul.mubr.bf16.gmra.mxu0 %v1684
        %v1847 = vpop.f32.mrf.mxu0
        %v1848 = vadd.f32 %v1715, %v1847
        %v1849 = vpop.f32.mrf.mxu0
        %v1850 = vpop.f32.mrf.mxu0
        %v1851 = vadd.f32 %v1715, %v1850
        %v1852 = vpop.f32.mrf.mxu0
        %1853 = vmatprep.mubr.bf16.mxu0 0
        %1854 = vmatmul.mubr.bf16.gmra.mxu0 %v1685
        %v1855 = vpop.f32.mrf.mxu0
        %v1856 = vadd.f32 %v1715, %v1855
        %v1857 = vpop.f32.mrf.mxu0
        %v1858 = vpop.f32.mrf.mxu0
        %v1859 = vadd.f32 %v1715, %v1858
        %v1860 = vpop.f32.mrf.mxu0
        %1861 = vmatprep.mubr.bf16.mxu0 0
        %1862 = vmatmul.mubr.bf16.gmra.mxu0 %v1686
        %v1863 = vpop.f32.mrf.mxu0
        %v1864 = vadd.f32 %v1715, %v1863
        %v1865 = vpop.f32.mrf.mxu0
        %v1866 = vpop.f32.mrf.mxu0
        %v1867 = vadd.f32 %v1715, %v1866
        %v1868 = vpop.f32.mrf.mxu0
        %1869 = vmatprep.mubr.bf16.mxu0 0
        %1870 = vmatmul.mubr.bf16.gmra.mxu0 %v1687
        %v1871 = vpop.f32.mrf.mxu0
        %v1872 = vadd.f32 %v1715, %v1871
        %v1873 = vpop.f32.mrf.mxu0
        %v1874 = vpop.f32.mrf.mxu0
        %v1875 = vadd.f32 %v1715, %v1874
        %v1876 = vpop.f32.mrf.mxu0
        %1877 = vmatprep.mubr.bf16.mxu0 0
        %1878 = vmatmul.mubr.bf16.gmra.mxu0 %v1688
        %v1879 = vpop.f32.mrf.mxu0
        %v1880 = vadd.f32 %v1715, %v1879
        %v1881 = vpop.f32.mrf.mxu0
        %v1882 = vpop.f32.mrf.mxu0
        %v1883 = vadd.f32 %v1715, %v1882
        %v1884 = vpop.f32.mrf.mxu0
        %1885 = vmatprep.mubr.bf16.mxu0 0
        %1886 = vmatmul.mubr.bf16.gmra.mxu0 %v1689
        %v1887 = vpop.f32.mrf.mxu0
        %v1888 = vadd.f32 %v1715, %v1887
        %v1889 = vpop.f32.mrf.mxu0
        %v1890 = vpop.f32.mrf.mxu0
        %v1891 = vadd.f32 %v1715, %v1890
        %v1892 = vpop.f32.mrf.mxu0
        %1893 = vmatprep.mubr.bf16.mxu0 0
        %1894 = vmatmul.mubr.bf16.gmra.mxu0 %v1690
        %v1895 = vpop.f32.mrf.mxu0
        %v1896 = vadd.f32 %v1715, %v1895
        %v1897 = vpop.f32.mrf.mxu0
        %v1898 = vpop.f32.mrf.mxu0
        %v1899 = vadd.f32 %v1715, %v1898
        %v1900 = vpop.f32.mrf.mxu0
        %1901 = vmatprep.mubr.bf16.mxu0 0
        %1902 = vmatmul.mubr.bf16.gmra.mxu0 %v1691
        %v1903 = vpop.f32.mrf.mxu0
        %v1904 = vadd.f32 %v1715, %v1903
        %v1905 = vpop.f32.mrf.mxu0
        %v1906 = vpop.f32.mrf.mxu0
        %v1907 = vadd.f32 %v1715, %v1906
        %v1908 = vpop.f32.mrf.mxu0
        %1909 = vmatprep.mubr.bf16.mxu0 0
        %1910 = vmatmul.mubr.bf16.gmra.mxu0 %v1692
        %v1911 = vpop.f32.mrf.mxu0
        %v1912 = vadd.f32 %v1715, %v1911
        %v1913 = vpop.f32.mrf.mxu0
        %v1914 = vpop.f32.mrf.mxu0
        %v1915 = vadd.f32 %v1715, %v1914
        %v1916 = vpop.f32.mrf.mxu0
        %1917 = vmatprep.mubr.bf16.mxu0 0
        %1918 = vmatmul.mubr.bf16.gmra.mxu0 %v1693
        %v1919 = vpop.f32.mrf.mxu0
        %v1920 = vadd.f32 %v1715, %v1919
        %v1921 = vpop.f32.mrf.mxu0
        %v1922 = vpop.f32.mrf.mxu0
        %v1923 = vadd.f32 %v1715, %v1922
        %v1924 = vpop.f32.mrf.mxu0
        %1925 = vdwg.mxu0
        %1926 = vst [vmem:[#allocation2] sm:$0xff] 0.0
        %1927 = vst [vmem:[#allocation2 + $0x8] sm:$0xff] 0.0
        %1928 = vst [vmem:[#allocation2 + $0x10] sm:$0xff] 0.0
        %1929 = vst [vmem:[#allocation2 + $0x18] sm:$0xff] 0.0
        %1930 = vst [vmem:[#allocation2 + $0x20] sm:$0xff] 0.0
        %1931 = vst [vmem:[#allocation2 + $0x28] sm:$0xff] 0.0
        %1932 = vst [vmem:[#allocation2 + $0x30] sm:$0xff] 0.0
        %1933 = vst [vmem:[#allocation2 + $0x38] sm:$0xff] 0.0
        %1934 = vst [vmem:[#allocation2 + $0x40] sm:$0xff] 0.0
        %1935 = vst [vmem:[#allocation2 + $0x48] sm:$0xff] 0.0
        %1936 = vst [vmem:[#allocation2 + $0x50] sm:$0xff] 0.0
        %1937 = vst [vmem:[#allocation2 + $0x58] sm:$0xff] 0.0
        %1938 = vst [vmem:[#allocation2 + $0x60] sm:$0xff] 0.0
        %1939 = vst [vmem:[#allocation2 + $0x68] sm:$0xff] 0.0
        %1940 = vst [vmem:[#allocation2 + $0x70] sm:$0xff] 0.0
        %1941 = vst [vmem:[#allocation2 + $0x78] sm:$0xff] 0.0
        %1942 = vst [vmem:[#allocation2 + $0x80] sm:$0xff] 0.0
        %1943 = vst [vmem:[#allocation2 + $0x88] sm:$0xff] 0.0
        %1944 = vst [vmem:[#allocation2 + $0x90] sm:$0xff] 0.0
        %1945 = vst [vmem:[#allocation2 + $0x98] sm:$0xff] 0.0
        %1946 = vst [vmem:[#allocation2 + $0xa0] sm:$0xff] 0.0
        %1947 = vst [vmem:[#allocation2 + $0xa8] sm:$0xff] 0.0
        %1948 = vst [vmem:[#allocation2 + $0xb0] sm:$0xff] 0.0
        %1949 = vst [vmem:[#allocation2 + $0xb8] sm:$0xff] 0.0
        %1950 = vst [vmem:[#allocation2 + $0xc0] sm:$0xff] 0.0
        %1951 = vst [vmem:[#allocation2 + $0xc8] sm:$0xff] 0.0
        %1952 = vst [vmem:[#allocation2 + $0xd0] sm:$0xff] 0.0
        %1953 = vst [vmem:[#allocation2 + $0xd8] sm:$0xff] 0.0
        %1954 = vst [vmem:[#allocation2 + $0xe0] sm:$0xff] 0.0
        %1955 = vst [vmem:[#allocation2 + $0xe8] sm:$0xff] 0.0
        %1956 = vst [vmem:[#allocation2 + $0xf0] sm:$0xff] 0.0
        %1957 = vst [vmem:[#allocation2 + $0xf8] sm:$0xff] 0.0
        %1958 = vst [vmem:[#allocation2 + $0x100] sm:$0xff] 0.0
        %1959 = vst [vmem:[#allocation2 + $0x108] sm:$0xff] 0.0
        %1960 = vst [vmem:[#allocation2 + $0x110] sm:$0xff] 0.0
        %1961 = vst [vmem:[#allocation2 + $0x118] sm:$0xff] 0.0
        %1962 = vst [vmem:[#allocation2 + $0x120] sm:$0xff] 0.0
        %1963 = vst [vmem:[#allocation2 + $0x128] sm:$0xff] 0.0
        %1964 = vst [vmem:[#allocation2 + $0x130] sm:$0xff] 0.0
        %1965 = vst [vmem:[#allocation2 + $0x138] sm:$0xff] 0.0
        %1966 = vst [vmem:[#allocation2 + $0x140] sm:$0xff] 0.0
        %1967 = vst [vmem:[#allocation2 + $0x148] sm:$0xff] 0.0
        %1968 = vst [vmem:[#allocation2 + $0x150] sm:$0xff] 0.0
        %1969 = vst [vmem:[#allocation2 + $0x158] sm:$0xff] 0.0
        %1970 = vst [vmem:[#allocation2 + $0x160] sm:$0xff] 0.0
        %1971 = vst [vmem:[#allocation2 + $0x168] sm:$0xff] 0.0
        %1972 = vst [vmem:[#allocation2 + $0x170] sm:$0xff] 0.0
        %1973 = vst [vmem:[#allocation2 + $0x178] sm:$0xff] 0.0
        %1974 = vst [vmem:[#allocation2 + $0x180] sm:$0xff] 0.0
        %1975 = vst [vmem:[#allocation2 + $0x188] sm:$0xff] 0.0
        %1976 = vst [vmem:[#allocation2 + $0x190] sm:$0xff] 0.0
        %1977 = vst [vmem:[#allocation2 + $0x198] sm:$0xff] 0.0
        %1978 = vst [vmem:[#allocation2 + $0x1a0] sm:$0xff] 0.0
        %1979 = vst [vmem:[#allocation2 + $0x1a8] sm:$0xff] 0.0
        %s1980 = scalar_lea.vmem [#allocation2], 24
        %1981 = vst [vmem:[%s1980 + $0x1] sm:$0xff] %v1800
        %1982 = vst [vmem:[%s1980 + $0x9] sm:$0xff] %v1803
        %1983 = vst [vmem:[%s1980 + $0x19] sm:$0xff] %v1808
        %1984 = vst [vmem:[%s1980 + $0x21] sm:$0xff] %v1811
        %1985 = vst [vmem:[%s1980 + $0x31] sm:$0xff] %v1816
        %1986 = vst [vmem:[%s1980 + $0x39] sm:$0xff] %v1819
        %1987 = vst [vmem:[%s1980 + $0x49] sm:$0xff] %v1824
        %1988 = vst [vmem:[%s1980 + $0x51] sm:$0xff] %v1827
        %1989 = vst [vmem:[%s1980 + $0x61] sm:$0xff] %v1832
        %1990 = vst [vmem:[%s1980 + $0x69] sm:$0xff] %v1835
        %1991 = vst [vmem:[%s1980 + $0x79] sm:$0xff] %v1840
        %1992 = vst [vmem:[%s1980 + $0x81] sm:$0xff] %v1843
        %1993 = vst [vmem:[%s1980 + $0x91] sm:$0xff] %v1848
        %1994 = vst [vmem:[%s1980 + $0x99] sm:$0xff] %v1851
        %1995 = vst [vmem:[%s1980 + $0xa9] sm:$0xff] %v1856
        %1996 = vst [vmem:[%s1980 + $0xb1] sm:$0xff] %v1859
        %1997 = vst [vmem:[%s1980 + $0xc1] sm:$0xff] %v1864
        %1998 = vst [vmem:[%s1980 + $0xc9] sm:$0xff] %v1867
        %1999 = vst [vmem:[%s1980 + $0xd9] sm:$0xff] %v1872
        %2000 = vst [vmem:[%s1980 + $0xe1] sm:$0xff] %v1875
        %2001 = vst [vmem:[%s1980 + $0xf1] sm:$0xff] %v1880
        %2002 = vst [vmem:[%s1980 + $0xf9] sm:$0xff] %v1883
        %2003 = vst [vmem:[%s1980 + $0x109] sm:$0xff] %v1888
        %2004 = vst [vmem:[%s1980 + $0x111] sm:$0xff] %v1891
        %2005 = vst [vmem:[%s1980 + $0x121] sm:$0xff] %v1896
        %2006 = vst [vmem:[%s1980 + $0x129] sm:$0xff] %v1899
        %2007 = vst [vmem:[%s1980 + $0x139] sm:$0xff] %v1904
        %2008 = vst [vmem:[%s1980 + $0x141] sm:$0xff] %v1907
        %2009 = vst [vmem:[%s1980 + $0x151] sm:$0xff] %v1912
        %2010 = vst [vmem:[%s1980 + $0x159] sm:$0xff] %v1915
        %2011 = vst [vmem:[%s1980 + $0x169] sm:$0xff] %v1920
        %2012 = vst [vmem:[%s1980 + $0x171] sm:$0xff] %v1923
        %v2013 = vld [vmem:[#allocation2] sm:$0xff]
        %v2014 = vld [vmem:[#allocation2 + $0x8] sm:$0xff]
        %v2015 = vld [vmem:[#allocation2 + $0x18] sm:$0xff]
        %v2016 = vld [vmem:[#allocation2 + $0x20] sm:$0xff]
        %v2017 = vld [vmem:[#allocation2 + $0x30] sm:$0xff]
        %v2018 = vld [vmem:[#allocation2 + $0x38] sm:$0xff]
        %v2019 = vld [vmem:[#allocation2 + $0x48] sm:$0xff]
        %v2020 = vld [vmem:[#allocation2 + $0x50] sm:$0xff]
        %v2021 = vld [vmem:[#allocation2 + $0x60] sm:$0xff]
        %v2022 = vld [vmem:[#allocation2 + $0x68] sm:$0xff]
        %v2023 = vld [vmem:[#allocation2 + $0x78] sm:$0xff]
        %v2024 = vld [vmem:[#allocation2 + $0x80] sm:$0xff]
        %v2025 = vld [vmem:[#allocation2 + $0x90] sm:$0xff]
        %v2026 = vld [vmem:[#allocation2 + $0x98] sm:$0xff]
        %v2027 = vld [vmem:[#allocation2 + $0xa8] sm:$0xff]
        %v2028 = vld [vmem:[#allocation2 + $0xb0] sm:$0xff]
        %v2029 = vld [vmem:[#allocation2 + $0xc0] sm:$0xff]
        %v2030 = vld [vmem:[#allocation2 + $0xc8] sm:$0xff]
        %v2031 = vld [vmem:[#allocation2 + $0xd8] sm:$0xff]
        %v2032 = vld [vmem:[#allocation2 + $0xe0] sm:$0xff]
        %v2033 = vld [vmem:[#allocation2 + $0xf0] sm:$0xff]
        %v2034 = vld [vmem:[#allocation2 + $0xf8] sm:$0xff]
        %v2035 = vld [vmem:[#allocation2 + $0x108] sm:$0xff]
        %v2036 = vld [vmem:[#allocation2 + $0x110] sm:$0xff]
        %v2037 = vld [vmem:[#allocation2 + $0x120] sm:$0xff]
        %v2038 = vld [vmem:[#allocation2 + $0x128] sm:$0xff]
        %v2039 = vld [vmem:[#allocation2 + $0x138] sm:$0xff]
        %v2040 = vld [vmem:[#allocation2 + $0x140] sm:$0xff]
        %v2041 = vld [vmem:[#allocation2 + $0x150] sm:$0xff]
        %v2042 = vld [vmem:[#allocation2 + $0x158] sm:$0xff]
        %v2043 = vld [vmem:[#allocation2 + $0x168] sm:$0xff]
        %v2044 = vld [vmem:[#allocation2 + $0x170] sm:$0xff]
        %v2045 = vmax.f32 %v2013, 0.0
        %v2046 = vmax.f32 %v2014, 0.0
        %v2047 = vmax.f32 %v2015, 0.0
        %v2048 = vmax.f32 %v2016, 0.0
        %v2049 = vmax.f32 %v2017, 0.0
        %v2050 = vmax.f32 %v2018, 0.0
        %v2051 = vmax.f32 %v2019, 0.0
        %v2052 = vmax.f32 %v2020, 0.0
        %v2053 = vmax.f32 %v2021, 0.0
        %v2054 = vmax.f32 %v2022, 0.0
        %v2055 = vmax.f32 %v2023, 0.0
        %v2056 = vmax.f32 %v2024, 0.0
        %v2057 = vmax.f32 %v2025, 0.0
        %v2058 = vmax.f32 %v2026, 0.0
        %v2059 = vmax.f32 %v2027, 0.0
        %v2060 = vmax.f32 %v2028, 0.0
        %v2061 = vmax.f32 %v2029, 0.0
        %v2062 = vmax.f32 %v2030, 0.0
        %v2063 = vmax.f32 %v2031, 0.0
        %v2064 = vmax.f32 %v2032, 0.0
        %v2065 = vmax.f32 %v2033, 0.0
        %v2066 = vmax.f32 %v2034, 0.0
        %v2067 = vmax.f32 %v2035, 0.0
        %v2068 = vmax.f32 %v2036, 0.0
        %v2069 = vmax.f32 %v2037, 0.0
        %v2070 = vmax.f32 %v2038, 0.0
        %v2071 = vmax.f32 %v2039, 0.0
        %v2072 = vmax.f32 %v2040, 0.0
        %v2073 = vmax.f32 %v2041, 0.0
        %v2074 = vmax.f32 %v2042, 0.0
        %v2075 = vmax.f32 %v2043, 0.0
        %v2076 = vmax.f32 %v2044, 0.0
        %v2077 = vld [vmem:[#allocation12] sm:$0x1]
        %v2078 = vlaneseq
        %v2079 = vshrl.u32 %v2078, 7
        %v2080 = vsub.s32 0, %v2079
        %v2081 = vrot.slane %v2077, %v2080
        %v2082 = vmul.f32 %v2045, %v2081
        %v2083 = vmul.f32 %v2046, %v2081
        %v2084 = vmul.f32 %v2047, %v2081
        %v2085 = vmul.f32 %v2048, %v2081
        %v2086 = vmul.f32 %v2049, %v2081
        %v2087 = vmul.f32 %v2050, %v2081
        %v2088 = vmul.f32 %v2051, %v2081
        %v2089 = vmul.f32 %v2052, %v2081
        %v2090 = vmul.f32 %v2053, %v2081
        %v2091 = vmul.f32 %v2054, %v2081
        %v2092 = vmul.f32 %v2055, %v2081
        %v2093 = vmul.f32 %v2056, %v2081
        %v2094 = vmul.f32 %v2057, %v2081
        %v2095 = vmul.f32 %v2058, %v2081
        %v2096 = vmul.f32 %v2059, %v2081
        %v2097 = vmul.f32 %v2060, %v2081
        %v2098 = vmul.f32 %v2061, %v2081
        %v2099 = vmul.f32 %v2062, %v2081
        %v2100 = vmul.f32 %v2063, %v2081
        %v2101 = vmul.f32 %v2064, %v2081
        %v2102 = vmul.f32 %v2065, %v2081
        %v2103 = vmul.f32 %v2066, %v2081
        %v2104 = vmul.f32 %v2067, %v2081
        %v2105 = vmul.f32 %v2068, %v2081
        %v2106 = vmul.f32 %v2069, %v2081
        %v2107 = vmul.f32 %v2070, %v2081
        %v2108 = vmul.f32 %v2071, %v2081
        %v2109 = vmul.f32 %v2072, %v2081
        %v2110 = vmul.f32 %v2073, %v2081
        %v2111 = vmul.f32 %v2074, %v2081
        %v2112 = vmul.f32 %v2075, %v2081
        %v2113 = vmul.f32 %v2076, %v2081
        %v2114 = vadd.f32 %v2082, 0.0
        %v2115 = vadd.f32 %v2083, 0.0
        %v2116 = vadd.f32 %v2084, 0.0
        %v2117 = vadd.f32 %v2085, 0.0
        %v2118 = vadd.f32 %v2086, 0.0
        %v2119 = vadd.f32 %v2087, 0.0
        %v2120 = vadd.f32 %v2088, 0.0
        %v2121 = vadd.f32 %v2089, 0.0
        %v2122 = vadd.f32 %v2090, 0.0
        %v2123 = vadd.f32 %v2091, 0.0
        %v2124 = vadd.f32 %v2092, 0.0
        %v2125 = vadd.f32 %v2093, 0.0
        %v2126 = vadd.f32 %v2094, 0.0
        %v2127 = vadd.f32 %v2095, 0.0
        %v2128 = vadd.f32 %v2096, 0.0
        %v2129 = vadd.f32 %v2097, 0.0
        %v2130 = vadd.f32 %v2098, 0.0
        %v2131 = vadd.f32 %v2099, 0.0
        %v2132 = vadd.f32 %v2100, 0.0
        %v2133 = vadd.f32 %v2101, 0.0
        %v2134 = vadd.f32 %v2102, 0.0
        %v2135 = vadd.f32 %v2103, 0.0
        %v2136 = vadd.f32 %v2104, 0.0
        %v2137 = vadd.f32 %v2105, 0.0
        %v2138 = vadd.f32 %v2106, 0.0
        %v2139 = vadd.f32 %v2107, 0.0
        %v2140 = vadd.f32 %v2108, 0.0
        %v2141 = vadd.f32 %v2109, 0.0
        %v2142 = vadd.f32 %v2110, 0.0
        %v2143 = vadd.f32 %v2111, 0.0
        %v2144 = vadd.f32 %v2112, 0.0
        %v2145 = vadd.f32 %v2113, 0.0
        %v2146 = vld [vmem:[#allocation2 + $0x1] sm:$0xff]
        %v2147 = vld [vmem:[#allocation2 + $0x9] sm:$0xff]
        %v2148 = vld [vmem:[#allocation2 + $0x19] sm:$0xff]
        %v2149 = vld [vmem:[#allocation2 + $0x21] sm:$0xff]
        %v2150 = vld [vmem:[#allocation2 + $0x31] sm:$0xff]
        %v2151 = vld [vmem:[#allocation2 + $0x39] sm:$0xff]
        %v2152 = vld [vmem:[#allocation2 + $0x49] sm:$0xff]
        %v2153 = vld [vmem:[#allocation2 + $0x51] sm:$0xff]
        %v2154 = vld [vmem:[#allocation2 + $0x61] sm:$0xff]
        %v2155 = vld [vmem:[#allocation2 + $0x69] sm:$0xff]
        %v2156 = vld [vmem:[#allocation2 + $0x79] sm:$0xff]
        %v2157 = vld [vmem:[#allocation2 + $0x81] sm:$0xff]
        %v2158 = vld [vmem:[#allocation2 + $0x91] sm:$0xff]
        %v2159 = vld [vmem:[#allocation2 + $0x99] sm:$0xff]
        %v2160 = vld [vmem:[#allocation2 + $0xa9] sm:$0xff]
        %v2161 = vld [vmem:[#allocation2 + $0xb1] sm:$0xff]
        %v2162 = vld [vmem:[#allocation2 + $0xc1] sm:$0xff]
        %v2163 = vld [vmem:[#allocation2 + $0xc9] sm:$0xff]
        %v2164 = vld [vmem:[#allocation2 + $0xd9] sm:$0xff]
        %v2165 = vld [vmem:[#allocation2 + $0xe1] sm:$0xff]
        %v2166 = vld [vmem:[#allocation2 + $0xf1] sm:$0xff]
        %v2167 = vld [vmem:[#allocation2 + $0xf9] sm:$0xff]
        %v2168 = vld [vmem:[#allocation2 + $0x109] sm:$0xff]
        %v2169 = vld [vmem:[#allocation2 + $0x111] sm:$0xff]
        %v2170 = vld [vmem:[#allocation2 + $0x121] sm:$0xff]
        %v2171 = vld [vmem:[#allocation2 + $0x129] sm:$0xff]
        %v2172 = vld [vmem:[#allocation2 + $0x139] sm:$0xff]
        %v2173 = vld [vmem:[#allocation2 + $0x141] sm:$0xff]
        %v2174 = vld [vmem:[#allocation2 + $0x151] sm:$0xff]
        %v2175 = vld [vmem:[#allocation2 + $0x159] sm:$0xff]
        %v2176 = vld [vmem:[#allocation2 + $0x169] sm:$0xff]
        %v2177 = vld [vmem:[#allocation2 + $0x171] sm:$0xff]
        %v2178 = vmax.f32 %v2146, 0.0
        %v2179 = vmax.f32 %v2147, 0.0
        %v2180 = vmax.f32 %v2148, 0.0
        %v2181 = vmax.f32 %v2149, 0.0
        %v2182 = vmax.f32 %v2150, 0.0
        %v2183 = vmax.f32 %v2151, 0.0
        %v2184 = vmax.f32 %v2152, 0.0
        %v2185 = vmax.f32 %v2153, 0.0
        %v2186 = vmax.f32 %v2154, 0.0
        %v2187 = vmax.f32 %v2155, 0.0
        %v2188 = vmax.f32 %v2156, 0.0
        %v2189 = vmax.f32 %v2157, 0.0
        %v2190 = vmax.f32 %v2158, 0.0
        %v2191 = vmax.f32 %v2159, 0.0
        %v2192 = vmax.f32 %v2160, 0.0
        %v2193 = vmax.f32 %v2161, 0.0
        %v2194 = vmax.f32 %v2162, 0.0
        %v2195 = vmax.f32 %v2163, 0.0
        %v2196 = vmax.f32 %v2164, 0.0
        %v2197 = vmax.f32 %v2165, 0.0
        %v2198 = vmax.f32 %v2166, 0.0
        %v2199 = vmax.f32 %v2167, 0.0
        %v2200 = vmax.f32 %v2168, 0.0
        %v2201 = vmax.f32 %v2169, 0.0
        %v2202 = vmax.f32 %v2170, 0.0
        %v2203 = vmax.f32 %v2171, 0.0
        %v2204 = vmax.f32 %v2172, 0.0
        %v2205 = vmax.f32 %v2173, 0.0
        %v2206 = vmax.f32 %v2174, 0.0
        %v2207 = vmax.f32 %v2175, 0.0
        %v2208 = vmax.f32 %v2176, 0.0
        %v2209 = vmax.f32 %v2177, 0.0
        %v2210 = vld [vmem:[#allocation12 + $0x1] sm:$0x1]
        %v2211 = vlaneseq
        %v2212 = vshrl.u32 %v2211, 7
        %v2213 = vsub.s32 0, %v2212
        %v2214 = vrot.slane %v2210, %v2213
        %v2215 = vmul.f32 %v2178, %v2214
        %v2216 = vmul.f32 %v2179, %v2214
        %v2217 = vmul.f32 %v2180, %v2214
        %v2218 = vmul.f32 %v2181, %v2214
        %v2219 = vmul.f32 %v2182, %v2214
        %v2220 = vmul.f32 %v2183, %v2214
        %v2221 = vmul.f32 %v2184, %v2214
        %v2222 = vmul.f32 %v2185, %v2214
        %v2223 = vmul.f32 %v2186, %v2214
        %v2224 = vmul.f32 %v2187, %v2214
        %v2225 = vmul.f32 %v2188, %v2214
        %v2226 = vmul.f32 %v2189, %v2214
        %v2227 = vmul.f32 %v2190, %v2214
        %v2228 = vmul.f32 %v2191, %v2214
        %v2229 = vmul.f32 %v2192, %v2214
        %v2230 = vmul.f32 %v2193, %v2214
        %v2231 = vmul.f32 %v2194, %v2214
        %v2232 = vmul.f32 %v2195, %v2214
        %v2233 = vmul.f32 %v2196, %v2214
        %v2234 = vmul.f32 %v2197, %v2214
        %v2235 = vmul.f32 %v2198, %v2214
        %v2236 = vmul.f32 %v2199, %v2214
        %v2237 = vmul.f32 %v2200, %v2214
        %v2238 = vmul.f32 %v2201, %v2214
        %v2239 = vmul.f32 %v2202, %v2214
        %v2240 = vmul.f32 %v2203, %v2214
        %v2241 = vmul.f32 %v2204, %v2214
        %v2242 = vmul.f32 %v2205, %v2214
        %v2243 = vmul.f32 %v2206, %v2214
        %v2244 = vmul.f32 %v2207, %v2214
        %v2245 = vmul.f32 %v2208, %v2214
        %v2246 = vmul.f32 %v2209, %v2214
        %v2247 = vadd.f32 %v2114, %v2215
        %v2248 = vadd.f32 %v2115, %v2216
        %v2249 = vadd.f32 %v2116, %v2217
        %v2250 = vadd.f32 %v2117, %v2218
        %v2251 = vadd.f32 %v2118, %v2219
        %v2252 = vadd.f32 %v2119, %v2220
        %v2253 = vadd.f32 %v2120, %v2221
        %v2254 = vadd.f32 %v2121, %v2222
        %v2255 = vadd.f32 %v2122, %v2223
        %v2256 = vadd.f32 %v2123, %v2224
        %v2257 = vadd.f32 %v2124, %v2225
        %v2258 = vadd.f32 %v2125, %v2226
        %v2259 = vadd.f32 %v2126, %v2227
        %v2260 = vadd.f32 %v2127, %v2228
        %v2261 = vadd.f32 %v2128, %v2229
        %v2262 = vadd.f32 %v2129, %v2230
        %v2263 = vadd.f32 %v2130, %v2231
        %v2264 = vadd.f32 %v2131, %v2232
        %v2265 = vadd.f32 %v2132, %v2233
        %v2266 = vadd.f32 %v2133, %v2234
        %v2267 = vadd.f32 %v2134, %v2235
        %v2268 = vadd.f32 %v2135, %v2236
        %v2269 = vadd.f32 %v2136, %v2237
        %v2270 = vadd.f32 %v2137, %v2238
        %v2271 = vadd.f32 %v2138, %v2239
        %v2272 = vadd.f32 %v2139, %v2240
        %v2273 = vadd.f32 %v2140, %v2241
        %v2274 = vadd.f32 %v2141, %v2242
        %v2275 = vadd.f32 %v2142, %v2243
        %v2276 = vadd.f32 %v2143, %v2244
        %v2277 = vadd.f32 %v2144, %v2245
        %v2278 = vadd.f32 %v2145, %v2246
        %v2279 = vld [vmem:[#allocation2 + $0x2] sm:$0xff]
        %v2280 = vld [vmem:[#allocation2 + $0xa] sm:$0xff]
        %v2281 = vld [vmem:[#allocation2 + $0x1a] sm:$0xff]
        %v2282 = vld [vmem:[#allocation2 + $0x22] sm:$0xff]
        %v2283 = vld [vmem:[#allocation2 + $0x32] sm:$0xff]
        %v2284 = vld [vmem:[#allocation2 + $0x3a] sm:$0xff]
        %v2285 = vld [vmem:[#allocation2 + $0x4a] sm:$0xff]
        %v2286 = vld [vmem:[#allocation2 + $0x52] sm:$0xff]
        %v2287 = vld [vmem:[#allocation2 + $0x62] sm:$0xff]
        %v2288 = vld [vmem:[#allocation2 + $0x6a] sm:$0xff]
        %v2289 = vld [vmem:[#allocation2 + $0x7a] sm:$0xff]
        %v2290 = vld [vmem:[#allocation2 + $0x82] sm:$0xff]
        %v2291 = vld [vmem:[#allocation2 + $0x92] sm:$0xff]
        %v2292 = vld [vmem:[#allocation2 + $0x9a] sm:$0xff]
        %v2293 = vld [vmem:[#allocation2 + $0xaa] sm:$0xff]
        %v2294 = vld [vmem:[#allocation2 + $0xb2] sm:$0xff]
        %v2295 = vld [vmem:[#allocation2 + $0xc2] sm:$0xff]
        %v2296 = vld [vmem:[#allocation2 + $0xca] sm:$0xff]
        %v2297 = vld [vmem:[#allocation2 + $0xda] sm:$0xff]
        %v2298 = vld [vmem:[#allocation2 + $0xe2] sm:$0xff]
        %v2299 = vld [vmem:[#allocation2 + $0xf2] sm:$0xff]
        %v2300 = vld [vmem:[#allocation2 + $0xfa] sm:$0xff]
        %v2301 = vld [vmem:[#allocation2 + $0x10a] sm:$0xff]
        %v2302 = vld [vmem:[#allocation2 + $0x112] sm:$0xff]
        %v2303 = vld [vmem:[#allocation2 + $0x122] sm:$0xff]
        %v2304 = vld [vmem:[#allocation2 + $0x12a] sm:$0xff]
        %v2305 = vld [vmem:[#allocation2 + $0x13a] sm:$0xff]
        %v2306 = vld [vmem:[#allocation2 + $0x142] sm:$0xff]
        %v2307 = vld [vmem:[#allocation2 + $0x152] sm:$0xff]
        %v2308 = vld [vmem:[#allocation2 + $0x15a] sm:$0xff]
        %v2309 = vld [vmem:[#allocation2 + $0x16a] sm:$0xff]
        %v2310 = vld [vmem:[#allocation2 + $0x172] sm:$0xff]
        %v2311 = vmax.f32 %v2279, 0.0
        %v2312 = vmax.f32 %v2280, 0.0
        %v2313 = vmax.f32 %v2281, 0.0
        %v2314 = vmax.f32 %v2282, 0.0
        %v2315 = vmax.f32 %v2283, 0.0
        %v2316 = vmax.f32 %v2284, 0.0
        %v2317 = vmax.f32 %v2285, 0.0
        %v2318 = vmax.f32 %v2286, 0.0
        %v2319 = vmax.f32 %v2287, 0.0
        %v2320 = vmax.f32 %v2288, 0.0
        %v2321 = vmax.f32 %v2289, 0.0
        %v2322 = vmax.f32 %v2290, 0.0
        %v2323 = vmax.f32 %v2291, 0.0
        %v2324 = vmax.f32 %v2292, 0.0
        %v2325 = vmax.f32 %v2293, 0.0
        %v2326 = vmax.f32 %v2294, 0.0
        %v2327 = vmax.f32 %v2295, 0.0
        %v2328 = vmax.f32 %v2296, 0.0
        %v2329 = vmax.f32 %v2297, 0.0
        %v2330 = vmax.f32 %v2298, 0.0
        %v2331 = vmax.f32 %v2299, 0.0
        %v2332 = vmax.f32 %v2300, 0.0
        %v2333 = vmax.f32 %v2301, 0.0
        %v2334 = vmax.f32 %v2302, 0.0
        %v2335 = vmax.f32 %v2303, 0.0
        %v2336 = vmax.f32 %v2304, 0.0
        %v2337 = vmax.f32 %v2305, 0.0
        %v2338 = vmax.f32 %v2306, 0.0
        %v2339 = vmax.f32 %v2307, 0.0
        %v2340 = vmax.f32 %v2308, 0.0
        %v2341 = vmax.f32 %v2309, 0.0
        %v2342 = vmax.f32 %v2310, 0.0
        %v2343 = vld [vmem:[#allocation12 + $0x2] sm:$0x1]
        %v2344 = vlaneseq
        %v2345 = vshrl.u32 %v2344, 7
        %v2346 = vsub.s32 0, %v2345
        %v2347 = vrot.slane %v2343, %v2346
        %v2348 = vmul.f32 %v2311, %v2347
        %v2349 = vmul.f32 %v2312, %v2347
        %v2350 = vmul.f32 %v2313, %v2347
        %v2351 = vmul.f32 %v2314, %v2347
        %v2352 = vmul.f32 %v2315, %v2347
        %v2353 = vmul.f32 %v2316, %v2347
        %v2354 = vmul.f32 %v2317, %v2347
        %v2355 = vmul.f32 %v2318, %v2347
        %v2356 = vmul.f32 %v2319, %v2347
        %v2357 = vmul.f32 %v2320, %v2347
        %v2358 = vmul.f32 %v2321, %v2347
        %v2359 = vmul.f32 %v2322, %v2347
        %v2360 = vmul.f32 %v2323, %v2347
        %v2361 = vmul.f32 %v2324, %v2347
        %v2362 = vmul.f32 %v2325, %v2347
        %v2363 = vmul.f32 %v2326, %v2347
        %v2364 = vmul.f32 %v2327, %v2347
        %v2365 = vmul.f32 %v2328, %v2347
        %v2366 = vmul.f32 %v2329, %v2347
        %v2367 = vmul.f32 %v2330, %v2347
        %v2368 = vmul.f32 %v2331, %v2347
        %v2369 = vmul.f32 %v2332, %v2347
        %v2370 = vmul.f32 %v2333, %v2347
        %v2371 = vmul.f32 %v2334, %v2347
        %v2372 = vmul.f32 %v2335, %v2347
        %v2373 = vmul.f32 %v2336, %v2347
        %v2374 = vmul.f32 %v2337, %v2347
        %v2375 = vmul.f32 %v2338, %v2347
        %v2376 = vmul.f32 %v2339, %v2347
        %v2377 = vmul.f32 %v2340, %v2347
        %v2378 = vmul.f32 %v2341, %v2347
        %v2379 = vmul.f32 %v2342, %v2347
        %v2380 = vadd.f32 %v2247, %v2348
        %v2381 = vadd.f32 %v2248, %v2349
        %v2382 = vadd.f32 %v2249, %v2350
        %v2383 = vadd.f32 %v2250, %v2351
        %v2384 = vadd.f32 %v2251, %v2352
        %v2385 = vadd.f32 %v2252, %v2353
        %v2386 = vadd.f32 %v2253, %v2354
        %v2387 = vadd.f32 %v2254, %v2355
        %v2388 = vadd.f32 %v2255, %v2356
        %v2389 = vadd.f32 %v2256, %v2357
        %v2390 = vadd.f32 %v2257, %v2358
        %v2391 = vadd.f32 %v2258, %v2359
        %v2392 = vadd.f32 %v2259, %v2360
        %v2393 = vadd.f32 %v2260, %v2361
        %v2394 = vadd.f32 %v2261, %v2362
        %v2395 = vadd.f32 %v2262, %v2363
        %v2396 = vadd.f32 %v2263, %v2364
        %v2397 = vadd.f32 %v2264, %v2365
        %v2398 = vadd.f32 %v2265, %v2366
        %v2399 = vadd.f32 %v2266, %v2367
        %v2400 = vadd.f32 %v2267, %v2368
        %v2401 = vadd.f32 %v2268, %v2369
        %v2402 = vadd.f32 %v2269, %v2370
        %v2403 = vadd.f32 %v2270, %v2371
        %v2404 = vadd.f32 %v2271, %v2372
        %v2405 = vadd.f32 %v2272, %v2373
        %v2406 = vadd.f32 %v2273, %v2374
        %v2407 = vadd.f32 %v2274, %v2375
        %v2408 = vadd.f32 %v2275, %v2376
        %v2409 = vadd.f32 %v2276, %v2377
        %v2410 = vadd.f32 %v2277, %v2378
        %v2411 = vadd.f32 %v2278, %v2379
        %v2412 = vld [vmem:[%s1980] sm:$0xff]
        %v2413 = vld [vmem:[%s1980 + $0x8] sm:$0xff]
        %v2414 = vld [vmem:[%s1980 + $0x18] sm:$0xff]
        %v2415 = vld [vmem:[%s1980 + $0x20] sm:$0xff]
        %v2416 = vld [vmem:[%s1980 + $0x30] sm:$0xff]
        %v2417 = vld [vmem:[%s1980 + $0x38] sm:$0xff]
        %v2418 = vld [vmem:[%s1980 + $0x48] sm:$0xff]
        %v2419 = vld [vmem:[%s1980 + $0x50] sm:$0xff]
        %v2420 = vld [vmem:[%s1980 + $0x60] sm:$0xff]
        %v2421 = vld [vmem:[%s1980 + $0x68] sm:$0xff]
        %v2422 = vld [vmem:[%s1980 + $0x78] sm:$0xff]
        %v2423 = vld [vmem:[%s1980 + $0x80] sm:$0xff]
        %v2424 = vld [vmem:[%s1980 + $0x90] sm:$0xff]
        %v2425 = vld [vmem:[%s1980 + $0x98] sm:$0xff]
        %v2426 = vld [vmem:[%s1980 + $0xa8] sm:$0xff]
        %v2427 = vld [vmem:[%s1980 + $0xb0] sm:$0xff]
        %v2428 = vld [vmem:[%s1980 + $0xc0] sm:$0xff]
        %v2429 = vld [vmem:[%s1980 + $0xc8] sm:$0xff]
        %v2430 = vld [vmem:[%s1980 + $0xd8] sm:$0xff]
        %v2431 = vld [vmem:[%s1980 + $0xe0] sm:$0xff]
        %v2432 = vld [vmem:[%s1980 + $0xf0] sm:$0xff]
        %v2433 = vld [vmem:[%s1980 + $0xf8] sm:$0xff]
        %v2434 = vld [vmem:[%s1980 + $0x108] sm:$0xff]
        %v2435 = vld [vmem:[%s1980 + $0x110] sm:$0xff]
        %v2436 = vld [vmem:[%s1980 + $0x120] sm:$0xff]
        %v2437 = vld [vmem:[%s1980 + $0x128] sm:$0xff]
        %v2438 = vld [vmem:[%s1980 + $0x138] sm:$0xff]
        %v2439 = vld [vmem:[%s1980 + $0x140] sm:$0xff]
        %v2440 = vld [vmem:[%s1980 + $0x150] sm:$0xff]
        %v2441 = vld [vmem:[%s1980 + $0x158] sm:$0xff]
        %v2442 = vld [vmem:[%s1980 + $0x168] sm:$0xff]
        %v2443 = vld [vmem:[%s1980 + $0x170] sm:$0xff]
        %v2444 = vmax.f32 %v2412, 0.0
        %v2445 = vmax.f32 %v2413, 0.0
        %v2446 = vmax.f32 %v2414, 0.0
        %v2447 = vmax.f32 %v2415, 0.0
        %v2448 = vmax.f32 %v2416, 0.0
        %v2449 = vmax.f32 %v2417, 0.0
        %v2450 = vmax.f32 %v2418, 0.0
        %v2451 = vmax.f32 %v2419, 0.0
        %v2452 = vmax.f32 %v2420, 0.0
        %v2453 = vmax.f32 %v2421, 0.0
        %v2454 = vmax.f32 %v2422, 0.0
        %v2455 = vmax.f32 %v2423, 0.0
        %v2456 = vmax.f32 %v2424, 0.0
        %v2457 = vmax.f32 %v2425, 0.0
        %v2458 = vmax.f32 %v2426, 0.0
        %v2459 = vmax.f32 %v2427, 0.0
        %v2460 = vmax.f32 %v2428, 0.0
        %v2461 = vmax.f32 %v2429, 0.0
        %v2462 = vmax.f32 %v2430, 0.0
        %v2463 = vmax.f32 %v2431, 0.0
        %v2464 = vmax.f32 %v2432, 0.0
        %v2465 = vmax.f32 %v2433, 0.0
        %v2466 = vmax.f32 %v2434, 0.0
        %v2467 = vmax.f32 %v2435, 0.0
        %v2468 = vmax.f32 %v2436, 0.0
        %v2469 = vmax.f32 %v2437, 0.0
        %v2470 = vmax.f32 %v2438, 0.0
        %v2471 = vmax.f32 %v2439, 0.0
        %v2472 = vmax.f32 %v2440, 0.0
        %v2473 = vmax.f32 %v2441, 0.0
        %v2474 = vmax.f32 %v2442, 0.0
        %v2475 = vmax.f32 %v2443, 0.0
        %s2476 = scalar_lea.vmem [#allocation12], 4
        %v2477 = vld [vmem:[%s2476] sm:$0x1]
        %v2478 = vlaneseq
        %v2479 = vshrl.u32 %v2478, 7
        %v2480 = vsub.s32 0, %v2479
        %v2481 = vrot.slane %v2477, %v2480
        %v2482 = vmul.f32 %v2444, %v2481
        %v2483 = vmul.f32 %v2445, %v2481
        %v2484 = vmul.f32 %v2446, %v2481
        %v2485 = vmul.f32 %v2447, %v2481
        %v2486 = vmul.f32 %v2448, %v2481
        %v2487 = vmul.f32 %v2449, %v2481
        %v2488 = vmul.f32 %v2450, %v2481
        %v2489 = vmul.f32 %v2451, %v2481
        %v2490 = vmul.f32 %v2452, %v2481
        %v2491 = vmul.f32 %v2453, %v2481
        %v2492 = vmul.f32 %v2454, %v2481
        %v2493 = vmul.f32 %v2455, %v2481
        %v2494 = vmul.f32 %v2456, %v2481
        %v2495 = vmul.f32 %v2457, %v2481
        %v2496 = vmul.f32 %v2458, %v2481
        %v2497 = vmul.f32 %v2459, %v2481
        %v2498 = vmul.f32 %v2460, %v2481
        %v2499 = vmul.f32 %v2461, %v2481
        %v2500 = vmul.f32 %v2462, %v2481
        %v2501 = vmul.f32 %v2463, %v2481
        %v2502 = vmul.f32 %v2464, %v2481
        %v2503 = vmul.f32 %v2465, %v2481
        %v2504 = vmul.f32 %v2466, %v2481
        %v2505 = vmul.f32 %v2467, %v2481
        %v2506 = vmul.f32 %v2468, %v2481
        %v2507 = vmul.f32 %v2469, %v2481
        %v2508 = vmul.f32 %v2470, %v2481
        %v2509 = vmul.f32 %v2471, %v2481
        %v2510 = vmul.f32 %v2472, %v2481
        %v2511 = vmul.f32 %v2473, %v2481
        %v2512 = vmul.f32 %v2474, %v2481
        %v2513 = vmul.f32 %v2475, %v2481
        %v2514 = vadd.f32 %v2380, %v2482
        %v2515 = vadd.f32 %v2381, %v2483
        %v2516 = vadd.f32 %v2382, %v2484
        %v2517 = vadd.f32 %v2383, %v2485
        %v2518 = vadd.f32 %v2384, %v2486
        %v2519 = vadd.f32 %v2385, %v2487
        %v2520 = vadd.f32 %v2386, %v2488
        %v2521 = vadd.f32 %v2387, %v2489
        %v2522 = vadd.f32 %v2388, %v2490
        %v2523 = vadd.f32 %v2389, %v2491
        %v2524 = vadd.f32 %v2390, %v2492
        %v2525 = vadd.f32 %v2391, %v2493
        %v2526 = vadd.f32 %v2392, %v2494
        %v2527 = vadd.f32 %v2393, %v2495
        %v2528 = vadd.f32 %v2394, %v2496
        %v2529 = vadd.f32 %v2395, %v2497
        %v2530 = vadd.f32 %v2396, %v2498
        %v2531 = vadd.f32 %v2397, %v2499
        %v2532 = vadd.f32 %v2398, %v2500
        %v2533 = vadd.f32 %v2399, %v2501
        %v2534 = vadd.f32 %v2400, %v2502
        %v2535 = vadd.f32 %v2401, %v2503
        %v2536 = vadd.f32 %v2402, %v2504
        %v2537 = vadd.f32 %v2403, %v2505
        %v2538 = vadd.f32 %v2404, %v2506
        %v2539 = vadd.f32 %v2405, %v2507
        %v2540 = vadd.f32 %v2406, %v2508
        %v2541 = vadd.f32 %v2407, %v2509
        %v2542 = vadd.f32 %v2408, %v2510
        %v2543 = vadd.f32 %v2409, %v2511
        %v2544 = vadd.f32 %v2410, %v2512
        %v2545 = vadd.f32 %v2411, %v2513
        %v2546 = vld [vmem:[%s1980 + $0x1] sm:$0xff]
        %v2547 = vld [vmem:[%s1980 + $0x9] sm:$0xff]
        %v2548 = vld [vmem:[%s1980 + $0x19] sm:$0xff]
        %v2549 = vld [vmem:[%s1980 + $0x21] sm:$0xff]
        %v2550 = vld [vmem:[%s1980 + $0x31] sm:$0xff]
        %v2551 = vld [vmem:[%s1980 + $0x39] sm:$0xff]
        %v2552 = vld [vmem:[%s1980 + $0x49] sm:$0xff]
        %v2553 = vld [vmem:[%s1980 + $0x51] sm:$0xff]
        %v2554 = vld [vmem:[%s1980 + $0x61] sm:$0xff]
        %v2555 = vld [vmem:[%s1980 + $0x69] sm:$0xff]
        %v2556 = vld [vmem:[%s1980 + $0x79] sm:$0xff]
        %v2557 = vld [vmem:[%s1980 + $0x81] sm:$0xff]
        %v2558 = vld [vmem:[%s1980 + $0x91] sm:$0xff]
        %v2559 = vld [vmem:[%s1980 + $0x99] sm:$0xff]
        %v2560 = vld [vmem:[%s1980 + $0xa9] sm:$0xff]
        %v2561 = vld [vmem:[%s1980 + $0xb1] sm:$0xff]
        %v2562 = vld [vmem:[%s1980 + $0xc1] sm:$0xff]
        %v2563 = vld [vmem:[%s1980 + $0xc9] sm:$0xff]
        %v2564 = vld [vmem:[%s1980 + $0xd9] sm:$0xff]
        %v2565 = vld [vmem:[%s1980 + $0xe1] sm:$0xff]
        %v2566 = vld [vmem:[%s1980 + $0xf1] sm:$0xff]
        %v2567 = vld [vmem:[%s1980 + $0xf9] sm:$0xff]
        %v2568 = vld [vmem:[%s1980 + $0x109] sm:$0xff]
        %v2569 = vld [vmem:[%s1980 + $0x111] sm:$0xff]
        %v2570 = vld [vmem:[%s1980 + $0x121] sm:$0xff]
        %v2571 = vld [vmem:[%s1980 + $0x129] sm:$0xff]
        %v2572 = vld [vmem:[%s1980 + $0x139] sm:$0xff]
        %v2573 = vld [vmem:[%s1980 + $0x141] sm:$0xff]
        %v2574 = vld [vmem:[%s1980 + $0x151] sm:$0xff]
        %v2575 = vld [vmem:[%s1980 + $0x159] sm:$0xff]
        %v2576 = vld [vmem:[%s1980 + $0x169] sm:$0xff]
        %v2577 = vld [vmem:[%s1980 + $0x171] sm:$0xff]
        %v2578 = vmax.f32 %v2546, 0.0
        %v2579 = vmax.f32 %v2547, 0.0
        %v2580 = vmax.f32 %v2548, 0.0
        %v2581 = vmax.f32 %v2549, 0.0
        %v2582 = vmax.f32 %v2550, 0.0
        %v2583 = vmax.f32 %v2551, 0.0
        %v2584 = vmax.f32 %v2552, 0.0
        %v2585 = vmax.f32 %v2553, 0.0
        %v2586 = vmax.f32 %v2554, 0.0
        %v2587 = vmax.f32 %v2555, 0.0
        %v2588 = vmax.f32 %v2556, 0.0
        %v2589 = vmax.f32 %v2557, 0.0
        %v2590 = vmax.f32 %v2558, 0.0
        %v2591 = vmax.f32 %v2559, 0.0
        %v2592 = vmax.f32 %v2560, 0.0
        %v2593 = vmax.f32 %v2561, 0.0
        %v2594 = vmax.f32 %v2562, 0.0
        %v2595 = vmax.f32 %v2563, 0.0
        %v2596 = vmax.f32 %v2564, 0.0
        %v2597 = vmax.f32 %v2565, 0.0
        %v2598 = vmax.f32 %v2566, 0.0
        %v2599 = vmax.f32 %v2567, 0.0
        %v2600 = vmax.f32 %v2568, 0.0
        %v2601 = vmax.f32 %v2569, 0.0
        %v2602 = vmax.f32 %v2570, 0.0
        %v2603 = vmax.f32 %v2571, 0.0
        %v2604 = vmax.f32 %v2572, 0.0
        %v2605 = vmax.f32 %v2573, 0.0
        %v2606 = vmax.f32 %v2574, 0.0
        %v2607 = vmax.f32 %v2575, 0.0
        %v2608 = vmax.f32 %v2576, 0.0
        %v2609 = vmax.f32 %v2577, 0.0
        %v2610 = vld [vmem:[%s2476 + $0x1] sm:$0x1]
        %v2611 = vlaneseq
        %v2612 = vshrl.u32 %v2611, 7
        %v2613 = vsub.s32 0, %v2612
        %v2614 = vrot.slane %v2610, %v2613
        %v2615 = vmul.f32 %v2578, %v2614
        %v2616 = vmul.f32 %v2579, %v2614
        %v2617 = vmul.f32 %v2580, %v2614
        %v2618 = vmul.f32 %v2581, %v2614
        %v2619 = vmul.f32 %v2582, %v2614
        %v2620 = vmul.f32 %v2583, %v2614
        %v2621 = vmul.f32 %v2584, %v2614
        %v2622 = vmul.f32 %v2585, %v2614
        %v2623 = vmul.f32 %v2586, %v2614
        %v2624 = vmul.f32 %v2587, %v2614
        %v2625 = vmul.f32 %v2588, %v2614
        %v2626 = vmul.f32 %v2589, %v2614
        %v2627 = vmul.f32 %v2590, %v2614
        %v2628 = vmul.f32 %v2591, %v2614
        %v2629 = vmul.f32 %v2592, %v2614
        %v2630 = vmul.f32 %v2593, %v2614
        %v2631 = vmul.f32 %v2594, %v2614
        %v2632 = vmul.f32 %v2595, %v2614
        %v2633 = vmul.f32 %v2596, %v2614
        %v2634 = vmul.f32 %v2597, %v2614
        %v2635 = vmul.f32 %v2598, %v2614
        %v2636 = vmul.f32 %v2599, %v2614
        %v2637 = vmul.f32 %v2600, %v2614
        %v2638 = vmul.f32 %v2601, %v2614
        %v2639 = vmul.f32 %v2602, %v2614
        %v2640 = vmul.f32 %v2603, %v2614
        %v2641 = vmul.f32 %v2604, %v2614
        %v2642 = vmul.f32 %v2605, %v2614
        %v2643 = vmul.f32 %v2606, %v2614
        %v2644 = vmul.f32 %v2607, %v2614
        %v2645 = vmul.f32 %v2608, %v2614
        %v2646 = vmul.f32 %v2609, %v2614
        %v2647 = vadd.f32 %v2514, %v2615
        %v2648 = vadd.f32 %v2515, %v2616
        %v2649 = vadd.f32 %v2516, %v2617
        %v2650 = vadd.f32 %v2517, %v2618
        %v2651 = vadd.f32 %v2518, %v2619
        %v2652 = vadd.f32 %v2519, %v2620
        %v2653 = vadd.f32 %v2520, %v2621
        %v2654 = vadd.f32 %v2521, %v2622
        %v2655 = vadd.f32 %v2522, %v2623
        %v2656 = vadd.f32 %v2523, %v2624
        %v2657 = vadd.f32 %v2524, %v2625
        %v2658 = vadd.f32 %v2525, %v2626
        %v2659 = vadd.f32 %v2526, %v2627
        %v2660 = vadd.f32 %v2527, %v2628
        %v2661 = vadd.f32 %v2528, %v2629
        %v2662 = vadd.f32 %v2529, %v2630
        %v2663 = vadd.f32 %v2530, %v2631
        %v2664 = vadd.f32 %v2531, %v2632
        %v2665 = vadd.f32 %v2532, %v2633
        %v2666 = vadd.f32 %v2533, %v2634
        %v2667 = vadd.f32 %v2534, %v2635
        %v2668 = vadd.f32 %v2535, %v2636
        %v2669 = vadd.f32 %v2536, %v2637
        %v2670 = vadd.f32 %v2537, %v2638
        %v2671 = vadd.f32 %v2538, %v2639
        %v2672 = vadd.f32 %v2539, %v2640
        %v2673 = vadd.f32 %v2540, %v2641
        %v2674 = vadd.f32 %v2541, %v2642
        %v2675 = vadd.f32 %v2542, %v2643
        %v2676 = vadd.f32 %v2543, %v2644
        %v2677 = vadd.f32 %v2544, %v2645
        %v2678 = vadd.f32 %v2545, %v2646
        %v2679 = vld [vmem:[%s1980 + $0x2] sm:$0xff]
        %v2680 = vld [vmem:[%s1980 + $0xa] sm:$0xff]
        %v2681 = vld [vmem:[%s1980 + $0x1a] sm:$0xff]
        %v2682 = vld [vmem:[%s1980 + $0x22] sm:$0xff]
        %v2683 = vld [vmem:[%s1980 + $0x32] sm:$0xff]
        %v2684 = vld [vmem:[%s1980 + $0x3a] sm:$0xff]
        %v2685 = vld [vmem:[%s1980 + $0x4a] sm:$0xff]
        %v2686 = vld [vmem:[%s1980 + $0x52] sm:$0xff]
        %v2687 = vld [vmem:[%s1980 + $0x62] sm:$0xff]
        %v2688 = vld [vmem:[%s1980 + $0x6a] sm:$0xff]
        %v2689 = vld [vmem:[%s1980 + $0x7a] sm:$0xff]
        %v2690 = vld [vmem:[%s1980 + $0x82] sm:$0xff]
        %v2691 = vld [vmem:[%s1980 + $0x92] sm:$0xff]
        %v2692 = vld [vmem:[%s1980 + $0x9a] sm:$0xff]
        %v2693 = vld [vmem:[%s1980 + $0xaa] sm:$0xff]
        %v2694 = vld [vmem:[%s1980 + $0xb2] sm:$0xff]
        %v2695 = vld [vmem:[%s1980 + $0xc2] sm:$0xff]
        %v2696 = vld [vmem:[%s1980 + $0xca] sm:$0xff]
        %v2697 = vld [vmem:[%s1980 + $0xda] sm:$0xff]
        %v2698 = vld [vmem:[%s1980 + $0xe2] sm:$0xff]
        %v2699 = vld [vmem:[%s1980 + $0xf2] sm:$0xff]
        %v2700 = vld [vmem:[%s1980 + $0xfa] sm:$0xff]
        %v2701 = vld [vmem:[%s1980 + $0x10a] sm:$0xff]
        %v2702 = vld [vmem:[%s1980 + $0x112] sm:$0xff]
        %v2703 = vld [vmem:[%s1980 + $0x122] sm:$0xff]
        %v2704 = vld [vmem:[%s1980 + $0x12a] sm:$0xff]
        %v2705 = vld [vmem:[%s1980 + $0x13a] sm:$0xff]
        %v2706 = vld [vmem:[%s1980 + $0x142] sm:$0xff]
        %v2707 = vld [vmem:[%s1980 + $0x152] sm:$0xff]
        %v2708 = vld [vmem:[%s1980 + $0x15a] sm:$0xff]
        %v2709 = vld [vmem:[%s1980 + $0x16a] sm:$0xff]
        %v2710 = vld [vmem:[%s1980 + $0x172] sm:$0xff]
        %v2711 = vmax.f32 %v2679, 0.0
        %v2712 = vmax.f32 %v2680, 0.0
        %v2713 = vmax.f32 %v2681, 0.0
        %v2714 = vmax.f32 %v2682, 0.0
        %v2715 = vmax.f32 %v2683, 0.0
        %v2716 = vmax.f32 %v2684, 0.0
        %v2717 = vmax.f32 %v2685, 0.0
        %v2718 = vmax.f32 %v2686, 0.0
        %v2719 = vmax.f32 %v2687, 0.0
        %v2720 = vmax.f32 %v2688, 0.0
        %v2721 = vmax.f32 %v2689, 0.0
        %v2722 = vmax.f32 %v2690, 0.0
        %v2723 = vmax.f32 %v2691, 0.0
        %v2724 = vmax.f32 %v2692, 0.0
        %v2725 = vmax.f32 %v2693, 0.0
        %v2726 = vmax.f32 %v2694, 0.0
        %v2727 = vmax.f32 %v2695, 0.0
        %v2728 = vmax.f32 %v2696, 0.0
        %v2729 = vmax.f32 %v2697, 0.0
        %v2730 = vmax.f32 %v2698, 0.0
        %v2731 = vmax.f32 %v2699, 0.0
        %v2732 = vmax.f32 %v2700, 0.0
        %v2733 = vmax.f32 %v2701, 0.0
        %v2734 = vmax.f32 %v2702, 0.0
        %v2735 = vmax.f32 %v2703, 0.0
        %v2736 = vmax.f32 %v2704, 0.0
        %v2737 = vmax.f32 %v2705, 0.0
        %v2738 = vmax.f32 %v2706, 0.0
        %v2739 = vmax.f32 %v2707, 0.0
        %v2740 = vmax.f32 %v2708, 0.0
        %v2741 = vmax.f32 %v2709, 0.0
        %v2742 = vmax.f32 %v2710, 0.0
        %v2743 = vld [vmem:[%s2476 + $0x2] sm:$0x1]
        %v2744 = vlaneseq
        %v2745 = vshrl.u32 %v2744, 7
        %v2746 = vsub.s32 0, %v2745
        %v2747 = vrot.slane %v2743, %v2746
        %v2748 = vmul.f32 %v2711, %v2747
        %v2749 = vmul.f32 %v2712, %v2747
        %v2750 = vmul.f32 %v2713, %v2747
        %v2751 = vmul.f32 %v2714, %v2747
        %v2752 = vmul.f32 %v2715, %v2747
        %v2753 = vmul.f32 %v2716, %v2747
        %v2754 = vmul.f32 %v2717, %v2747
        %v2755 = vmul.f32 %v2718, %v2747
        %v2756 = vmul.f32 %v2719, %v2747
        %v2757 = vmul.f32 %v2720, %v2747
        %v2758 = vmul.f32 %v2721, %v2747
        %v2759 = vmul.f32 %v2722, %v2747
        %v2760 = vmul.f32 %v2723, %v2747
        %v2761 = vmul.f32 %v2724, %v2747
        %v2762 = vmul.f32 %v2725, %v2747
        %v2763 = vmul.f32 %v2726, %v2747
        %v2764 = vmul.f32 %v2727, %v2747
        %v2765 = vmul.f32 %v2728, %v2747
        %v2766 = vmul.f32 %v2729, %v2747
        %v2767 = vmul.f32 %v2730, %v2747
        %v2768 = vmul.f32 %v2731, %v2747
        %v2769 = vmul.f32 %v2732, %v2747
        %v2770 = vmul.f32 %v2733, %v2747
        %v2771 = vmul.f32 %v2734, %v2747
        %v2772 = vmul.f32 %v2735, %v2747
        %v2773 = vmul.f32 %v2736, %v2747
        %v2774 = vmul.f32 %v2737, %v2747
        %v2775 = vmul.f32 %v2738, %v2747
        %v2776 = vmul.f32 %v2739, %v2747
        %v2777 = vmul.f32 %v2740, %v2747
        %v2778 = vmul.f32 %v2741, %v2747
        %v2779 = vmul.f32 %v2742, %v2747
        %v2780 = vadd.f32 %v2647, %v2748
        %v2781 = vadd.f32 %v2648, %v2749
        %v2782 = vadd.f32 %v2649, %v2750
        %v2783 = vadd.f32 %v2650, %v2751
        %v2784 = vadd.f32 %v2651, %v2752
        %v2785 = vadd.f32 %v2652, %v2753
        %v2786 = vadd.f32 %v2653, %v2754
        %v2787 = vadd.f32 %v2654, %v2755
        %v2788 = vadd.f32 %v2655, %v2756
        %v2789 = vadd.f32 %v2656, %v2757
        %v2790 = vadd.f32 %v2657, %v2758
        %v2791 = vadd.f32 %v2658, %v2759
        %v2792 = vadd.f32 %v2659, %v2760
        %v2793 = vadd.f32 %v2660, %v2761
        %v2794 = vadd.f32 %v2661, %v2762
        %v2795 = vadd.f32 %v2662, %v2763
        %v2796 = vadd.f32 %v2663, %v2764
        %v2797 = vadd.f32 %v2664, %v2765
        %v2798 = vadd.f32 %v2665, %v2766
        %v2799 = vadd.f32 %v2666, %v2767
        %v2800 = vadd.f32 %v2667, %v2768
        %v2801 = vadd.f32 %v2668, %v2769
        %v2802 = vadd.f32 %v2669, %v2770
        %v2803 = vadd.f32 %v2670, %v2771
        %v2804 = vadd.f32 %v2671, %v2772
        %v2805 = vadd.f32 %v2672, %v2773
        %v2806 = vadd.f32 %v2673, %v2774
        %v2807 = vadd.f32 %v2674, %v2775
        %v2808 = vadd.f32 %v2675, %v2776
        %v2809 = vadd.f32 %v2676, %v2777
        %v2810 = vadd.f32 %v2677, %v2778
        %v2811 = vadd.f32 %v2678, %v2779
        %s2812 = scalar_lea.vmem [#allocation2], 48
        %v2813 = vld [vmem:[%s2812] sm:$0xff]
        %v2814 = vld [vmem:[%s2812 + $0x8] sm:$0xff]
        %v2815 = vld [vmem:[%s2812 + $0x18] sm:$0xff]
        %v2816 = vld [vmem:[%s2812 + $0x20] sm:$0xff]
        %v2817 = vld [vmem:[%s2812 + $0x30] sm:$0xff]
        %v2818 = vld [vmem:[%s2812 + $0x38] sm:$0xff]
        %v2819 = vld [vmem:[%s2812 + $0x48] sm:$0xff]
        %v2820 = vld [vmem:[%s2812 + $0x50] sm:$0xff]
        %v2821 = vld [vmem:[%s2812 + $0x60] sm:$0xff]
        %v2822 = vld [vmem:[%s2812 + $0x68] sm:$0xff]
        %v2823 = vld [vmem:[%s2812 + $0x78] sm:$0xff]
        %v2824 = vld [vmem:[%s2812 + $0x80] sm:$0xff]
        %v2825 = vld [vmem:[%s2812 + $0x90] sm:$0xff]
        %v2826 = vld [vmem:[%s2812 + $0x98] sm:$0xff]
        %v2827 = vld [vmem:[%s2812 + $0xa8] sm:$0xff]
        %v2828 = vld [vmem:[%s2812 + $0xb0] sm:$0xff]
        %v2829 = vld [vmem:[%s2812 + $0xc0] sm:$0xff]
        %v2830 = vld [vmem:[%s2812 + $0xc8] sm:$0xff]
        %v2831 = vld [vmem:[%s2812 + $0xd8] sm:$0xff]
        %v2832 = vld [vmem:[%s2812 + $0xe0] sm:$0xff]
        %v2833 = vld [vmem:[%s2812 + $0xf0] sm:$0xff]
        %v2834 = vld [vmem:[%s2812 + $0xf8] sm:$0xff]
        %v2835 = vld [vmem:[%s2812 + $0x108] sm:$0xff]
        %v2836 = vld [vmem:[%s2812 + $0x110] sm:$0xff]
        %v2837 = vld [vmem:[%s2812 + $0x120] sm:$0xff]
        %v2838 = vld [vmem:[%s2812 + $0x128] sm:$0xff]
        %v2839 = vld [vmem:[%s2812 + $0x138] sm:$0xff]
        %v2840 = vld [vmem:[%s2812 + $0x140] sm:$0xff]
        %v2841 = vld [vmem:[%s2812 + $0x150] sm:$0xff]
        %v2842 = vld [vmem:[%s2812 + $0x158] sm:$0xff]
        %v2843 = vld [vmem:[%s2812 + $0x168] sm:$0xff]
        %v2844 = vld [vmem:[%s2812 + $0x170] sm:$0xff]
        %v2845 = vmax.f32 %v2813, 0.0
        %v2846 = vmax.f32 %v2814, 0.0
        %v2847 = vmax.f32 %v2815, 0.0
        %v2848 = vmax.f32 %v2816, 0.0
        %v2849 = vmax.f32 %v2817, 0.0
        %v2850 = vmax.f32 %v2818, 0.0
        %v2851 = vmax.f32 %v2819, 0.0
        %v2852 = vmax.f32 %v2820, 0.0
        %v2853 = vmax.f32 %v2821, 0.0
        %v2854 = vmax.f32 %v2822, 0.0
        %v2855 = vmax.f32 %v2823, 0.0
        %v2856 = vmax.f32 %v2824, 0.0
        %v2857 = vmax.f32 %v2825, 0.0
        %v2858 = vmax.f32 %v2826, 0.0
        %v2859 = vmax.f32 %v2827, 0.0
        %v2860 = vmax.f32 %v2828, 0.0
        %v2861 = vmax.f32 %v2829, 0.0
        %v2862 = vmax.f32 %v2830, 0.0
        %v2863 = vmax.f32 %v2831, 0.0
        %v2864 = vmax.f32 %v2832, 0.0
        %v2865 = vmax.f32 %v2833, 0.0
        %v2866 = vmax.f32 %v2834, 0.0
        %v2867 = vmax.f32 %v2835, 0.0
        %v2868 = vmax.f32 %v2836, 0.0
        %v2869 = vmax.f32 %v2837, 0.0
        %v2870 = vmax.f32 %v2838, 0.0
        %v2871 = vmax.f32 %v2839, 0.0
        %v2872 = vmax.f32 %v2840, 0.0
        %v2873 = vmax.f32 %v2841, 0.0
        %v2874 = vmax.f32 %v2842, 0.0
        %v2875 = vmax.f32 %v2843, 0.0
        %v2876 = vmax.f32 %v2844, 0.0
        %s2877 = scalar_lea.vmem [#allocation12], 8
        %v2878 = vld [vmem:[%s2877] sm:$0x1]
        %v2879 = vlaneseq
        %v2880 = vshrl.u32 %v2879, 7
        %v2881 = vsub.s32 0, %v2880
        %v2882 = vrot.slane %v2878, %v2881
        %v2883 = vmul.f32 %v2845, %v2882
        %v2884 = vmul.f32 %v2846, %v2882
        %v2885 = vmul.f32 %v2847, %v2882
        %v2886 = vmul.f32 %v2848, %v2882
        %v2887 = vmul.f32 %v2849, %v2882
        %v2888 = vmul.f32 %v2850, %v2882
        %v2889 = vmul.f32 %v2851, %v2882
        %v2890 = vmul.f32 %v2852, %v2882
        %v2891 = vmul.f32 %v2853, %v2882
        %v2892 = vmul.f32 %v2854, %v2882
        %v2893 = vmul.f32 %v2855, %v2882
        %v2894 = vmul.f32 %v2856, %v2882
        %v2895 = vmul.f32 %v2857, %v2882
        %v2896 = vmul.f32 %v2858, %v2882
        %v2897 = vmul.f32 %v2859, %v2882
        %v2898 = vmul.f32 %v2860, %v2882
        %v2899 = vmul.f32 %v2861, %v2882
        %v2900 = vmul.f32 %v2862, %v2882
        %v2901 = vmul.f32 %v2863, %v2882
        %v2902 = vmul.f32 %v2864, %v2882
        %v2903 = vmul.f32 %v2865, %v2882
        %v2904 = vmul.f32 %v2866, %v2882
        %v2905 = vmul.f32 %v2867, %v2882
        %v2906 = vmul.f32 %v2868, %v2882
        %v2907 = vmul.f32 %v2869, %v2882
        %v2908 = vmul.f32 %v2870, %v2882
        %v2909 = vmul.f32 %v2871, %v2882
        %v2910 = vmul.f32 %v2872, %v2882
        %v2911 = vmul.f32 %v2873, %v2882
        %v2912 = vmul.f32 %v2874, %v2882
        %v2913 = vmul.f32 %v2875, %v2882
        %v2914 = vmul.f32 %v2876, %v2882
        %v2915 = vadd.f32 %v2780, %v2883
        %v2916 = vadd.f32 %v2781, %v2884
        %v2917 = vadd.f32 %v2782, %v2885
        %v2918 = vadd.f32 %v2783, %v2886
        %v2919 = vadd.f32 %v2784, %v2887
        %v2920 = vadd.f32 %v2785, %v2888
        %v2921 = vadd.f32 %v2786, %v2889
        %v2922 = vadd.f32 %v2787, %v2890
        %v2923 = vadd.f32 %v2788, %v2891
        %v2924 = vadd.f32 %v2789, %v2892
        %v2925 = vadd.f32 %v2790, %v2893
        %v2926 = vadd.f32 %v2791, %v2894
        %v2927 = vadd.f32 %v2792, %v2895
        %v2928 = vadd.f32 %v2793, %v2896
        %v2929 = vadd.f32 %v2794, %v2897
        %v2930 = vadd.f32 %v2795, %v2898
        %v2931 = vadd.f32 %v2796, %v2899
        %v2932 = vadd.f32 %v2797, %v2900
        %v2933 = vadd.f32 %v2798, %v2901
        %v2934 = vadd.f32 %v2799, %v2902
        %v2935 = vadd.f32 %v2800, %v2903
        %v2936 = vadd.f32 %v2801, %v2904
        %v2937 = vadd.f32 %v2802, %v2905
        %v2938 = vadd.f32 %v2803, %v2906
        %v2939 = vadd.f32 %v2804, %v2907
        %v2940 = vadd.f32 %v2805, %v2908
        %v2941 = vadd.f32 %v2806, %v2909
        %v2942 = vadd.f32 %v2807, %v2910
        %v2943 = vadd.f32 %v2808, %v2911
        %v2944 = vadd.f32 %v2809, %v2912
        %v2945 = vadd.f32 %v2810, %v2913
        %v2946 = vadd.f32 %v2811, %v2914
        %v2947 = vld [vmem:[%s2812 + $0x1] sm:$0xff]
        %v2948 = vld [vmem:[%s2812 + $0x9] sm:$0xff]
        %v2949 = vld [vmem:[%s2812 + $0x19] sm:$0xff]
        %v2950 = vld [vmem:[%s2812 + $0x21] sm:$0xff]
        %v2951 = vld [vmem:[%s2812 + $0x31] sm:$0xff]
        %v2952 = vld [vmem:[%s2812 + $0x39] sm:$0xff]
        %v2953 = vld [vmem:[%s2812 + $0x49] sm:$0xff]
        %v2954 = vld [vmem:[%s2812 + $0x51] sm:$0xff]
        %v2955 = vld [vmem:[%s2812 + $0x61] sm:$0xff]
        %v2956 = vld [vmem:[%s2812 + $0x69] sm:$0xff]
        %v2957 = vld [vmem:[%s2812 + $0x79] sm:$0xff]
        %v2958 = vld [vmem:[%s2812 + $0x81] sm:$0xff]
        %v2959 = vld [vmem:[%s2812 + $0x91] sm:$0xff]
        %v2960 = vld [vmem:[%s2812 + $0x99] sm:$0xff]
        %v2961 = vld [vmem:[%s2812 + $0xa9] sm:$0xff]
        %v2962 = vld [vmem:[%s2812 + $0xb1] sm:$0xff]
        %v2963 = vld [vmem:[%s2812 + $0xc1] sm:$0xff]
        %v2964 = vld [vmem:[%s2812 + $0xc9] sm:$0xff]
        %v2965 = vld [vmem:[%s2812 + $0xd9] sm:$0xff]
        %v2966 = vld [vmem:[%s2812 + $0xe1] sm:$0xff]
        %v2967 = vld [vmem:[%s2812 + $0xf1] sm:$0xff]
        %v2968 = vld [vmem:[%s2812 + $0xf9] sm:$0xff]
        %v2969 = vld [vmem:[%s2812 + $0x109] sm:$0xff]
        %v2970 = vld [vmem:[%s2812 + $0x111] sm:$0xff]
        %v2971 = vld [vmem:[%s2812 + $0x121] sm:$0xff]
        %v2972 = vld [vmem:[%s2812 + $0x129] sm:$0xff]
        %v2973 = vld [vmem:[%s2812 + $0x139] sm:$0xff]
        %v2974 = vld [vmem:[%s2812 + $0x141] sm:$0xff]
        %v2975 = vld [vmem:[%s2812 + $0x151] sm:$0xff]
        %v2976 = vld [vmem:[%s2812 + $0x159] sm:$0xff]
        %v2977 = vld [vmem:[%s2812 + $0x169] sm:$0xff]
        %v2978 = vld [vmem:[%s2812 + $0x171] sm:$0xff]
        %v2979 = vmax.f32 %v2947, 0.0
        %v2980 = vmax.f32 %v2948, 0.0
        %v2981 = vmax.f32 %v2949, 0.0
        %v2982 = vmax.f32 %v2950, 0.0
        %v2983 = vmax.f32 %v2951, 0.0
        %v2984 = vmax.f32 %v2952, 0.0
        %v2985 = vmax.f32 %v2953, 0.0
        %v2986 = vmax.f32 %v2954, 0.0
        %v2987 = vmax.f32 %v2955, 0.0
        %v2988 = vmax.f32 %v2956, 0.0
        %v2989 = vmax.f32 %v2957, 0.0
        %v2990 = vmax.f32 %v2958, 0.0
        %v2991 = vmax.f32 %v2959, 0.0
        %v2992 = vmax.f32 %v2960, 0.0
        %v2993 = vmax.f32 %v2961, 0.0
        %v2994 = vmax.f32 %v2962, 0.0
        %v2995 = vmax.f32 %v2963, 0.0
        %v2996 = vmax.f32 %v2964, 0.0
        %v2997 = vmax.f32 %v2965, 0.0
        %v2998 = vmax.f32 %v2966, 0.0
        %v2999 = vmax.f32 %v2967, 0.0
        %v3000 = vmax.f32 %v2968, 0.0
        %v3001 = vmax.f32 %v2969, 0.0
        %v3002 = vmax.f32 %v2970, 0.0
        %v3003 = vmax.f32 %v2971, 0.0
        %v3004 = vmax.f32 %v2972, 0.0
        %v3005 = vmax.f32 %v2973, 0.0
        %v3006 = vmax.f32 %v2974, 0.0
        %v3007 = vmax.f32 %v2975, 0.0
        %v3008 = vmax.f32 %v2976, 0.0
        %v3009 = vmax.f32 %v2977, 0.0
        %v3010 = vmax.f32 %v2978, 0.0
        %v3011 = vld [vmem:[%s2877 + $0x1] sm:$0x1]
        %v3012 = vlaneseq
        %v3013 = vshrl.u32 %v3012, 7
        %v3014 = vsub.s32 0, %v3013
        %v3015 = vrot.slane %v3011, %v3014
        %v3016 = vmul.f32 %v2979, %v3015
        %v3017 = vmul.f32 %v2980, %v3015
        %v3018 = vmul.f32 %v2981, %v3015
        %v3019 = vmul.f32 %v2982, %v3015
        %v3020 = vmul.f32 %v2983, %v3015
        %v3021 = vmul.f32 %v2984, %v3015
        %v3022 = vmul.f32 %v2985, %v3015
        %v3023 = vmul.f32 %v2986, %v3015
        %v3024 = vmul.f32 %v2987, %v3015
        %v3025 = vmul.f32 %v2988, %v3015
        %v3026 = vmul.f32 %v2989, %v3015
        %v3027 = vmul.f32 %v2990, %v3015
        %v3028 = vmul.f32 %v2991, %v3015
        %v3029 = vmul.f32 %v2992, %v3015
        %v3030 = vmul.f32 %v2993, %v3015
        %v3031 = vmul.f32 %v2994, %v3015
        %v3032 = vmul.f32 %v2995, %v3015
        %v3033 = vmul.f32 %v2996, %v3015
        %v3034 = vmul.f32 %v2997, %v3015
        %v3035 = vmul.f32 %v2998, %v3015
        %v3036 = vmul.f32 %v2999, %v3015
        %v3037 = vmul.f32 %v3000, %v3015
        %v3038 = vmul.f32 %v3001, %v3015
        %v3039 = vmul.f32 %v3002, %v3015
        %v3040 = vmul.f32 %v3003, %v3015
        %v3041 = vmul.f32 %v3004, %v3015
        %v3042 = vmul.f32 %v3005, %v3015
        %v3043 = vmul.f32 %v3006, %v3015
        %v3044 = vmul.f32 %v3007, %v3015
        %v3045 = vmul.f32 %v3008, %v3015
        %v3046 = vmul.f32 %v3009, %v3015
        %v3047 = vmul.f32 %v3010, %v3015
        %v3048 = vadd.f32 %v2915, %v3016
        %v3049 = vadd.f32 %v2916, %v3017
        %v3050 = vadd.f32 %v2917, %v3018
        %v3051 = vadd.f32 %v2918, %v3019
        %v3052 = vadd.f32 %v2919, %v3020
        %v3053 = vadd.f32 %v2920, %v3021
        %v3054 = vadd.f32 %v2921, %v3022
        %v3055 = vadd.f32 %v2922, %v3023
        %v3056 = vadd.f32 %v2923, %v3024
        %v3057 = vadd.f32 %v2924, %v3025
        %v3058 = vadd.f32 %v2925, %v3026
        %v3059 = vadd.f32 %v2926, %v3027
        %v3060 = vadd.f32 %v2927, %v3028
        %v3061 = vadd.f32 %v2928, %v3029
        %v3062 = vadd.f32 %v2929, %v3030
        %v3063 = vadd.f32 %v2930, %v3031
        %v3064 = vadd.f32 %v2931, %v3032
        %v3065 = vadd.f32 %v2932, %v3033
        %v3066 = vadd.f32 %v2933, %v3034
        %v3067 = vadd.f32 %v2934, %v3035
        %v3068 = vadd.f32 %v2935, %v3036
        %v3069 = vadd.f32 %v2936, %v3037
        %v3070 = vadd.f32 %v2937, %v3038
        %v3071 = vadd.f32 %v2938, %v3039
        %v3072 = vadd.f32 %v2939, %v3040
        %v3073 = vadd.f32 %v2940, %v3041
        %v3074 = vadd.f32 %v2941, %v3042
        %v3075 = vadd.f32 %v2942, %v3043
        %v3076 = vadd.f32 %v2943, %v3044
        %v3077 = vadd.f32 %v2944, %v3045
        %v3078 = vadd.f32 %v2945, %v3046
        %v3079 = vadd.f32 %v2946, %v3047
        %v3080 = vld [vmem:[%s2812 + $0x2] sm:$0xff]
        %v3081 = vld [vmem:[%s2812 + $0xa] sm:$0xff]
        %v3082 = vld [vmem:[%s2812 + $0x1a] sm:$0xff]
        %v3083 = vld [vmem:[%s2812 + $0x22] sm:$0xff]
        %v3084 = vld [vmem:[%s2812 + $0x32] sm:$0xff]
        %v3085 = vld [vmem:[%s2812 + $0x3a] sm:$0xff]
        %v3086 = vld [vmem:[%s2812 + $0x4a] sm:$0xff]
        %v3087 = vld [vmem:[%s2812 + $0x52] sm:$0xff]
        %v3088 = vld [vmem:[%s2812 + $0x62] sm:$0xff]
        %v3089 = vld [vmem:[%s2812 + $0x6a] sm:$0xff]
        %v3090 = vld [vmem:[%s2812 + $0x7a] sm:$0xff]
        %v3091 = vld [vmem:[%s2812 + $0x82] sm:$0xff]
        %v3092 = vld [vmem:[%s2812 + $0x92] sm:$0xff]
        %v3093 = vld [vmem:[%s2812 + $0x9a] sm:$0xff]
        %v3094 = vld [vmem:[%s2812 + $0xaa] sm:$0xff]
        %v3095 = vld [vmem:[%s2812 + $0xb2] sm:$0xff]
        %v3096 = vld [vmem:[%s2812 + $0xc2] sm:$0xff]
        %v3097 = vld [vmem:[%s2812 + $0xca] sm:$0xff]
        %v3098 = vld [vmem:[%s2812 + $0xda] sm:$0xff]
        %v3099 = vld [vmem:[%s2812 + $0xe2] sm:$0xff]
        %v3100 = vld [vmem:[%s2812 + $0xf2] sm:$0xff]
        %v3101 = vld [vmem:[%s2812 + $0xfa] sm:$0xff]
        %v3102 = vld [vmem:[%s2812 + $0x10a] sm:$0xff]
        %v3103 = vld [vmem:[%s2812 + $0x112] sm:$0xff]
        %v3104 = vld [vmem:[%s2812 + $0x122] sm:$0xff]
        %v3105 = vld [vmem:[%s2812 + $0x12a] sm:$0xff]
        %v3106 = vld [vmem:[%s2812 + $0x13a] sm:$0xff]
        %v3107 = vld [vmem:[%s2812 + $0x142] sm:$0xff]
        %v3108 = vld [vmem:[%s2812 + $0x152] sm:$0xff]
        %v3109 = vld [vmem:[%s2812 + $0x15a] sm:$0xff]
        %v3110 = vld [vmem:[%s2812 + $0x16a] sm:$0xff]
        %v3111 = vld [vmem:[%s2812 + $0x172] sm:$0xff]
        %v3112 = vmax.f32 %v3080, 0.0
        %v3113 = vmax.f32 %v3081, 0.0
        %v3114 = vmax.f32 %v3082, 0.0
        %v3115 = vmax.f32 %v3083, 0.0
        %v3116 = vmax.f32 %v3084, 0.0
        %v3117 = vmax.f32 %v3085, 0.0
        %v3118 = vmax.f32 %v3086, 0.0
        %v3119 = vmax.f32 %v3087, 0.0
        %v3120 = vmax.f32 %v3088, 0.0
        %v3121 = vmax.f32 %v3089, 0.0
        %v3122 = vmax.f32 %v3090, 0.0
        %v3123 = vmax.f32 %v3091, 0.0
        %v3124 = vmax.f32 %v3092, 0.0
        %v3125 = vmax.f32 %v3093, 0.0
        %v3126 = vmax.f32 %v3094, 0.0
        %v3127 = vmax.f32 %v3095, 0.0
        %v3128 = vmax.f32 %v3096, 0.0
        %v3129 = vmax.f32 %v3097, 0.0
        %v3130 = vmax.f32 %v3098, 0.0
        %v3131 = vmax.f32 %v3099, 0.0
        %v3132 = vmax.f32 %v3100, 0.0
        %v3133 = vmax.f32 %v3101, 0.0
        %v3134 = vmax.f32 %v3102, 0.0
        %v3135 = vmax.f32 %v3103, 0.0
        %v3136 = vmax.f32 %v3104, 0.0
        %v3137 = vmax.f32 %v3105, 0.0
        %v3138 = vmax.f32 %v3106, 0.0
        %v3139 = vmax.f32 %v3107, 0.0
        %v3140 = vmax.f32 %v3108, 0.0
        %v3141 = vmax.f32 %v3109, 0.0
        %v3142 = vmax.f32 %v3110, 0.0
        %v3143 = vmax.f32 %v3111, 0.0
        %v3144 = vld [vmem:[%s2877 + $0x2] sm:$0x1]
        %v3145 = vlaneseq
        %v3146 = vshrl.u32 %v3145, 7
        %v3147 = vsub.s32 0, %v3146
        %v3148 = vrot.slane %v3144, %v3147
        %v3149 = vmul.f32 %v3112, %v3148
        %v3150 = vmul.f32 %v3113, %v3148
        %v3151 = vmul.f32 %v3114, %v3148
        %v3152 = vmul.f32 %v3115, %v3148
        %v3153 = vmul.f32 %v3116, %v3148
        %v3154 = vmul.f32 %v3117, %v3148
        %v3155 = vmul.f32 %v3118, %v3148
        %v3156 = vmul.f32 %v3119, %v3148
        %v3157 = vmul.f32 %v3120, %v3148
        %v3158 = vmul.f32 %v3121, %v3148
        %v3159 = vmul.f32 %v3122, %v3148
        %v3160 = vmul.f32 %v3123, %v3148
        %v3161 = vmul.f32 %v3124, %v3148
        %v3162 = vmul.f32 %v3125, %v3148
        %v3163 = vmul.f32 %v3126, %v3148
        %v3164 = vmul.f32 %v3127, %v3148
        %v3165 = vmul.f32 %v3128, %v3148
        %v3166 = vmul.f32 %v3129, %v3148
        %v3167 = vmul.f32 %v3130, %v3148
        %v3168 = vmul.f32 %v3131, %v3148
        %v3169 = vmul.f32 %v3132, %v3148
        %v3170 = vmul.f32 %v3133, %v3148
        %v3171 = vmul.f32 %v3134, %v3148
        %v3172 = vmul.f32 %v3135, %v3148
        %v3173 = vmul.f32 %v3136, %v3148
        %v3174 = vmul.f32 %v3137, %v3148
        %v3175 = vmul.f32 %v3138, %v3148
        %v3176 = vmul.f32 %v3139, %v3148
        %v3177 = vmul.f32 %v3140, %v3148
        %v3178 = vmul.f32 %v3141, %v3148
        %v3179 = vmul.f32 %v3142, %v3148
        %v3180 = vmul.f32 %v3143, %v3148
        %v3181 = vadd.f32 %v3048, %v3149
        %v3182 = vadd.f32 %v3049, %v3150
        %v3183 = vadd.f32 %v3050, %v3151
        %v3184 = vadd.f32 %v3051, %v3152
        %v3185 = vadd.f32 %v3052, %v3153
        %v3186 = vadd.f32 %v3053, %v3154
        %v3187 = vadd.f32 %v3054, %v3155
        %v3188 = vadd.f32 %v3055, %v3156
        %v3189 = vadd.f32 %v3056, %v3157
        %v3190 = vadd.f32 %v3057, %v3158
        %v3191 = vadd.f32 %v3058, %v3159
        %v3192 = vadd.f32 %v3059, %v3160
        %v3193 = vadd.f32 %v3060, %v3161
        %v3194 = vadd.f32 %v3061, %v3162
        %v3195 = vadd.f32 %v3062, %v3163
        %v3196 = vadd.f32 %v3063, %v3164
        %v3197 = vadd.f32 %v3064, %v3165
        %v3198 = vadd.f32 %v3065, %v3166
        %v3199 = vadd.f32 %v3066, %v3167
        %v3200 = vadd.f32 %v3067, %v3168
        %v3201 = vadd.f32 %v3068, %v3169
        %v3202 = vadd.f32 %v3069, %v3170
        %v3203 = vadd.f32 %v3070, %v3171
        %v3204 = vadd.f32 %v3071, %v3172
        %v3205 = vadd.f32 %v3072, %v3173
        %v3206 = vadd.f32 %v3073, %v3174
        %v3207 = vadd.f32 %v3074, %v3175
        %v3208 = vadd.f32 %v3075, %v3176
        %v3209 = vadd.f32 %v3076, %v3177
        %v3210 = vadd.f32 %v3077, %v3178
        %v3211 = vadd.f32 %v3078, %v3179
        %v3212 = vadd.f32 %v3079, %v3180
        %v3213 = vpack.c.bf16 %v3182, %v3181
        %v3214 = vpack.c.bf16 %v3184, %v3183
        %v3215 = vpack.c.bf16 %v3186, %v3185
        %v3216 = vpack.c.bf16 %v3188, %v3187
        %v3217 = vpack.c.bf16 %v3190, %v3189
        %v3218 = vpack.c.bf16 %v3192, %v3191
        %v3219 = vpack.c.bf16 %v3194, %v3193
        %v3220 = vpack.c.bf16 %v3196, %v3195
        %v3221 = vpack.c.bf16 %v3198, %v3197
        %v3222 = vpack.c.bf16 %v3200, %v3199
        %v3223 = vpack.c.bf16 %v3202, %v3201
        %v3224 = vpack.c.bf16 %v3204, %v3203
        %v3225 = vpack.c.bf16 %v3206, %v3205
        %v3226 = vpack.c.bf16 %v3208, %v3207
        %v3227 = vpack.c.bf16 %v3210, %v3209
        %v3228 = vpack.c.bf16 %v3212, %v3211
        %v3229 = vld [vmem:[#allocation13] sm:$0xf]
        %v3230 = vld [vmem:[#allocation13 + $0x4] sm:$0xf]
        %v3231 = vld [vmem:[#allocation13 + $0x8] sm:$0xf]
        %v3232 = vld [vmem:[#allocation13 + $0xc] sm:$0xf]
        %v3233 = vld [vmem:[#allocation13 + $0x10] sm:$0xf]
        %v3234 = vld [vmem:[#allocation13 + $0x14] sm:$0xf]
        %v3235 = vld [vmem:[#allocation13 + $0x18] sm:$0xf]
        %v3236 = vld [vmem:[#allocation13 + $0x1c] sm:$0xf]
        %v3237 = vld [vmem:[#allocation13 + $0x20] sm:$0xf]
        %v3238 = vld [vmem:[#allocation13 + $0x24] sm:$0xf]
        %v3239 = vld [vmem:[#allocation13 + $0x28] sm:$0xf]
        %v3240 = vld [vmem:[#allocation13 + $0x2c] sm:$0xf]
        %v3241 = vld [vmem:[#allocation13 + $0x30] sm:$0xf]
        %v3242 = vld [vmem:[#allocation13 + $0x34] sm:$0xf]
        %v3243 = vld [vmem:[#allocation13 + $0x38] sm:$0xf]
        %v3244 = vld [vmem:[#allocation13 + $0x3c] sm:$0xf]
        %v3245 = vld [vmem:[#allocation15] sm:$0x1]
        %v3247 = vlaneseq
        %v3248 = vshrl.u32 %v3247, 7
        %v3249 = vsub.s32 0, %v3248
        %v3250 = vrot.slane %v3245, %v3249
        %v3268 = vunpack.c.l.b16 %v3229
        %v3269 = vunpack.c.l.b16 %v3230
        %v3270 = vunpack.c.l.b16 %v3231
        %v3271 = vunpack.c.l.b16 %v3232
        %v3272 = vunpack.c.l.b16 %v3233
        %v3273 = vunpack.c.l.b16 %v3234
        %v3274 = vunpack.c.l.b16 %v3235
        %v3275 = vunpack.c.l.b16 %v3236
        %v3276 = vunpack.c.l.b16 %v3237
        %v3277 = vunpack.c.l.b16 %v3238
        %v3278 = vunpack.c.l.b16 %v3239
        %v3279 = vunpack.c.l.b16 %v3240
        %v3280 = vunpack.c.l.b16 %v3241
        %v3281 = vunpack.c.l.b16 %v3242
        %v3282 = vunpack.c.l.b16 %v3243
        %v3283 = vunpack.c.l.b16 %v3244
        %v3284 = vpack.c.b16 %v3269, %v3268
        %v3285 = vpack.c.b16 %v3271, %v3270
        %v3286 = vpack.c.b16 %v3273, %v3272
        %v3287 = vpack.c.b16 %v3275, %v3274
        %v3288 = vpack.c.b16 %v3277, %v3276
        %v3289 = vpack.c.b16 %v3279, %v3278
        %v3290 = vpack.c.b16 %v3281, %v3280
        %v3291 = vpack.c.b16 %v3283, %v3282
        %3300 = vmatprep.subr.bf16.mxu0 0
        %3301 = vmatpush1.bf16.msra.mxu0 %v3291
        %3302 = vmatprep.subr.bf16.mxu0 0
        %3303 = vmatpush1.bf16.msra.mxu0 %v3290
        %3304 = vmatprep.subr.bf16.mxu0 0
        %3305 = vmatpush1.bf16.msra.mxu0 %v3289
        %3306 = vmatprep.subr.bf16.mxu0 0
        %3307 = vmatpush1.bf16.msra.mxu0 %v3288
        %3308 = vmatprep.subr.bf16.mxu0 0
        %3309 = vmatpush1.bf16.msra.mxu0 %v3287
        %3310 = vmatprep.subr.bf16.mxu0 0
        %3311 = vmatpush1.bf16.msra.mxu0 %v3286
        %3312 = vmatprep.subr.bf16.mxu0 0
        %3313 = vmatpush1.bf16.msra.mxu0 %v3285
        %3314 = vmatprep.subr.bf16.mxu0 0
        %3315 = vmatpush1.bf16.msra.mxu0 %v3284
        %3316 = vmatprep.subr.bf16.mxu0 0
        %3317 = vmatpush2.bf16.msra.mxu0 0
        %3318 = vmatprep.subr.bf16.mxu0 0
        %3319 = vmatpush2.bf16.msra.mxu0 0
        %3320 = vmatprep.subr.bf16.mxu0 0
        %3321 = vmatpush2.bf16.msra.mxu0 0
        %3322 = vmatprep.subr.bf16.mxu0 0
        %3323 = vmatpush2.bf16.msra.mxu0 0
        %3324 = vmatprep.subr.bf16.mxu0 0
        %3325 = vmatpush2.bf16.msra.mxu0 0
        %3326 = vmatprep.subr.bf16.mxu0 0
        %3327 = vmatpush2.bf16.msra.mxu0 0
        %3328 = vmatprep.subr.bf16.mxu0 0
        %3329 = vmatpush2.bf16.msra.mxu0 0
        %3330 = vmatprep.subr.bf16.mxu0 0
        %3331 = vmatpush2.bf16.msra.mxu0 0
        %3332 = vmatprep.mubr.bf16.mxu0 0
        %3333 = vmatmul.mubr.bf16.gmra.mxu0 %v3213
        %v3334 = vpop.f32.mrf.mxu0
        %v3335 = vadd.f32 %v3250, %v3334
        %v3336 = vpop.f32.mrf.mxu0
        %v3337 = vpop.f32.mrf.mxu0
        %v3338 = vadd.f32 %v3250, %v3337
        %v3339 = vpop.f32.mrf.mxu0
        %3340 = vmatprep.mubr.bf16.mxu0 0
        %3341 = vmatmul.mubr.bf16.gmra.mxu0 %v3214
        %v3342 = vpop.f32.mrf.mxu0
        %v3343 = vadd.f32 %v3250, %v3342
        %v3344 = vpop.f32.mrf.mxu0
        %v3345 = vpop.f32.mrf.mxu0
        %v3346 = vadd.f32 %v3250, %v3345
        %v3347 = vpop.f32.mrf.mxu0
        %3348 = vmatprep.mubr.bf16.mxu0 0
        %3349 = vmatmul.mubr.bf16.gmra.mxu0 %v3215
        %v3350 = vpop.f32.mrf.mxu0
        %v3351 = vadd.f32 %v3250, %v3350
        %v3352 = vpop.f32.mrf.mxu0
        %v3353 = vpop.f32.mrf.mxu0
        %v3354 = vadd.f32 %v3250, %v3353
        %v3355 = vpop.f32.mrf.mxu0
        %3356 = vmatprep.mubr.bf16.mxu0 0
        %3357 = vmatmul.mubr.bf16.gmra.mxu0 %v3216
        %v3358 = vpop.f32.mrf.mxu0
        %v3359 = vadd.f32 %v3250, %v3358
        %v3360 = vpop.f32.mrf.mxu0
        %v3361 = vpop.f32.mrf.mxu0
        %v3362 = vadd.f32 %v3250, %v3361
        %v3363 = vpop.f32.mrf.mxu0
        %3364 = vmatprep.mubr.bf16.mxu0 0
        %3365 = vmatmul.mubr.bf16.gmra.mxu0 %v3217
        %v3366 = vpop.f32.mrf.mxu0
        %v3367 = vadd.f32 %v3250, %v3366
        %v3368 = vpop.f32.mrf.mxu0
        %v3369 = vpop.f32.mrf.mxu0
        %v3370 = vadd.f32 %v3250, %v3369
        %v3371 = vpop.f32.mrf.mxu0
        %3372 = vmatprep.mubr.bf16.mxu0 0
        %3373 = vmatmul.mubr.bf16.gmra.mxu0 %v3218
        %v3374 = vpop.f32.mrf.mxu0
        %v3375 = vadd.f32 %v3250, %v3374
        %v3376 = vpop.f32.mrf.mxu0
        %v3377 = vpop.f32.mrf.mxu0
        %v3378 = vadd.f32 %v3250, %v3377
        %v3379 = vpop.f32.mrf.mxu0
        %3380 = vmatprep.mubr.bf16.mxu0 0
        %3381 = vmatmul.mubr.bf16.gmra.mxu0 %v3219
        %v3382 = vpop.f32.mrf.mxu0
        %v3383 = vadd.f32 %v3250, %v3382
        %v3384 = vpop.f32.mrf.mxu0
        %v3385 = vpop.f32.mrf.mxu0
        %v3386 = vadd.f32 %v3250, %v3385
        %v3387 = vpop.f32.mrf.mxu0
        %3388 = vmatprep.mubr.bf16.mxu0 0
        %3389 = vmatmul.mubr.bf16.gmra.mxu0 %v3220
        %v3390 = vpop.f32.mrf.mxu0
        %v3391 = vadd.f32 %v3250, %v3390
        %v3392 = vpop.f32.mrf.mxu0
        %v3393 = vpop.f32.mrf.mxu0
        %v3394 = vadd.f32 %v3250, %v3393
        %v3395 = vpop.f32.mrf.mxu0
        %3396 = vmatprep.mubr.bf16.mxu0 0
        %3397 = vmatmul.mubr.bf16.gmra.mxu0 %v3221
        %v3398 = vpop.f32.mrf.mxu0
        %v3399 = vadd.f32 %v3250, %v3398
        %v3400 = vpop.f32.mrf.mxu0
        %v3401 = vpop.f32.mrf.mxu0
        %v3402 = vadd.f32 %v3250, %v3401
        %v3403 = vpop.f32.mrf.mxu0
        %3404 = vmatprep.mubr.bf16.mxu0 0
        %3405 = vmatmul.mubr.bf16.gmra.mxu0 %v3222
        %v3406 = vpop.f32.mrf.mxu0
        %v3407 = vadd.f32 %v3250, %v3406
        %v3408 = vpop.f32.mrf.mxu0
        %v3409 = vpop.f32.mrf.mxu0
        %v3410 = vadd.f32 %v3250, %v3409
        %v3411 = vpop.f32.mrf.mxu0
        %3412 = vmatprep.mubr.bf16.mxu0 0
        %3413 = vmatmul.mubr.bf16.gmra.mxu0 %v3223
        %v3414 = vpop.f32.mrf.mxu0
        %v3415 = vadd.f32 %v3250, %v3414
        %v3416 = vpop.f32.mrf.mxu0
        %v3417 = vpop.f32.mrf.mxu0
        %v3418 = vadd.f32 %v3250, %v3417
        %v3419 = vpop.f32.mrf.mxu0
        %3420 = vmatprep.mubr.bf16.mxu0 0
        %3421 = vmatmul.mubr.bf16.gmra.mxu0 %v3224
        %v3422 = vpop.f32.mrf.mxu0
        %v3423 = vadd.f32 %v3250, %v3422
        %v3424 = vpop.f32.mrf.mxu0
        %v3425 = vpop.f32.mrf.mxu0
        %v3426 = vadd.f32 %v3250, %v3425
        %v3427 = vpop.f32.mrf.mxu0
        %3428 = vmatprep.mubr.bf16.mxu0 0
        %3429 = vmatmul.mubr.bf16.gmra.mxu0 %v3225
        %v3430 = vpop.f32.mrf.mxu0
        %v3431 = vadd.f32 %v3250, %v3430
        %v3432 = vpop.f32.mrf.mxu0
        %v3433 = vpop.f32.mrf.mxu0
        %v3434 = vadd.f32 %v3250, %v3433
        %v3435 = vpop.f32.mrf.mxu0
        %3436 = vmatprep.mubr.bf16.mxu0 0
        %3437 = vmatmul.mubr.bf16.gmra.mxu0 %v3226
        %v3438 = vpop.f32.mrf.mxu0
        %v3439 = vadd.f32 %v3250, %v3438
        %v3440 = vpop.f32.mrf.mxu0
        %v3441 = vpop.f32.mrf.mxu0
        %v3442 = vadd.f32 %v3250, %v3441
        %v3443 = vpop.f32.mrf.mxu0
        %3444 = vmatprep.mubr.bf16.mxu0 0
        %3445 = vmatmul.mubr.bf16.gmra.mxu0 %v3227
        %v3446 = vpop.f32.mrf.mxu0
        %v3447 = vadd.f32 %v3250, %v3446
        %v3448 = vpop.f32.mrf.mxu0
        %v3449 = vpop.f32.mrf.mxu0
        %v3450 = vadd.f32 %v3250, %v3449
        %v3451 = vpop.f32.mrf.mxu0
        %3452 = vmatprep.mubr.bf16.mxu0 0
        %3453 = vmatmul.mubr.bf16.gmra.mxu0 %v3228
        %v3454 = vpop.f32.mrf.mxu0
        %v3455 = vadd.f32 %v3250, %v3454
        %v3456 = vpop.f32.mrf.mxu0
        %v3457 = vpop.f32.mrf.mxu0
        %v3458 = vadd.f32 %v3250, %v3457
        %v3459 = vpop.f32.mrf.mxu0
        %3460 = vdwg.mxu0
        %3461 = vst [vmem:[#allocation3] sm:$0xff] 0.0
        %3462 = vst [vmem:[#allocation3 + $0x8] sm:$0xff] 0.0
        %3463 = vst [vmem:[#allocation3 + $0x10] sm:$0xff] 0.0
        %3464 = vst [vmem:[#allocation3 + $0x18] sm:$0xff] 0.0
        %3465 = vst [vmem:[#allocation3 + $0x20] sm:$0xff] 0.0
        %3466 = vst [vmem:[#allocation3 + $0x28] sm:$0xff] 0.0
        %3467 = vst [vmem:[#allocation3 + $0x30] sm:$0xff] 0.0
        %3468 = vst [vmem:[#allocation3 + $0x38] sm:$0xff] 0.0
        %3469 = vst [vmem:[#allocation3 + $0x40] sm:$0xff] 0.0
        %3470 = vst [vmem:[#allocation3 + $0x48] sm:$0xff] 0.0
        %3471 = vst [vmem:[#allocation3 + $0x50] sm:$0xff] 0.0
        %3472 = vst [vmem:[#allocation3 + $0x58] sm:$0xff] 0.0
        %3473 = vst [vmem:[#allocation3 + $0x60] sm:$0xff] 0.0
        %3474 = vst [vmem:[#allocation3 + $0x68] sm:$0xff] 0.0
        %3475 = vst [vmem:[#allocation3 + $0x70] sm:$0xff] 0.0
        %3476 = vst [vmem:[#allocation3 + $0x78] sm:$0xff] 0.0
        %3477 = vst [vmem:[#allocation3 + $0x80] sm:$0xff] 0.0
        %3478 = vst [vmem:[#allocation3 + $0x88] sm:$0xff] 0.0
        %3479 = vst [vmem:[#allocation3 + $0x90] sm:$0xff] 0.0
        %3480 = vst [vmem:[#allocation3 + $0x98] sm:$0xff] 0.0
        %3481 = vst [vmem:[#allocation3 + $0xa0] sm:$0xff] 0.0
        %3482 = vst [vmem:[#allocation3 + $0xa8] sm:$0xff] 0.0
        %3483 = vst [vmem:[#allocation3 + $0xb0] sm:$0xff] 0.0
        %3484 = vst [vmem:[#allocation3 + $0xb8] sm:$0xff] 0.0
        %3485 = vst [vmem:[#allocation3 + $0xc0] sm:$0xff] 0.0
        %3486 = vst [vmem:[#allocation3 + $0xc8] sm:$0xff] 0.0
        %3487 = vst [vmem:[#allocation3 + $0xd0] sm:$0xff] 0.0
        %3488 = vst [vmem:[#allocation3 + $0xd8] sm:$0xff] 0.0
        %3489 = vst [vmem:[#allocation3 + $0xe0] sm:$0xff] 0.0
        %3490 = vst [vmem:[#allocation3 + $0xe8] sm:$0xff] 0.0
        %3491 = vst [vmem:[#allocation3 + $0xf0] sm:$0xff] 0.0
        %3492 = vst [vmem:[#allocation3 + $0xf8] sm:$0xff] 0.0
        %3493 = vst [vmem:[#allocation3 + $0x100] sm:$0xff] 0.0
        %3494 = vst [vmem:[#allocation3 + $0x108] sm:$0xff] 0.0
        %3495 = vst [vmem:[#allocation3 + $0x110] sm:$0xff] 0.0
        %3496 = vst [vmem:[#allocation3 + $0x118] sm:$0xff] 0.0
        %3497 = vst [vmem:[#allocation3 + $0x120] sm:$0xff] 0.0
        %3498 = vst [vmem:[#allocation3 + $0x128] sm:$0xff] 0.0
        %3499 = vst [vmem:[#allocation3 + $0x130] sm:$0xff] 0.0
        %3500 = vst [vmem:[#allocation3 + $0x138] sm:$0xff] 0.0
        %3501 = vst [vmem:[#allocation3 + $0x140] sm:$0xff] 0.0
        %3502 = vst [vmem:[#allocation3 + $0x148] sm:$0xff] 0.0
        %3503 = vst [vmem:[#allocation3 + $0x150] sm:$0xff] 0.0
        %3504 = vst [vmem:[#allocation3 + $0x158] sm:$0xff] 0.0
        %3505 = vst [vmem:[#allocation3 + $0x160] sm:$0xff] 0.0
        %3506 = vst [vmem:[#allocation3 + $0x168] sm:$0xff] 0.0
        %3507 = vst [vmem:[#allocation3 + $0x170] sm:$0xff] 0.0
        %3508 = vst [vmem:[#allocation3 + $0x178] sm:$0xff] 0.0
        %3509 = vst [vmem:[#allocation3 + $0x180] sm:$0xff] 0.0
        %3510 = vst [vmem:[#allocation3 + $0x188] sm:$0xff] 0.0
        %3511 = vst [vmem:[#allocation3 + $0x190] sm:$0xff] 0.0
        %3512 = vst [vmem:[#allocation3 + $0x198] sm:$0xff] 0.0
        %3513 = vst [vmem:[#allocation3 + $0x1a0] sm:$0xff] 0.0
        %3514 = vst [vmem:[#allocation3 + $0x1a8] sm:$0xff] 0.0
        %s3515 = scalar_lea.vmem [#allocation3], 24
        %3516 = vst [vmem:[%s3515 + $0x1] sm:$0xff] %v3335
        %3517 = vst [vmem:[%s3515 + $0x9] sm:$0xff] %v3338
        %3518 = vst [vmem:[%s3515 + $0x19] sm:$0xff] %v3343
        %3519 = vst [vmem:[%s3515 + $0x21] sm:$0xff] %v3346
        %3520 = vst [vmem:[%s3515 + $0x31] sm:$0xff] %v3351
        %3521 = vst [vmem:[%s3515 + $0x39] sm:$0xff] %v3354
        %3522 = vst [vmem:[%s3515 + $0x49] sm:$0xff] %v3359
        %3523 = vst [vmem:[%s3515 + $0x51] sm:$0xff] %v3362
        %3524 = vst [vmem:[%s3515 + $0x61] sm:$0xff] %v3367
        %3525 = vst [vmem:[%s3515 + $0x69] sm:$0xff] %v3370
        %3526 = vst [vmem:[%s3515 + $0x79] sm:$0xff] %v3375
        %3527 = vst [vmem:[%s3515 + $0x81] sm:$0xff] %v3378
        %3528 = vst [vmem:[%s3515 + $0x91] sm:$0xff] %v3383
        %3529 = vst [vmem:[%s3515 + $0x99] sm:$0xff] %v3386
        %3530 = vst [vmem:[%s3515 + $0xa9] sm:$0xff] %v3391
        %3531 = vst [vmem:[%s3515 + $0xb1] sm:$0xff] %v3394
        %3532 = vst [vmem:[%s3515 + $0xc1] sm:$0xff] %v3399
        %3533 = vst [vmem:[%s3515 + $0xc9] sm:$0xff] %v3402
        %3534 = vst [vmem:[%s3515 + $0xd9] sm:$0xff] %v3407
        %3535 = vst [vmem:[%s3515 + $0xe1] sm:$0xff] %v3410
        %3536 = vst [vmem:[%s3515 + $0xf1] sm:$0xff] %v3415
        %3537 = vst [vmem:[%s3515 + $0xf9] sm:$0xff] %v3418
        %3538 = vst [vmem:[%s3515 + $0x109] sm:$0xff] %v3423
        %3539 = vst [vmem:[%s3515 + $0x111] sm:$0xff] %v3426
        %3540 = vst [vmem:[%s3515 + $0x121] sm:$0xff] %v3431
        %3541 = vst [vmem:[%s3515 + $0x129] sm:$0xff] %v3434
        %3542 = vst [vmem:[%s3515 + $0x139] sm:$0xff] %v3439
        %3543 = vst [vmem:[%s3515 + $0x141] sm:$0xff] %v3442
        %3544 = vst [vmem:[%s3515 + $0x151] sm:$0xff] %v3447
        %3545 = vst [vmem:[%s3515 + $0x159] sm:$0xff] %v3450
        %3546 = vst [vmem:[%s3515 + $0x169] sm:$0xff] %v3455
        %3547 = vst [vmem:[%s3515 + $0x171] sm:$0xff] %v3458
        %v3548 = vld [vmem:[#allocation3] sm:$0xff]
        %v3549 = vld [vmem:[#allocation3 + $0x8] sm:$0xff]
        %v3550 = vld [vmem:[#allocation3 + $0x18] sm:$0xff]
        %v3551 = vld [vmem:[#allocation3 + $0x20] sm:$0xff]
        %v3552 = vld [vmem:[#allocation3 + $0x30] sm:$0xff]
        %v3553 = vld [vmem:[#allocation3 + $0x38] sm:$0xff]
        %v3554 = vld [vmem:[#allocation3 + $0x48] sm:$0xff]
        %v3555 = vld [vmem:[#allocation3 + $0x50] sm:$0xff]
        %v3556 = vld [vmem:[#allocation3 + $0x60] sm:$0xff]
        %v3557 = vld [vmem:[#allocation3 + $0x68] sm:$0xff]
        %v3558 = vld [vmem:[#allocation3 + $0x78] sm:$0xff]
        %v3559 = vld [vmem:[#allocation3 + $0x80] sm:$0xff]
        %v3560 = vld [vmem:[#allocation3 + $0x90] sm:$0xff]
        %v3561 = vld [vmem:[#allocation3 + $0x98] sm:$0xff]
        %v3562 = vld [vmem:[#allocation3 + $0xa8] sm:$0xff]
        %v3563 = vld [vmem:[#allocation3 + $0xb0] sm:$0xff]
        %v3564 = vld [vmem:[#allocation3 + $0xc0] sm:$0xff]
        %v3565 = vld [vmem:[#allocation3 + $0xc8] sm:$0xff]
        %v3566 = vld [vmem:[#allocation3 + $0xd8] sm:$0xff]
        %v3567 = vld [vmem:[#allocation3 + $0xe0] sm:$0xff]
        %v3568 = vld [vmem:[#allocation3 + $0xf0] sm:$0xff]
        %v3569 = vld [vmem:[#allocation3 + $0xf8] sm:$0xff]
        %v3570 = vld [vmem:[#allocation3 + $0x108] sm:$0xff]
        %v3571 = vld [vmem:[#allocation3 + $0x110] sm:$0xff]
        %v3572 = vld [vmem:[#allocation3 + $0x120] sm:$0xff]
        %v3573 = vld [vmem:[#allocation3 + $0x128] sm:$0xff]
        %v3574 = vld [vmem:[#allocation3 + $0x138] sm:$0xff]
        %v3575 = vld [vmem:[#allocation3 + $0x140] sm:$0xff]
        %v3576 = vld [vmem:[#allocation3 + $0x150] sm:$0xff]
        %v3577 = vld [vmem:[#allocation3 + $0x158] sm:$0xff]
        %v3578 = vld [vmem:[#allocation3 + $0x168] sm:$0xff]
        %v3579 = vld [vmem:[#allocation3 + $0x170] sm:$0xff]
        %v3580 = vmax.f32 %v3548, 0.0
        %v3581 = vmax.f32 %v3549, 0.0
        %v3582 = vmax.f32 %v3550, 0.0
        %v3583 = vmax.f32 %v3551, 0.0
        %v3584 = vmax.f32 %v3552, 0.0
        %v3585 = vmax.f32 %v3553, 0.0
        %v3586 = vmax.f32 %v3554, 0.0
        %v3587 = vmax.f32 %v3555, 0.0
        %v3588 = vmax.f32 %v3556, 0.0
        %v3589 = vmax.f32 %v3557, 0.0
        %v3590 = vmax.f32 %v3558, 0.0
        %v3591 = vmax.f32 %v3559, 0.0
        %v3592 = vmax.f32 %v3560, 0.0
        %v3593 = vmax.f32 %v3561, 0.0
        %v3594 = vmax.f32 %v3562, 0.0
        %v3595 = vmax.f32 %v3563, 0.0
        %v3596 = vmax.f32 %v3564, 0.0
        %v3597 = vmax.f32 %v3565, 0.0
        %v3598 = vmax.f32 %v3566, 0.0
        %v3599 = vmax.f32 %v3567, 0.0
        %v3600 = vmax.f32 %v3568, 0.0
        %v3601 = vmax.f32 %v3569, 0.0
        %v3602 = vmax.f32 %v3570, 0.0
        %v3603 = vmax.f32 %v3571, 0.0
        %v3604 = vmax.f32 %v3572, 0.0
        %v3605 = vmax.f32 %v3573, 0.0
        %v3606 = vmax.f32 %v3574, 0.0
        %v3607 = vmax.f32 %v3575, 0.0
        %v3608 = vmax.f32 %v3576, 0.0
        %v3609 = vmax.f32 %v3577, 0.0
        %v3610 = vmax.f32 %v3578, 0.0
        %v3611 = vmax.f32 %v3579, 0.0
        %v3612 = vld [vmem:[%s7] sm:$0x1]
        %v3613 = vlaneseq
        %v3614 = vshrl.u32 %v3613, 7
        %v3615 = vsub.s32 0, %v3614
        %v3616 = vrot.slane %v3612, %v3615
        %v3617 = vmul.f32 %v3580, %v3616
        %v3618 = vmul.f32 %v3581, %v3616
        %v3619 = vmul.f32 %v3582, %v3616
        %v3620 = vmul.f32 %v3583, %v3616
        %v3621 = vmul.f32 %v3584, %v3616
        %v3622 = vmul.f32 %v3585, %v3616
        %v3623 = vmul.f32 %v3586, %v3616
        %v3624 = vmul.f32 %v3587, %v3616
        %v3625 = vmul.f32 %v3588, %v3616
        %v3626 = vmul.f32 %v3589, %v3616
        %v3627 = vmul.f32 %v3590, %v3616
        %v3628 = vmul.f32 %v3591, %v3616
        %v3629 = vmul.f32 %v3592, %v3616
        %v3630 = vmul.f32 %v3593, %v3616
        %v3631 = vmul.f32 %v3594, %v3616
        %v3632 = vmul.f32 %v3595, %v3616
        %v3633 = vmul.f32 %v3596, %v3616
        %v3634 = vmul.f32 %v3597, %v3616
        %v3635 = vmul.f32 %v3598, %v3616
        %v3636 = vmul.f32 %v3599, %v3616
        %v3637 = vmul.f32 %v3600, %v3616
        %v3638 = vmul.f32 %v3601, %v3616
        %v3639 = vmul.f32 %v3602, %v3616
        %v3640 = vmul.f32 %v3603, %v3616
        %v3641 = vmul.f32 %v3604, %v3616
        %v3642 = vmul.f32 %v3605, %v3616
        %v3643 = vmul.f32 %v3606, %v3616
        %v3644 = vmul.f32 %v3607, %v3616
        %v3645 = vmul.f32 %v3608, %v3616
        %v3646 = vmul.f32 %v3609, %v3616
        %v3647 = vmul.f32 %v3610, %v3616
        %v3648 = vmul.f32 %v3611, %v3616
        %v3649 = vadd.f32 %v3617, 0.0
        %v3650 = vadd.f32 %v3618, 0.0
        %v3651 = vadd.f32 %v3619, 0.0
        %v3652 = vadd.f32 %v3620, 0.0
        %v3653 = vadd.f32 %v3621, 0.0
        %v3654 = vadd.f32 %v3622, 0.0
        %v3655 = vadd.f32 %v3623, 0.0
        %v3656 = vadd.f32 %v3624, 0.0
        %v3657 = vadd.f32 %v3625, 0.0
        %v3658 = vadd.f32 %v3626, 0.0
        %v3659 = vadd.f32 %v3627, 0.0
        %v3660 = vadd.f32 %v3628, 0.0
        %v3661 = vadd.f32 %v3629, 0.0
        %v3662 = vadd.f32 %v3630, 0.0
        %v3663 = vadd.f32 %v3631, 0.0
        %v3664 = vadd.f32 %v3632, 0.0
        %v3665 = vadd.f32 %v3633, 0.0
        %v3666 = vadd.f32 %v3634, 0.0
        %v3667 = vadd.f32 %v3635, 0.0
        %v3668 = vadd.f32 %v3636, 0.0
        %v3669 = vadd.f32 %v3637, 0.0
        %v3670 = vadd.f32 %v3638, 0.0
        %v3671 = vadd.f32 %v3639, 0.0
        %v3672 = vadd.f32 %v3640, 0.0
        %v3673 = vadd.f32 %v3641, 0.0
        %v3674 = vadd.f32 %v3642, 0.0
        %v3675 = vadd.f32 %v3643, 0.0
        %v3676 = vadd.f32 %v3644, 0.0
        %v3677 = vadd.f32 %v3645, 0.0
        %v3678 = vadd.f32 %v3646, 0.0
        %v3679 = vadd.f32 %v3647, 0.0
        %v3680 = vadd.f32 %v3648, 0.0
        %v3681 = vld [vmem:[#allocation3 + $0x1] sm:$0xff]
        %v3682 = vld [vmem:[#allocation3 + $0x9] sm:$0xff]
        %v3683 = vld [vmem:[#allocation3 + $0x19] sm:$0xff]
        %v3684 = vld [vmem:[#allocation3 + $0x21] sm:$0xff]
        %v3685 = vld [vmem:[#allocation3 + $0x31] sm:$0xff]
        %v3686 = vld [vmem:[#allocation3 + $0x39] sm:$0xff]
        %v3687 = vld [vmem:[#allocation3 + $0x49] sm:$0xff]
        %v3688 = vld [vmem:[#allocation3 + $0x51] sm:$0xff]
        %v3689 = vld [vmem:[#allocation3 + $0x61] sm:$0xff]
        %v3690 = vld [vmem:[#allocation3 + $0x69] sm:$0xff]
        %v3691 = vld [vmem:[#allocation3 + $0x79] sm:$0xff]
        %v3692 = vld [vmem:[#allocation3 + $0x81] sm:$0xff]
        %v3693 = vld [vmem:[#allocation3 + $0x91] sm:$0xff]
        %v3694 = vld [vmem:[#allocation3 + $0x99] sm:$0xff]
        %v3695 = vld [vmem:[#allocation3 + $0xa9] sm:$0xff]
        %v3696 = vld [vmem:[#allocation3 + $0xb1] sm:$0xff]
        %v3697 = vld [vmem:[#allocation3 + $0xc1] sm:$0xff]
        %v3698 = vld [vmem:[#allocation3 + $0xc9] sm:$0xff]
        %v3699 = vld [vmem:[#allocation3 + $0xd9] sm:$0xff]
        %v3700 = vld [vmem:[#allocation3 + $0xe1] sm:$0xff]
        %v3701 = vld [vmem:[#allocation3 + $0xf1] sm:$0xff]
        %v3702 = vld [vmem:[#allocation3 + $0xf9] sm:$0xff]
        %v3703 = vld [vmem:[#allocation3 + $0x109] sm:$0xff]
        %v3704 = vld [vmem:[#allocation3 + $0x111] sm:$0xff]
        %v3705 = vld [vmem:[#allocation3 + $0x121] sm:$0xff]
        %v3706 = vld [vmem:[#allocation3 + $0x129] sm:$0xff]
        %v3707 = vld [vmem:[#allocation3 + $0x139] sm:$0xff]
        %v3708 = vld [vmem:[#allocation3 + $0x141] sm:$0xff]
        %v3709 = vld [vmem:[#allocation3 + $0x151] sm:$0xff]
        %v3710 = vld [vmem:[#allocation3 + $0x159] sm:$0xff]
        %v3711 = vld [vmem:[#allocation3 + $0x169] sm:$0xff]
        %v3712 = vld [vmem:[#allocation3 + $0x171] sm:$0xff]
        %v3713 = vmax.f32 %v3681, 0.0
        %v3714 = vmax.f32 %v3682, 0.0
        %v3715 = vmax.f32 %v3683, 0.0
        %v3716 = vmax.f32 %v3684, 0.0
        %v3717 = vmax.f32 %v3685, 0.0
        %v3718 = vmax.f32 %v3686, 0.0
        %v3719 = vmax.f32 %v3687, 0.0
        %v3720 = vmax.f32 %v3688, 0.0
        %v3721 = vmax.f32 %v3689, 0.0
        %v3722 = vmax.f32 %v3690, 0.0
        %v3723 = vmax.f32 %v3691, 0.0
        %v3724 = vmax.f32 %v3692, 0.0
        %v3725 = vmax.f32 %v3693, 0.0
        %v3726 = vmax.f32 %v3694, 0.0
        %v3727 = vmax.f32 %v3695, 0.0
        %v3728 = vmax.f32 %v3696, 0.0
        %v3729 = vmax.f32 %v3697, 0.0
        %v3730 = vmax.f32 %v3698, 0.0
        %v3731 = vmax.f32 %v3699, 0.0
        %v3732 = vmax.f32 %v3700, 0.0
        %v3733 = vmax.f32 %v3701, 0.0
        %v3734 = vmax.f32 %v3702, 0.0
        %v3735 = vmax.f32 %v3703, 0.0
        %v3736 = vmax.f32 %v3704, 0.0
        %v3737 = vmax.f32 %v3705, 0.0
        %v3738 = vmax.f32 %v3706, 0.0
        %v3739 = vmax.f32 %v3707, 0.0
        %v3740 = vmax.f32 %v3708, 0.0
        %v3741 = vmax.f32 %v3709, 0.0
        %v3742 = vmax.f32 %v3710, 0.0
        %v3743 = vmax.f32 %v3711, 0.0
        %v3744 = vmax.f32 %v3712, 0.0
        %v3745 = vld [vmem:[%s7 + $0x1] sm:$0x1]
        %v3746 = vlaneseq
        %v3747 = vshrl.u32 %v3746, 7
        %v3748 = vsub.s32 0, %v3747
        %v3749 = vrot.slane %v3745, %v3748
        %v3750 = vmul.f32 %v3713, %v3749
        %v3751 = vmul.f32 %v3714, %v3749
        %v3752 = vmul.f32 %v3715, %v3749
        %v3753 = vmul.f32 %v3716, %v3749
        %v3754 = vmul.f32 %v3717, %v3749
        %v3755 = vmul.f32 %v3718, %v3749
        %v3756 = vmul.f32 %v3719, %v3749
        %v3757 = vmul.f32 %v3720, %v3749
        %v3758 = vmul.f32 %v3721, %v3749
        %v3759 = vmul.f32 %v3722, %v3749
        %v3760 = vmul.f32 %v3723, %v3749
        %v3761 = vmul.f32 %v3724, %v3749
        %v3762 = vmul.f32 %v3725, %v3749
        %v3763 = vmul.f32 %v3726, %v3749
        %v3764 = vmul.f32 %v3727, %v3749
        %v3765 = vmul.f32 %v3728, %v3749
        %v3766 = vmul.f32 %v3729, %v3749
        %v3767 = vmul.f32 %v3730, %v3749
        %v3768 = vmul.f32 %v3731, %v3749
        %v3769 = vmul.f32 %v3732, %v3749
        %v3770 = vmul.f32 %v3733, %v3749
        %v3771 = vmul.f32 %v3734, %v3749
        %v3772 = vmul.f32 %v3735, %v3749
        %v3773 = vmul.f32 %v3736, %v3749
        %v3774 = vmul.f32 %v3737, %v3749
        %v3775 = vmul.f32 %v3738, %v3749
        %v3776 = vmul.f32 %v3739, %v3749
        %v3777 = vmul.f32 %v3740, %v3749
        %v3778 = vmul.f32 %v3741, %v3749
        %v3779 = vmul.f32 %v3742, %v3749
        %v3780 = vmul.f32 %v3743, %v3749
        %v3781 = vmul.f32 %v3744, %v3749
        %v3782 = vadd.f32 %v3649, %v3750
        %v3783 = vadd.f32 %v3650, %v3751
        %v3784 = vadd.f32 %v3651, %v3752
        %v3785 = vadd.f32 %v3652, %v3753
        %v3786 = vadd.f32 %v3653, %v3754
        %v3787 = vadd.f32 %v3654, %v3755
        %v3788 = vadd.f32 %v3655, %v3756
        %v3789 = vadd.f32 %v3656, %v3757
        %v3790 = vadd.f32 %v3657, %v3758
        %v3791 = vadd.f32 %v3658, %v3759
        %v3792 = vadd.f32 %v3659, %v3760
        %v3793 = vadd.f32 %v3660, %v3761
        %v3794 = vadd.f32 %v3661, %v3762
        %v3795 = vadd.f32 %v3662, %v3763
        %v3796 = vadd.f32 %v3663, %v3764
        %v3797 = vadd.f32 %v3664, %v3765
        %v3798 = vadd.f32 %v3665, %v3766
        %v3799 = vadd.f32 %v3666, %v3767
        %v3800 = vadd.f32 %v3667, %v3768
        %v3801 = vadd.f32 %v3668, %v3769
        %v3802 = vadd.f32 %v3669, %v3770
        %v3803 = vadd.f32 %v3670, %v3771
        %v3804 = vadd.f32 %v3671, %v3772
        %v3805 = vadd.f32 %v3672, %v3773
        %v3806 = vadd.f32 %v3673, %v3774
        %v3807 = vadd.f32 %v3674, %v3775
        %v3808 = vadd.f32 %v3675, %v3776
        %v3809 = vadd.f32 %v3676, %v3777
        %v3810 = vadd.f32 %v3677, %v3778
        %v3811 = vadd.f32 %v3678, %v3779
        %v3812 = vadd.f32 %v3679, %v3780
        %v3813 = vadd.f32 %v3680, %v3781
        %v3814 = vld [vmem:[#allocation3 + $0x2] sm:$0xff]
        %v3815 = vld [vmem:[#allocation3 + $0xa] sm:$0xff]
        %v3816 = vld [vmem:[#allocation3 + $0x1a] sm:$0xff]
        %v3817 = vld [vmem:[#allocation3 + $0x22] sm:$0xff]
        %v3818 = vld [vmem:[#allocation3 + $0x32] sm:$0xff]
        %v3819 = vld [vmem:[#allocation3 + $0x3a] sm:$0xff]
        %v3820 = vld [vmem:[#allocation3 + $0x4a] sm:$0xff]
        %v3821 = vld [vmem:[#allocation3 + $0x52] sm:$0xff]
        %v3822 = vld [vmem:[#allocation3 + $0x62] sm:$0xff]
        %v3823 = vld [vmem:[#allocation3 + $0x6a] sm:$0xff]
        %v3824 = vld [vmem:[#allocation3 + $0x7a] sm:$0xff]
        %v3825 = vld [vmem:[#allocation3 + $0x82] sm:$0xff]
        %v3826 = vld [vmem:[#allocation3 + $0x92] sm:$0xff]
        %v3827 = vld [vmem:[#allocation3 + $0x9a] sm:$0xff]
        %v3828 = vld [vmem:[#allocation3 + $0xaa] sm:$0xff]
        %v3829 = vld [vmem:[#allocation3 + $0xb2] sm:$0xff]
        %v3830 = vld [vmem:[#allocation3 + $0xc2] sm:$0xff]
        %v3831 = vld [vmem:[#allocation3 + $0xca] sm:$0xff]
        %v3832 = vld [vmem:[#allocation3 + $0xda] sm:$0xff]
        %v3833 = vld [vmem:[#allocation3 + $0xe2] sm:$0xff]
        %v3834 = vld [vmem:[#allocation3 + $0xf2] sm:$0xff]
        %v3835 = vld [vmem:[#allocation3 + $0xfa] sm:$0xff]
        %v3836 = vld [vmem:[#allocation3 + $0x10a] sm:$0xff]
        %v3837 = vld [vmem:[#allocation3 + $0x112] sm:$0xff]
        %v3838 = vld [vmem:[#allocation3 + $0x122] sm:$0xff]
        %v3839 = vld [vmem:[#allocation3 + $0x12a] sm:$0xff]
        %v3840 = vld [vmem:[#allocation3 + $0x13a] sm:$0xff]
        %v3841 = vld [vmem:[#allocation3 + $0x142] sm:$0xff]
        %v3842 = vld [vmem:[#allocation3 + $0x152] sm:$0xff]
        %v3843 = vld [vmem:[#allocation3 + $0x15a] sm:$0xff]
        %v3844 = vld [vmem:[#allocation3 + $0x16a] sm:$0xff]
        %v3845 = vld [vmem:[#allocation3 + $0x172] sm:$0xff]
        %v3846 = vmax.f32 %v3814, 0.0
        %v3847 = vmax.f32 %v3815, 0.0
        %v3848 = vmax.f32 %v3816, 0.0
        %v3849 = vmax.f32 %v3817, 0.0
        %v3850 = vmax.f32 %v3818, 0.0
        %v3851 = vmax.f32 %v3819, 0.0
        %v3852 = vmax.f32 %v3820, 0.0
        %v3853 = vmax.f32 %v3821, 0.0
        %v3854 = vmax.f32 %v3822, 0.0
        %v3855 = vmax.f32 %v3823, 0.0
        %v3856 = vmax.f32 %v3824, 0.0
        %v3857 = vmax.f32 %v3825, 0.0
        %v3858 = vmax.f32 %v3826, 0.0
        %v3859 = vmax.f32 %v3827, 0.0
        %v3860 = vmax.f32 %v3828, 0.0
        %v3861 = vmax.f32 %v3829, 0.0
        %v3862 = vmax.f32 %v3830, 0.0
        %v3863 = vmax.f32 %v3831, 0.0
        %v3864 = vmax.f32 %v3832, 0.0
        %v3865 = vmax.f32 %v3833, 0.0
        %v3866 = vmax.f32 %v3834, 0.0
        %v3867 = vmax.f32 %v3835, 0.0
        %v3868 = vmax.f32 %v3836, 0.0
        %v3869 = vmax.f32 %v3837, 0.0
        %v3870 = vmax.f32 %v3838, 0.0
        %v3871 = vmax.f32 %v3839, 0.0
        %v3872 = vmax.f32 %v3840, 0.0
        %v3873 = vmax.f32 %v3841, 0.0
        %v3874 = vmax.f32 %v3842, 0.0
        %v3875 = vmax.f32 %v3843, 0.0
        %v3876 = vmax.f32 %v3844, 0.0
        %v3877 = vmax.f32 %v3845, 0.0
        %v3878 = vld [vmem:[%s7 + $0x2] sm:$0x1]
        %v3879 = vlaneseq
        %v3880 = vshrl.u32 %v3879, 7
        %v3881 = vsub.s32 0, %v3880
        %v3882 = vrot.slane %v3878, %v3881
        %v3883 = vmul.f32 %v3846, %v3882
        %v3884 = vmul.f32 %v3847, %v3882
        %v3885 = vmul.f32 %v3848, %v3882
        %v3886 = vmul.f32 %v3849, %v3882
        %v3887 = vmul.f32 %v3850, %v3882
        %v3888 = vmul.f32 %v3851, %v3882
        %v3889 = vmul.f32 %v3852, %v3882
        %v3890 = vmul.f32 %v3853, %v3882
        %v3891 = vmul.f32 %v3854, %v3882
        %v3892 = vmul.f32 %v3855, %v3882
        %v3893 = vmul.f32 %v3856, %v3882
        %v3894 = vmul.f32 %v3857, %v3882
        %v3895 = vmul.f32 %v3858, %v3882
        %v3896 = vmul.f32 %v3859, %v3882
        %v3897 = vmul.f32 %v3860, %v3882
        %v3898 = vmul.f32 %v3861, %v3882
        %v3899 = vmul.f32 %v3862, %v3882
        %v3900 = vmul.f32 %v3863, %v3882
        %v3901 = vmul.f32 %v3864, %v3882
        %v3902 = vmul.f32 %v3865, %v3882
        %v3903 = vmul.f32 %v3866, %v3882
        %v3904 = vmul.f32 %v3867, %v3882
        %v3905 = vmul.f32 %v3868, %v3882
        %v3906 = vmul.f32 %v3869, %v3882
        %v3907 = vmul.f32 %v3870, %v3882
        %v3908 = vmul.f32 %v3871, %v3882
        %v3909 = vmul.f32 %v3872, %v3882
        %v3910 = vmul.f32 %v3873, %v3882
        %v3911 = vmul.f32 %v3874, %v3882
        %v3912 = vmul.f32 %v3875, %v3882
        %v3913 = vmul.f32 %v3876, %v3882
        %v3914 = vmul.f32 %v3877, %v3882
        %v3915 = vadd.f32 %v3782, %v3883
        %v3916 = vadd.f32 %v3783, %v3884
        %v3917 = vadd.f32 %v3784, %v3885
        %v3918 = vadd.f32 %v3785, %v3886
        %v3919 = vadd.f32 %v3786, %v3887
        %v3920 = vadd.f32 %v3787, %v3888
        %v3921 = vadd.f32 %v3788, %v3889
        %v3922 = vadd.f32 %v3789, %v3890
        %v3923 = vadd.f32 %v3790, %v3891
        %v3924 = vadd.f32 %v3791, %v3892
        %v3925 = vadd.f32 %v3792, %v3893
        %v3926 = vadd.f32 %v3793, %v3894
        %v3927 = vadd.f32 %v3794, %v3895
        %v3928 = vadd.f32 %v3795, %v3896
        %v3929 = vadd.f32 %v3796, %v3897
        %v3930 = vadd.f32 %v3797, %v3898
        %v3931 = vadd.f32 %v3798, %v3899
        %v3932 = vadd.f32 %v3799, %v3900
        %v3933 = vadd.f32 %v3800, %v3901
        %v3934 = vadd.f32 %v3801, %v3902
        %v3935 = vadd.f32 %v3802, %v3903
        %v3936 = vadd.f32 %v3803, %v3904
        %v3937 = vadd.f32 %v3804, %v3905
        %v3938 = vadd.f32 %v3805, %v3906
        %v3939 = vadd.f32 %v3806, %v3907
        %v3940 = vadd.f32 %v3807, %v3908
        %v3941 = vadd.f32 %v3808, %v3909
        %v3942 = vadd.f32 %v3809, %v3910
        %v3943 = vadd.f32 %v3810, %v3911
        %v3944 = vadd.f32 %v3811, %v3912
        %v3945 = vadd.f32 %v3812, %v3913
        %v3946 = vadd.f32 %v3813, %v3914
        %v3947 = vld [vmem:[%s3515] sm:$0xff]
        %v3948 = vld [vmem:[%s3515 + $0x8] sm:$0xff]
        %v3949 = vld [vmem:[%s3515 + $0x18] sm:$0xff]
        %v3950 = vld [vmem:[%s3515 + $0x20] sm:$0xff]
        %v3951 = vld [vmem:[%s3515 + $0x30] sm:$0xff]
        %v3952 = vld [vmem:[%s3515 + $0x38] sm:$0xff]
        %v3953 = vld [vmem:[%s3515 + $0x48] sm:$0xff]
        %v3954 = vld [vmem:[%s3515 + $0x50] sm:$0xff]
        %v3955 = vld [vmem:[%s3515 + $0x60] sm:$0xff]
        %v3956 = vld [vmem:[%s3515 + $0x68] sm:$0xff]
        %v3957 = vld [vmem:[%s3515 + $0x78] sm:$0xff]
        %v3958 = vld [vmem:[%s3515 + $0x80] sm:$0xff]
        %v3959 = vld [vmem:[%s3515 + $0x90] sm:$0xff]
        %v3960 = vld [vmem:[%s3515 + $0x98] sm:$0xff]
        %v3961 = vld [vmem:[%s3515 + $0xa8] sm:$0xff]
        %v3962 = vld [vmem:[%s3515 + $0xb0] sm:$0xff]
        %v3963 = vld [vmem:[%s3515 + $0xc0] sm:$0xff]
        %v3964 = vld [vmem:[%s3515 + $0xc8] sm:$0xff]
        %v3965 = vld [vmem:[%s3515 + $0xd8] sm:$0xff]
        %v3966 = vld [vmem:[%s3515 + $0xe0] sm:$0xff]
        %v3967 = vld [vmem:[%s3515 + $0xf0] sm:$0xff]
        %v3968 = vld [vmem:[%s3515 + $0xf8] sm:$0xff]
        %v3969 = vld [vmem:[%s3515 + $0x108] sm:$0xff]
        %v3970 = vld [vmem:[%s3515 + $0x110] sm:$0xff]
        %v3971 = vld [vmem:[%s3515 + $0x120] sm:$0xff]
        %v3972 = vld [vmem:[%s3515 + $0x128] sm:$0xff]
        %v3973 = vld [vmem:[%s3515 + $0x138] sm:$0xff]
        %v3974 = vld [vmem:[%s3515 + $0x140] sm:$0xff]
        %v3975 = vld [vmem:[%s3515 + $0x150] sm:$0xff]
        %v3976 = vld [vmem:[%s3515 + $0x158] sm:$0xff]
        %v3977 = vld [vmem:[%s3515 + $0x168] sm:$0xff]
        %v3978 = vld [vmem:[%s3515 + $0x170] sm:$0xff]
        %v3979 = vmax.f32 %v3947, 0.0
        %v3980 = vmax.f32 %v3948, 0.0
        %v3981 = vmax.f32 %v3949, 0.0
        %v3982 = vmax.f32 %v3950, 0.0
        %v3983 = vmax.f32 %v3951, 0.0
        %v3984 = vmax.f32 %v3952, 0.0
        %v3985 = vmax.f32 %v3953, 0.0
        %v3986 = vmax.f32 %v3954, 0.0
        %v3987 = vmax.f32 %v3955, 0.0
        %v3988 = vmax.f32 %v3956, 0.0
        %v3989 = vmax.f32 %v3957, 0.0
        %v3990 = vmax.f32 %v3958, 0.0
        %v3991 = vmax.f32 %v3959, 0.0
        %v3992 = vmax.f32 %v3960, 0.0
        %v3993 = vmax.f32 %v3961, 0.0
        %v3994 = vmax.f32 %v3962, 0.0
        %v3995 = vmax.f32 %v3963, 0.0
        %v3996 = vmax.f32 %v3964, 0.0
        %v3997 = vmax.f32 %v3965, 0.0
        %v3998 = vmax.f32 %v3966, 0.0
        %v3999 = vmax.f32 %v3967, 0.0
        %v4000 = vmax.f32 %v3968, 0.0
        %v4001 = vmax.f32 %v3969, 0.0
        %v4002 = vmax.f32 %v3970, 0.0
        %v4003 = vmax.f32 %v3971, 0.0
        %v4004 = vmax.f32 %v3972, 0.0
        %v4005 = vmax.f32 %v3973, 0.0
        %v4006 = vmax.f32 %v3974, 0.0
        %v4007 = vmax.f32 %v3975, 0.0
        %v4008 = vmax.f32 %v3976, 0.0
        %v4009 = vmax.f32 %v3977, 0.0
        %v4010 = vmax.f32 %v3978, 0.0
        %s4011 = scalar_lea.vmem %s7, 4
        %v4012 = vld [vmem:[%s4011] sm:$0x1]
        %v4013 = vlaneseq
        %v4014 = vshrl.u32 %v4013, 7
        %v4015 = vsub.s32 0, %v4014
        %v4016 = vrot.slane %v4012, %v4015
        %v4017 = vmul.f32 %v3979, %v4016
        %v4018 = vmul.f32 %v3980, %v4016
        %v4019 = vmul.f32 %v3981, %v4016
        %v4020 = vmul.f32 %v3982, %v4016
        %v4021 = vmul.f32 %v3983, %v4016
        %v4022 = vmul.f32 %v3984, %v4016
        %v4023 = vmul.f32 %v3985, %v4016
        %v4024 = vmul.f32 %v3986, %v4016
        %v4025 = vmul.f32 %v3987, %v4016
        %v4026 = vmul.f32 %v3988, %v4016
        %v4027 = vmul.f32 %v3989, %v4016
        %v4028 = vmul.f32 %v3990, %v4016
        %v4029 = vmul.f32 %v3991, %v4016
        %v4030 = vmul.f32 %v3992, %v4016
        %v4031 = vmul.f32 %v3993, %v4016
        %v4032 = vmul.f32 %v3994, %v4016
        %v4033 = vmul.f32 %v3995, %v4016
        %v4034 = vmul.f32 %v3996, %v4016
        %v4035 = vmul.f32 %v3997, %v4016
        %v4036 = vmul.f32 %v3998, %v4016
        %v4037 = vmul.f32 %v3999, %v4016
        %v4038 = vmul.f32 %v4000, %v4016
        %v4039 = vmul.f32 %v4001, %v4016
        %v4040 = vmul.f32 %v4002, %v4016
        %v4041 = vmul.f32 %v4003, %v4016
        %v4042 = vmul.f32 %v4004, %v4016
        %v4043 = vmul.f32 %v4005, %v4016
        %v4044 = vmul.f32 %v4006, %v4016
        %v4045 = vmul.f32 %v4007, %v4016
        %v4046 = vmul.f32 %v4008, %v4016
        %v4047 = vmul.f32 %v4009, %v4016
        %v4048 = vmul.f32 %v4010, %v4016
        %v4049 = vadd.f32 %v3915, %v4017
        %v4050 = vadd.f32 %v3916, %v4018
        %v4051 = vadd.f32 %v3917, %v4019
        %v4052 = vadd.f32 %v3918, %v4020
        %v4053 = vadd.f32 %v3919, %v4021
        %v4054 = vadd.f32 %v3920, %v4022
        %v4055 = vadd.f32 %v3921, %v4023
        %v4056 = vadd.f32 %v3922, %v4024
        %v4057 = vadd.f32 %v3923, %v4025
        %v4058 = vadd.f32 %v3924, %v4026
        %v4059 = vadd.f32 %v3925, %v4027
        %v4060 = vadd.f32 %v3926, %v4028
        %v4061 = vadd.f32 %v3927, %v4029
        %v4062 = vadd.f32 %v3928, %v4030
        %v4063 = vadd.f32 %v3929, %v4031
        %v4064 = vadd.f32 %v3930, %v4032
        %v4065 = vadd.f32 %v3931, %v4033
        %v4066 = vadd.f32 %v3932, %v4034
        %v4067 = vadd.f32 %v3933, %v4035
        %v4068 = vadd.f32 %v3934, %v4036
        %v4069 = vadd.f32 %v3935, %v4037
        %v4070 = vadd.f32 %v3936, %v4038
        %v4071 = vadd.f32 %v3937, %v4039
        %v4072 = vadd.f32 %v3938, %v4040
        %v4073 = vadd.f32 %v3939, %v4041
        %v4074 = vadd.f32 %v3940, %v4042
        %v4075 = vadd.f32 %v3941, %v4043
        %v4076 = vadd.f32 %v3942, %v4044
        %v4077 = vadd.f32 %v3943, %v4045
        %v4078 = vadd.f32 %v3944, %v4046
        %v4079 = vadd.f32 %v3945, %v4047
        %v4080 = vadd.f32 %v3946, %v4048
        %v4081 = vld [vmem:[%s3515 + $0x1] sm:$0xff]
        %v4082 = vld [vmem:[%s3515 + $0x9] sm:$0xff]
        %v4083 = vld [vmem:[%s3515 + $0x19] sm:$0xff]
        %v4084 = vld [vmem:[%s3515 + $0x21] sm:$0xff]
        %v4085 = vld [vmem:[%s3515 + $0x31] sm:$0xff]
        %v4086 = vld [vmem:[%s3515 + $0x39] sm:$0xff]
        %v4087 = vld [vmem:[%s3515 + $0x49] sm:$0xff]
        %v4088 = vld [vmem:[%s3515 + $0x51] sm:$0xff]
        %v4089 = vld [vmem:[%s3515 + $0x61] sm:$0xff]
        %v4090 = vld [vmem:[%s3515 + $0x69] sm:$0xff]
        %v4091 = vld [vmem:[%s3515 + $0x79] sm:$0xff]
        %v4092 = vld [vmem:[%s3515 + $0x81] sm:$0xff]
        %v4093 = vld [vmem:[%s3515 + $0x91] sm:$0xff]
        %v4094 = vld [vmem:[%s3515 + $0x99] sm:$0xff]
        %v4095 = vld [vmem:[%s3515 + $0xa9] sm:$0xff]
        %v4096 = vld [vmem:[%s3515 + $0xb1] sm:$0xff]
        %v4097 = vld [vmem:[%s3515 + $0xc1] sm:$0xff]
        %v4098 = vld [vmem:[%s3515 + $0xc9] sm:$0xff]
        %v4099 = vld [vmem:[%s3515 + $0xd9] sm:$0xff]
        %v4100 = vld [vmem:[%s3515 + $0xe1] sm:$0xff]
        %v4101 = vld [vmem:[%s3515 + $0xf1] sm:$0xff]
        %v4102 = vld [vmem:[%s3515 + $0xf9] sm:$0xff]
        %v4103 = vld [vmem:[%s3515 + $0x109] sm:$0xff]
        %v4104 = vld [vmem:[%s3515 + $0x111] sm:$0xff]
        %v4105 = vld [vmem:[%s3515 + $0x121] sm:$0xff]
        %v4106 = vld [vmem:[%s3515 + $0x129] sm:$0xff]
        %v4107 = vld [vmem:[%s3515 + $0x139] sm:$0xff]
        %v4108 = vld [vmem:[%s3515 + $0x141] sm:$0xff]
        %v4109 = vld [vmem:[%s3515 + $0x151] sm:$0xff]
        %v4110 = vld [vmem:[%s3515 + $0x159] sm:$0xff]
        %v4111 = vld [vmem:[%s3515 + $0x169] sm:$0xff]
        %v4112 = vld [vmem:[%s3515 + $0x171] sm:$0xff]
        %v4113 = vmax.f32 %v4081, 0.0
        %v4114 = vmax.f32 %v4082, 0.0
        %v4115 = vmax.f32 %v4083, 0.0
        %v4116 = vmax.f32 %v4084, 0.0
        %v4117 = vmax.f32 %v4085, 0.0
        %v4118 = vmax.f32 %v4086, 0.0
        %v4119 = vmax.f32 %v4087, 0.0
        %v4120 = vmax.f32 %v4088, 0.0
        %v4121 = vmax.f32 %v4089, 0.0
        %v4122 = vmax.f32 %v4090, 0.0
        %v4123 = vmax.f32 %v4091, 0.0
        %v4124 = vmax.f32 %v4092, 0.0
        %v4125 = vmax.f32 %v4093, 0.0
        %v4126 = vmax.f32 %v4094, 0.0
        %v4127 = vmax.f32 %v4095, 0.0
        %v4128 = vmax.f32 %v4096, 0.0
        %v4129 = vmax.f32 %v4097, 0.0
        %v4130 = vmax.f32 %v4098, 0.0
        %v4131 = vmax.f32 %v4099, 0.0
        %v4132 = vmax.f32 %v4100, 0.0
        %v4133 = vmax.f32 %v4101, 0.0
        %v4134 = vmax.f32 %v4102, 0.0
        %v4135 = vmax.f32 %v4103, 0.0
        %v4136 = vmax.f32 %v4104, 0.0
        %v4137 = vmax.f32 %v4105, 0.0
        %v4138 = vmax.f32 %v4106, 0.0
        %v4139 = vmax.f32 %v4107, 0.0
        %v4140 = vmax.f32 %v4108, 0.0
        %v4141 = vmax.f32 %v4109, 0.0
        %v4142 = vmax.f32 %v4110, 0.0
        %v4143 = vmax.f32 %v4111, 0.0
        %v4144 = vmax.f32 %v4112, 0.0
        %v4145 = vld [vmem:[%s4011 + $0x1] sm:$0x1]
        %v4146 = vlaneseq
        %v4147 = vshrl.u32 %v4146, 7
        %v4148 = vsub.s32 0, %v4147
        %v4149 = vrot.slane %v4145, %v4148
        %v4150 = vmul.f32 %v4113, %v4149
        %v4151 = vmul.f32 %v4114, %v4149
        %v4152 = vmul.f32 %v4115, %v4149
        %v4153 = vmul.f32 %v4116, %v4149
        %v4154 = vmul.f32 %v4117, %v4149
        %v4155 = vmul.f32 %v4118, %v4149
        %v4156 = vmul.f32 %v4119, %v4149
        %v4157 = vmul.f32 %v4120, %v4149
        %v4158 = vmul.f32 %v4121, %v4149
        %v4159 = vmul.f32 %v4122, %v4149
        %v4160 = vmul.f32 %v4123, %v4149
        %v4161 = vmul.f32 %v4124, %v4149
        %v4162 = vmul.f32 %v4125, %v4149
        %v4163 = vmul.f32 %v4126, %v4149
        %v4164 = vmul.f32 %v4127, %v4149
        %v4165 = vmul.f32 %v4128, %v4149
        %v4166 = vmul.f32 %v4129, %v4149
        %v4167 = vmul.f32 %v4130, %v4149
        %v4168 = vmul.f32 %v4131, %v4149
        %v4169 = vmul.f32 %v4132, %v4149
        %v4170 = vmul.f32 %v4133, %v4149
        %v4171 = vmul.f32 %v4134, %v4149
        %v4172 = vmul.f32 %v4135, %v4149
        %v4173 = vmul.f32 %v4136, %v4149
        %v4174 = vmul.f32 %v4137, %v4149
        %v4175 = vmul.f32 %v4138, %v4149
        %v4176 = vmul.f32 %v4139, %v4149
        %v4177 = vmul.f32 %v4140, %v4149
        %v4178 = vmul.f32 %v4141, %v4149
        %v4179 = vmul.f32 %v4142, %v4149
        %v4180 = vmul.f32 %v4143, %v4149
        %v4181 = vmul.f32 %v4144, %v4149
        %v4182 = vadd.f32 %v4049, %v4150
        %v4183 = vadd.f32 %v4050, %v4151
        %v4184 = vadd.f32 %v4051, %v4152
        %v4185 = vadd.f32 %v4052, %v4153
        %v4186 = vadd.f32 %v4053, %v4154
        %v4187 = vadd.f32 %v4054, %v4155
        %v4188 = vadd.f32 %v4055, %v4156
        %v4189 = vadd.f32 %v4056, %v4157
        %v4190 = vadd.f32 %v4057, %v4158
        %v4191 = vadd.f32 %v4058, %v4159
        %v4192 = vadd.f32 %v4059, %v4160
        %v4193 = vadd.f32 %v4060, %v4161
        %v4194 = vadd.f32 %v4061, %v4162
        %v4195 = vadd.f32 %v4062, %v4163
        %v4196 = vadd.f32 %v4063, %v4164
        %v4197 = vadd.f32 %v4064, %v4165
        %v4198 = vadd.f32 %v4065, %v4166
        %v4199 = vadd.f32 %v4066, %v4167
        %v4200 = vadd.f32 %v4067, %v4168
        %v4201 = vadd.f32 %v4068, %v4169
        %v4202 = vadd.f32 %v4069, %v4170
        %v4203 = vadd.f32 %v4070, %v4171
        %v4204 = vadd.f32 %v4071, %v4172
        %v4205 = vadd.f32 %v4072, %v4173
        %v4206 = vadd.f32 %v4073, %v4174
        %v4207 = vadd.f32 %v4074, %v4175
        %v4208 = vadd.f32 %v4075, %v4176
        %v4209 = vadd.f32 %v4076, %v4177
        %v4210 = vadd.f32 %v4077, %v4178
        %v4211 = vadd.f32 %v4078, %v4179
        %v4212 = vadd.f32 %v4079, %v4180
        %v4213 = vadd.f32 %v4080, %v4181
        %v4214 = vld [vmem:[%s3515 + $0x2] sm:$0xff]
        %v4215 = vld [vmem:[%s3515 + $0xa] sm:$0xff]
        %v4216 = vld [vmem:[%s3515 + $0x1a] sm:$0xff]
        %v4217 = vld [vmem:[%s3515 + $0x22] sm:$0xff]
        %v4218 = vld [vmem:[%s3515 + $0x32] sm:$0xff]
        %v4219 = vld [vmem:[%s3515 + $0x3a] sm:$0xff]
        %v4220 = vld [vmem:[%s3515 + $0x4a] sm:$0xff]
        %v4221 = vld [vmem:[%s3515 + $0x52] sm:$0xff]
        %v4222 = vld [vmem:[%s3515 + $0x62] sm:$0xff]
        %v4223 = vld [vmem:[%s3515 + $0x6a] sm:$0xff]
        %v4224 = vld [vmem:[%s3515 + $0x7a] sm:$0xff]
        %v4225 = vld [vmem:[%s3515 + $0x82] sm:$0xff]
        %v4226 = vld [vmem:[%s3515 + $0x92] sm:$0xff]
        %v4227 = vld [vmem:[%s3515 + $0x9a] sm:$0xff]
        %v4228 = vld [vmem:[%s3515 + $0xaa] sm:$0xff]
        %v4229 = vld [vmem:[%s3515 + $0xb2] sm:$0xff]
        %v4230 = vld [vmem:[%s3515 + $0xc2] sm:$0xff]
        %v4231 = vld [vmem:[%s3515 + $0xca] sm:$0xff]
        %v4232 = vld [vmem:[%s3515 + $0xda] sm:$0xff]
        %v4233 = vld [vmem:[%s3515 + $0xe2] sm:$0xff]
        %v4234 = vld [vmem:[%s3515 + $0xf2] sm:$0xff]
        %v4235 = vld [vmem:[%s3515 + $0xfa] sm:$0xff]
        %v4236 = vld [vmem:[%s3515 + $0x10a] sm:$0xff]
        %v4237 = vld [vmem:[%s3515 + $0x112] sm:$0xff]
        %v4238 = vld [vmem:[%s3515 + $0x122] sm:$0xff]
        %v4239 = vld [vmem:[%s3515 + $0x12a] sm:$0xff]
        %v4240 = vld [vmem:[%s3515 + $0x13a] sm:$0xff]
        %v4241 = vld [vmem:[%s3515 + $0x142] sm:$0xff]
        %v4242 = vld [vmem:[%s3515 + $0x152] sm:$0xff]
        %v4243 = vld [vmem:[%s3515 + $0x15a] sm:$0xff]
        %v4244 = vld [vmem:[%s3515 + $0x16a] sm:$0xff]
        %v4245 = vld [vmem:[%s3515 + $0x172] sm:$0xff]
        %v4246 = vmax.f32 %v4214, 0.0
        %v4247 = vmax.f32 %v4215, 0.0
        %v4248 = vmax.f32 %v4216, 0.0
        %v4249 = vmax.f32 %v4217, 0.0
        %v4250 = vmax.f32 %v4218, 0.0
        %v4251 = vmax.f32 %v4219, 0.0
        %v4252 = vmax.f32 %v4220, 0.0
        %v4253 = vmax.f32 %v4221, 0.0
        %v4254 = vmax.f32 %v4222, 0.0
        %v4255 = vmax.f32 %v4223, 0.0
        %v4256 = vmax.f32 %v4224, 0.0
        %v4257 = vmax.f32 %v4225, 0.0
        %v4258 = vmax.f32 %v4226, 0.0
        %v4259 = vmax.f32 %v4227, 0.0
        %v4260 = vmax.f32 %v4228, 0.0
        %v4261 = vmax.f32 %v4229, 0.0
        %v4262 = vmax.f32 %v4230, 0.0
        %v4263 = vmax.f32 %v4231, 0.0
        %v4264 = vmax.f32 %v4232, 0.0
        %v4265 = vmax.f32 %v4233, 0.0
        %v4266 = vmax.f32 %v4234, 0.0
        %v4267 = vmax.f32 %v4235, 0.0
        %v4268 = vmax.f32 %v4236, 0.0
        %v4269 = vmax.f32 %v4237, 0.0
        %v4270 = vmax.f32 %v4238, 0.0
        %v4271 = vmax.f32 %v4239, 0.0
        %v4272 = vmax.f32 %v4240, 0.0
        %v4273 = vmax.f32 %v4241, 0.0
        %v4274 = vmax.f32 %v4242, 0.0
        %v4275 = vmax.f32 %v4243, 0.0
        %v4276 = vmax.f32 %v4244, 0.0
        %v4277 = vmax.f32 %v4245, 0.0
        %v4278 = vld [vmem:[%s4011 + $0x2] sm:$0x1]
        %v4279 = vlaneseq
        %v4280 = vshrl.u32 %v4279, 7
        %v4281 = vsub.s32 0, %v4280
        %v4282 = vrot.slane %v4278, %v4281
        %v4283 = vmul.f32 %v4246, %v4282
        %v4284 = vmul.f32 %v4247, %v4282
        %v4285 = vmul.f32 %v4248, %v4282
        %v4286 = vmul.f32 %v4249, %v4282
        %v4287 = vmul.f32 %v4250, %v4282
        %v4288 = vmul.f32 %v4251, %v4282
        %v4289 = vmul.f32 %v4252, %v4282
        %v4290 = vmul.f32 %v4253, %v4282
        %v4291 = vmul.f32 %v4254, %v4282
        %v4292 = vmul.f32 %v4255, %v4282
        %v4293 = vmul.f32 %v4256, %v4282
        %v4294 = vmul.f32 %v4257, %v4282
        %v4295 = vmul.f32 %v4258, %v4282
        %v4296 = vmul.f32 %v4259, %v4282
        %v4297 = vmul.f32 %v4260, %v4282
        %v4298 = vmul.f32 %v4261, %v4282
        %v4299 = vmul.f32 %v4262, %v4282
        %v4300 = vmul.f32 %v4263, %v4282
        %v4301 = vmul.f32 %v4264, %v4282
        %v4302 = vmul.f32 %v4265, %v4282
        %v4303 = vmul.f32 %v4266, %v4282
        %v4304 = vmul.f32 %v4267, %v4282
        %v4305 = vmul.f32 %v4268, %v4282
        %v4306 = vmul.f32 %v4269, %v4282
        %v4307 = vmul.f32 %v4270, %v4282
        %v4308 = vmul.f32 %v4271, %v4282
        %v4309 = vmul.f32 %v4272, %v4282
        %v4310 = vmul.f32 %v4273, %v4282
        %v4311 = vmul.f32 %v4274, %v4282
        %v4312 = vmul.f32 %v4275, %v4282
        %v4313 = vmul.f32 %v4276, %v4282
        %v4314 = vmul.f32 %v4277, %v4282
        %v4315 = vadd.f32 %v4182, %v4283
        %v4316 = vadd.f32 %v4183, %v4284
        %v4317 = vadd.f32 %v4184, %v4285
        %v4318 = vadd.f32 %v4185, %v4286
        %v4319 = vadd.f32 %v4186, %v4287
        %v4320 = vadd.f32 %v4187, %v4288
        %v4321 = vadd.f32 %v4188, %v4289
        %v4322 = vadd.f32 %v4189, %v4290
        %v4323 = vadd.f32 %v4190, %v4291
        %v4324 = vadd.f32 %v4191, %v4292
        %v4325 = vadd.f32 %v4192, %v4293
        %v4326 = vadd.f32 %v4193, %v4294
        %v4327 = vadd.f32 %v4194, %v4295
        %v4328 = vadd.f32 %v4195, %v4296
        %v4329 = vadd.f32 %v4196, %v4297
        %v4330 = vadd.f32 %v4197, %v4298
        %v4331 = vadd.f32 %v4198, %v4299
        %v4332 = vadd.f32 %v4199, %v4300
        %v4333 = vadd.f32 %v4200, %v4301
        %v4334 = vadd.f32 %v4201, %v4302
        %v4335 = vadd.f32 %v4202, %v4303
        %v4336 = vadd.f32 %v4203, %v4304
        %v4337 = vadd.f32 %v4204, %v4305
        %v4338 = vadd.f32 %v4205, %v4306
        %v4339 = vadd.f32 %v4206, %v4307
        %v4340 = vadd.f32 %v4207, %v4308
        %v4341 = vadd.f32 %v4208, %v4309
        %v4342 = vadd.f32 %v4209, %v4310
        %v4343 = vadd.f32 %v4210, %v4311
        %v4344 = vadd.f32 %v4211, %v4312
        %v4345 = vadd.f32 %v4212, %v4313
        %v4346 = vadd.f32 %v4213, %v4314
        %s4347 = scalar_lea.vmem [#allocation3], 48
        %v4348 = vld [vmem:[%s4347] sm:$0xff]
        %v4349 = vld [vmem:[%s4347 + $0x8] sm:$0xff]
        %v4350 = vld [vmem:[%s4347 + $0x18] sm:$0xff]
        %v4351 = vld [vmem:[%s4347 + $0x20] sm:$0xff]
        %v4352 = vld [vmem:[%s4347 + $0x30] sm:$0xff]
        %v4353 = vld [vmem:[%s4347 + $0x38] sm:$0xff]
        %v4354 = vld [vmem:[%s4347 + $0x48] sm:$0xff]
        %v4355 = vld [vmem:[%s4347 + $0x50] sm:$0xff]
        %v4356 = vld [vmem:[%s4347 + $0x60] sm:$0xff]
        %v4357 = vld [vmem:[%s4347 + $0x68] sm:$0xff]
        %v4358 = vld [vmem:[%s4347 + $0x78] sm:$0xff]
        %v4359 = vld [vmem:[%s4347 + $0x80] sm:$0xff]
        %v4360 = vld [vmem:[%s4347 + $0x90] sm:$0xff]
        %v4361 = vld [vmem:[%s4347 + $0x98] sm:$0xff]
        %v4362 = vld [vmem:[%s4347 + $0xa8] sm:$0xff]
        %v4363 = vld [vmem:[%s4347 + $0xb0] sm:$0xff]
        %v4364 = vld [vmem:[%s4347 + $0xc0] sm:$0xff]
        %v4365 = vld [vmem:[%s4347 + $0xc8] sm:$0xff]
        %v4366 = vld [vmem:[%s4347 + $0xd8] sm:$0xff]
        %v4367 = vld [vmem:[%s4347 + $0xe0] sm:$0xff]
        %v4368 = vld [vmem:[%s4347 + $0xf0] sm:$0xff]
        %v4369 = vld [vmem:[%s4347 + $0xf8] sm:$0xff]
        %v4370 = vld [vmem:[%s4347 + $0x108] sm:$0xff]
        %v4371 = vld [vmem:[%s4347 + $0x110] sm:$0xff]
        %v4372 = vld [vmem:[%s4347 + $0x120] sm:$0xff]
        %v4373 = vld [vmem:[%s4347 + $0x128] sm:$0xff]
        %v4374 = vld [vmem:[%s4347 + $0x138] sm:$0xff]
        %v4375 = vld [vmem:[%s4347 + $0x140] sm:$0xff]
        %v4376 = vld [vmem:[%s4347 + $0x150] sm:$0xff]
        %v4377 = vld [vmem:[%s4347 + $0x158] sm:$0xff]
        %v4378 = vld [vmem:[%s4347 + $0x168] sm:$0xff]
        %v4379 = vld [vmem:[%s4347 + $0x170] sm:$0xff]
        %v4380 = vmax.f32 %v4348, 0.0
        %v4381 = vmax.f32 %v4349, 0.0
        %v4382 = vmax.f32 %v4350, 0.0
        %v4383 = vmax.f32 %v4351, 0.0
        %v4384 = vmax.f32 %v4352, 0.0
        %v4385 = vmax.f32 %v4353, 0.0
        %v4386 = vmax.f32 %v4354, 0.0
        %v4387 = vmax.f32 %v4355, 0.0
        %v4388 = vmax.f32 %v4356, 0.0
        %v4389 = vmax.f32 %v4357, 0.0
        %v4390 = vmax.f32 %v4358, 0.0
        %v4391 = vmax.f32 %v4359, 0.0
        %v4392 = vmax.f32 %v4360, 0.0
        %v4393 = vmax.f32 %v4361, 0.0
        %v4394 = vmax.f32 %v4362, 0.0
        %v4395 = vmax.f32 %v4363, 0.0
        %v4396 = vmax.f32 %v4364, 0.0
        %v4397 = vmax.f32 %v4365, 0.0
        %v4398 = vmax.f32 %v4366, 0.0
        %v4399 = vmax.f32 %v4367, 0.0
        %v4400 = vmax.f32 %v4368, 0.0
        %v4401 = vmax.f32 %v4369, 0.0
        %v4402 = vmax.f32 %v4370, 0.0
        %v4403 = vmax.f32 %v4371, 0.0
        %v4404 = vmax.f32 %v4372, 0.0
        %v4405 = vmax.f32 %v4373, 0.0
        %v4406 = vmax.f32 %v4374, 0.0
        %v4407 = vmax.f32 %v4375, 0.0
        %v4408 = vmax.f32 %v4376, 0.0
        %v4409 = vmax.f32 %v4377, 0.0
        %v4410 = vmax.f32 %v4378, 0.0
        %v4411 = vmax.f32 %v4379, 0.0
        %s4412 = scalar_lea.vmem %s7, 8
        %v4413 = vld [vmem:[%s4412] sm:$0x1]
        %v4414 = vlaneseq
        %v4415 = vshrl.u32 %v4414, 7
        %v4416 = vsub.s32 0, %v4415
        %v4417 = vrot.slane %v4413, %v4416
        %v4418 = vmul.f32 %v4380, %v4417
        %v4419 = vmul.f32 %v4381, %v4417
        %v4420 = vmul.f32 %v4382, %v4417
        %v4421 = vmul.f32 %v4383, %v4417
        %v4422 = vmul.f32 %v4384, %v4417
        %v4423 = vmul.f32 %v4385, %v4417
        %v4424 = vmul.f32 %v4386, %v4417
        %v4425 = vmul.f32 %v4387, %v4417
        %v4426 = vmul.f32 %v4388, %v4417
        %v4427 = vmul.f32 %v4389, %v4417
        %v4428 = vmul.f32 %v4390, %v4417
        %v4429 = vmul.f32 %v4391, %v4417
        %v4430 = vmul.f32 %v4392, %v4417
        %v4431 = vmul.f32 %v4393, %v4417
        %v4432 = vmul.f32 %v4394, %v4417
        %v4433 = vmul.f32 %v4395, %v4417
        %v4434 = vmul.f32 %v4396, %v4417
        %v4435 = vmul.f32 %v4397, %v4417
        %v4436 = vmul.f32 %v4398, %v4417
        %v4437 = vmul.f32 %v4399, %v4417
        %v4438 = vmul.f32 %v4400, %v4417
        %v4439 = vmul.f32 %v4401, %v4417
        %v4440 = vmul.f32 %v4402, %v4417
        %v4441 = vmul.f32 %v4403, %v4417
        %v4442 = vmul.f32 %v4404, %v4417
        %v4443 = vmul.f32 %v4405, %v4417
        %v4444 = vmul.f32 %v4406, %v4417
        %v4445 = vmul.f32 %v4407, %v4417
        %v4446 = vmul.f32 %v4408, %v4417
        %v4447 = vmul.f32 %v4409, %v4417
        %v4448 = vmul.f32 %v4410, %v4417
        %v4449 = vmul.f32 %v4411, %v4417
        %v4450 = vadd.f32 %v4315, %v4418
        %v4451 = vadd.f32 %v4316, %v4419
        %v4452 = vadd.f32 %v4317, %v4420
        %v4453 = vadd.f32 %v4318, %v4421
        %v4454 = vadd.f32 %v4319, %v4422
        %v4455 = vadd.f32 %v4320, %v4423
        %v4456 = vadd.f32 %v4321, %v4424
        %v4457 = vadd.f32 %v4322, %v4425
        %v4458 = vadd.f32 %v4323, %v4426
        %v4459 = vadd.f32 %v4324, %v4427
        %v4460 = vadd.f32 %v4325, %v4428
        %v4461 = vadd.f32 %v4326, %v4429
        %v4462 = vadd.f32 %v4327, %v4430
        %v4463 = vadd.f32 %v4328, %v4431
        %v4464 = vadd.f32 %v4329, %v4432
        %v4465 = vadd.f32 %v4330, %v4433
        %v4466 = vadd.f32 %v4331, %v4434
        %v4467 = vadd.f32 %v4332, %v4435
        %v4468 = vadd.f32 %v4333, %v4436
        %v4469 = vadd.f32 %v4334, %v4437
        %v4470 = vadd.f32 %v4335, %v4438
        %v4471 = vadd.f32 %v4336, %v4439
        %v4472 = vadd.f32 %v4337, %v4440
        %v4473 = vadd.f32 %v4338, %v4441
        %v4474 = vadd.f32 %v4339, %v4442
        %v4475 = vadd.f32 %v4340, %v4443
        %v4476 = vadd.f32 %v4341, %v4444
        %v4477 = vadd.f32 %v4342, %v4445
        %v4478 = vadd.f32 %v4343, %v4446
        %v4479 = vadd.f32 %v4344, %v4447
        %v4480 = vadd.f32 %v4345, %v4448
        %v4481 = vadd.f32 %v4346, %v4449
        %v4482 = vld [vmem:[%s4347 + $0x1] sm:$0xff]
        %v4483 = vld [vmem:[%s4347 + $0x9] sm:$0xff]
        %v4484 = vld [vmem:[%s4347 + $0x19] sm:$0xff]
        %v4485 = vld [vmem:[%s4347 + $0x21] sm:$0xff]
        %v4486 = vld [vmem:[%s4347 + $0x31] sm:$0xff]
        %v4487 = vld [vmem:[%s4347 + $0x39] sm:$0xff]
        %v4488 = vld [vmem:[%s4347 + $0x49] sm:$0xff]
        %v4489 = vld [vmem:[%s4347 + $0x51] sm:$0xff]
        %v4490 = vld [vmem:[%s4347 + $0x61] sm:$0xff]
        %v4491 = vld [vmem:[%s4347 + $0x69] sm:$0xff]
        %v4492 = vld [vmem:[%s4347 + $0x79] sm:$0xff]
        %v4493 = vld [vmem:[%s4347 + $0x81] sm:$0xff]
        %v4494 = vld [vmem:[%s4347 + $0x91] sm:$0xff]
        %v4495 = vld [vmem:[%s4347 + $0x99] sm:$0xff]
        %v4496 = vld [vmem:[%s4347 + $0xa9] sm:$0xff]
        %v4497 = vld [vmem:[%s4347 + $0xb1] sm:$0xff]
        %v4498 = vld [vmem:[%s4347 + $0xc1] sm:$0xff]
        %v4499 = vld [vmem:[%s4347 + $0xc9] sm:$0xff]
        %v4500 = vld [vmem:[%s4347 + $0xd9] sm:$0xff]
        %v4501 = vld [vmem:[%s4347 + $0xe1] sm:$0xff]
        %v4502 = vld [vmem:[%s4347 + $0xf1] sm:$0xff]
        %v4503 = vld [vmem:[%s4347 + $0xf9] sm:$0xff]
        %v4504 = vld [vmem:[%s4347 + $0x109] sm:$0xff]
        %v4505 = vld [vmem:[%s4347 + $0x111] sm:$0xff]
        %v4506 = vld [vmem:[%s4347 + $0x121] sm:$0xff]
        %v4507 = vld [vmem:[%s4347 + $0x129] sm:$0xff]
        %v4508 = vld [vmem:[%s4347 + $0x139] sm:$0xff]
        %v4509 = vld [vmem:[%s4347 + $0x141] sm:$0xff]
        %v4510 = vld [vmem:[%s4347 + $0x151] sm:$0xff]
        %v4511 = vld [vmem:[%s4347 + $0x159] sm:$0xff]
        %v4512 = vld [vmem:[%s4347 + $0x169] sm:$0xff]
        %v4513 = vld [vmem:[%s4347 + $0x171] sm:$0xff]
        %v4514 = vmax.f32 %v4482, 0.0
        %v4515 = vmax.f32 %v4483, 0.0
        %v4516 = vmax.f32 %v4484, 0.0
        %v4517 = vmax.f32 %v4485, 0.0
        %v4518 = vmax.f32 %v4486, 0.0
        %v4519 = vmax.f32 %v4487, 0.0
        %v4520 = vmax.f32 %v4488, 0.0
        %v4521 = vmax.f32 %v4489, 0.0
        %v4522 = vmax.f32 %v4490, 0.0
        %v4523 = vmax.f32 %v4491, 0.0
        %v4524 = vmax.f32 %v4492, 0.0
        %v4525 = vmax.f32 %v4493, 0.0
        %v4526 = vmax.f32 %v4494, 0.0
        %v4527 = vmax.f32 %v4495, 0.0
        %v4528 = vmax.f32 %v4496, 0.0
        %v4529 = vmax.f32 %v4497, 0.0
        %v4530 = vmax.f32 %v4498, 0.0
        %v4531 = vmax.f32 %v4499, 0.0
        %v4532 = vmax.f32 %v4500, 0.0
        %v4533 = vmax.f32 %v4501, 0.0
        %v4534 = vmax.f32 %v4502, 0.0
        %v4535 = vmax.f32 %v4503, 0.0
        %v4536 = vmax.f32 %v4504, 0.0
        %v4537 = vmax.f32 %v4505, 0.0
        %v4538 = vmax.f32 %v4506, 0.0
        %v4539 = vmax.f32 %v4507, 0.0
        %v4540 = vmax.f32 %v4508, 0.0
        %v4541 = vmax.f32 %v4509, 0.0
        %v4542 = vmax.f32 %v4510, 0.0
        %v4543 = vmax.f32 %v4511, 0.0
        %v4544 = vmax.f32 %v4512, 0.0
        %v4545 = vmax.f32 %v4513, 0.0
        %v4546 = vld [vmem:[%s4412 + $0x1] sm:$0x1]
        %v4547 = vlaneseq
        %v4548 = vshrl.u32 %v4547, 7
        %v4549 = vsub.s32 0, %v4548
        %v4550 = vrot.slane %v4546, %v4549
        %v4551 = vmul.f32 %v4514, %v4550
        %v4552 = vmul.f32 %v4515, %v4550
        %v4553 = vmul.f32 %v4516, %v4550
        %v4554 = vmul.f32 %v4517, %v4550
        %v4555 = vmul.f32 %v4518, %v4550
        %v4556 = vmul.f32 %v4519, %v4550
        %v4557 = vmul.f32 %v4520, %v4550
        %v4558 = vmul.f32 %v4521, %v4550
        %v4559 = vmul.f32 %v4522, %v4550
        %v4560 = vmul.f32 %v4523, %v4550
        %v4561 = vmul.f32 %v4524, %v4550
        %v4562 = vmul.f32 %v4525, %v4550
        %v4563 = vmul.f32 %v4526, %v4550
        %v4564 = vmul.f32 %v4527, %v4550
        %v4565 = vmul.f32 %v4528, %v4550
        %v4566 = vmul.f32 %v4529, %v4550
        %v4567 = vmul.f32 %v4530, %v4550
        %v4568 = vmul.f32 %v4531, %v4550
        %v4569 = vmul.f32 %v4532, %v4550
        %v4570 = vmul.f32 %v4533, %v4550
        %v4571 = vmul.f32 %v4534, %v4550
        %v4572 = vmul.f32 %v4535, %v4550
        %v4573 = vmul.f32 %v4536, %v4550
        %v4574 = vmul.f32 %v4537, %v4550
        %v4575 = vmul.f32 %v4538, %v4550
        %v4576 = vmul.f32 %v4539, %v4550
        %v4577 = vmul.f32 %v4540, %v4550
        %v4578 = vmul.f32 %v4541, %v4550
        %v4579 = vmul.f32 %v4542, %v4550
        %v4580 = vmul.f32 %v4543, %v4550
        %v4581 = vmul.f32 %v4544, %v4550
        %v4582 = vmul.f32 %v4545, %v4550
        %v4583 = vadd.f32 %v4450, %v4551
        %v4584 = vadd.f32 %v4451, %v4552
        %v4585 = vadd.f32 %v4452, %v4553
        %v4586 = vadd.f32 %v4453, %v4554
        %v4587 = vadd.f32 %v4454, %v4555
        %v4588 = vadd.f32 %v4455, %v4556
        %v4589 = vadd.f32 %v4456, %v4557
        %v4590 = vadd.f32 %v4457, %v4558
        %v4591 = vadd.f32 %v4458, %v4559
        %v4592 = vadd.f32 %v4459, %v4560
        %v4593 = vadd.f32 %v4460, %v4561
        %v4594 = vadd.f32 %v4461, %v4562
        %v4595 = vadd.f32 %v4462, %v4563
        %v4596 = vadd.f32 %v4463, %v4564
        %v4597 = vadd.f32 %v4464, %v4565
        %v4598 = vadd.f32 %v4465, %v4566
        %v4599 = vadd.f32 %v4466, %v4567
        %v4600 = vadd.f32 %v4467, %v4568
        %v4601 = vadd.f32 %v4468, %v4569
        %v4602 = vadd.f32 %v4469, %v4570
        %v4603 = vadd.f32 %v4470, %v4571
        %v4604 = vadd.f32 %v4471, %v4572
        %v4605 = vadd.f32 %v4472, %v4573
        %v4606 = vadd.f32 %v4473, %v4574
        %v4607 = vadd.f32 %v4474, %v4575
        %v4608 = vadd.f32 %v4475, %v4576
        %v4609 = vadd.f32 %v4476, %v4577
        %v4610 = vadd.f32 %v4477, %v4578
        %v4611 = vadd.f32 %v4478, %v4579
        %v4612 = vadd.f32 %v4479, %v4580
        %v4613 = vadd.f32 %v4480, %v4581
        %v4614 = vadd.f32 %v4481, %v4582
        %v4615 = vld [vmem:[%s4347 + $0x2] sm:$0xff]
        %v4616 = vld [vmem:[%s4347 + $0xa] sm:$0xff]
        %v4617 = vld [vmem:[%s4347 + $0x1a] sm:$0xff]
        %v4618 = vld [vmem:[%s4347 + $0x22] sm:$0xff]
        %v4619 = vld [vmem:[%s4347 + $0x32] sm:$0xff]
        %v4620 = vld [vmem:[%s4347 + $0x3a] sm:$0xff]
        %v4621 = vld [vmem:[%s4347 + $0x4a] sm:$0xff]
        %v4622 = vld [vmem:[%s4347 + $0x52] sm:$0xff]
        %v4623 = vld [vmem:[%s4347 + $0x62] sm:$0xff]
        %v4624 = vld [vmem:[%s4347 + $0x6a] sm:$0xff]
        %v4625 = vld [vmem:[%s4347 + $0x7a] sm:$0xff]
        %v4626 = vld [vmem:[%s4347 + $0x82] sm:$0xff]
        %v4627 = vld [vmem:[%s4347 + $0x92] sm:$0xff]
        %v4628 = vld [vmem:[%s4347 + $0x9a] sm:$0xff]
        %v4629 = vld [vmem:[%s4347 + $0xaa] sm:$0xff]
        %v4630 = vld [vmem:[%s4347 + $0xb2] sm:$0xff]
        %v4631 = vld [vmem:[%s4347 + $0xc2] sm:$0xff]
        %v4632 = vld [vmem:[%s4347 + $0xca] sm:$0xff]
        %v4633 = vld [vmem:[%s4347 + $0xda] sm:$0xff]
        %v4634 = vld [vmem:[%s4347 + $0xe2] sm:$0xff]
        %v4635 = vld [vmem:[%s4347 + $0xf2] sm:$0xff]
        %v4636 = vld [vmem:[%s4347 + $0xfa] sm:$0xff]
        %v4637 = vld [vmem:[%s4347 + $0x10a] sm:$0xff]
        %v4638 = vld [vmem:[%s4347 + $0x112] sm:$0xff]
        %v4639 = vld [vmem:[%s4347 + $0x122] sm:$0xff]
        %v4640 = vld [vmem:[%s4347 + $0x12a] sm:$0xff]
        %v4641 = vld [vmem:[%s4347 + $0x13a] sm:$0xff]
        %v4642 = vld [vmem:[%s4347 + $0x142] sm:$0xff]
        %v4643 = vld [vmem:[%s4347 + $0x152] sm:$0xff]
        %v4644 = vld [vmem:[%s4347 + $0x15a] sm:$0xff]
        %v4645 = vld [vmem:[%s4347 + $0x16a] sm:$0xff]
        %v4646 = vld [vmem:[%s4347 + $0x172] sm:$0xff]
        %v4647 = vmax.f32 %v4615, 0.0
        %v4648 = vmax.f32 %v4616, 0.0
        %v4649 = vmax.f32 %v4617, 0.0
        %v4650 = vmax.f32 %v4618, 0.0
        %v4651 = vmax.f32 %v4619, 0.0
        %v4652 = vmax.f32 %v4620, 0.0
        %v4653 = vmax.f32 %v4621, 0.0
        %v4654 = vmax.f32 %v4622, 0.0
        %v4655 = vmax.f32 %v4623, 0.0
        %v4656 = vmax.f32 %v4624, 0.0
        %v4657 = vmax.f32 %v4625, 0.0
        %v4658 = vmax.f32 %v4626, 0.0
        %v4659 = vmax.f32 %v4627, 0.0
        %v4660 = vmax.f32 %v4628, 0.0
        %v4661 = vmax.f32 %v4629, 0.0
        %v4662 = vmax.f32 %v4630, 0.0
        %v4663 = vmax.f32 %v4631, 0.0
        %v4664 = vmax.f32 %v4632, 0.0
        %v4665 = vmax.f32 %v4633, 0.0
        %v4666 = vmax.f32 %v4634, 0.0
        %v4667 = vmax.f32 %v4635, 0.0
        %v4668 = vmax.f32 %v4636, 0.0
        %v4669 = vmax.f32 %v4637, 0.0
        %v4670 = vmax.f32 %v4638, 0.0
        %v4671 = vmax.f32 %v4639, 0.0
        %v4672 = vmax.f32 %v4640, 0.0
        %v4673 = vmax.f32 %v4641, 0.0
        %v4674 = vmax.f32 %v4642, 0.0
        %v4675 = vmax.f32 %v4643, 0.0
        %v4676 = vmax.f32 %v4644, 0.0
        %v4677 = vmax.f32 %v4645, 0.0
        %v4678 = vmax.f32 %v4646, 0.0
        %v4679 = vld [vmem:[%s4412 + $0x2] sm:$0x1]
        %v4680 = vlaneseq
        %v4681 = vshrl.u32 %v4680, 7
        %v4682 = vsub.s32 0, %v4681
        %v4683 = vrot.slane %v4679, %v4682
        %v4684 = vmul.f32 %v4647, %v4683
        %v4685 = vmul.f32 %v4648, %v4683
        %v4686 = vmul.f32 %v4649, %v4683
        %v4687 = vmul.f32 %v4650, %v4683
        %v4688 = vmul.f32 %v4651, %v4683
        %v4689 = vmul.f32 %v4652, %v4683
        %v4690 = vmul.f32 %v4653, %v4683
        %v4691 = vmul.f32 %v4654, %v4683
        %v4692 = vmul.f32 %v4655, %v4683
        %v4693 = vmul.f32 %v4656, %v4683
        %v4694 = vmul.f32 %v4657, %v4683
        %v4695 = vmul.f32 %v4658, %v4683
        %v4696 = vmul.f32 %v4659, %v4683
        %v4697 = vmul.f32 %v4660, %v4683
        %v4698 = vmul.f32 %v4661, %v4683
        %v4699 = vmul.f32 %v4662, %v4683
        %v4700 = vmul.f32 %v4663, %v4683
        %v4701 = vmul.f32 %v4664, %v4683
        %v4702 = vmul.f32 %v4665, %v4683
        %v4703 = vmul.f32 %v4666, %v4683
        %v4704 = vmul.f32 %v4667, %v4683
        %v4705 = vmul.f32 %v4668, %v4683
        %v4706 = vmul.f32 %v4669, %v4683
        %v4707 = vmul.f32 %v4670, %v4683
        %v4708 = vmul.f32 %v4671, %v4683
        %v4709 = vmul.f32 %v4672, %v4683
        %v4710 = vmul.f32 %v4673, %v4683
        %v4711 = vmul.f32 %v4674, %v4683
        %v4712 = vmul.f32 %v4675, %v4683
        %v4713 = vmul.f32 %v4676, %v4683
        %v4714 = vmul.f32 %v4677, %v4683
        %v4715 = vmul.f32 %v4678, %v4683
        %v4716 = vadd.f32 %v4583, %v4684
        %v4717 = vadd.f32 %v4584, %v4685
        %v4718 = vadd.f32 %v4585, %v4686
        %v4719 = vadd.f32 %v4586, %v4687
        %v4720 = vadd.f32 %v4587, %v4688
        %v4721 = vadd.f32 %v4588, %v4689
        %v4722 = vadd.f32 %v4589, %v4690
        %v4723 = vadd.f32 %v4590, %v4691
        %v4724 = vadd.f32 %v4591, %v4692
        %v4725 = vadd.f32 %v4592, %v4693
        %v4726 = vadd.f32 %v4593, %v4694
        %v4727 = vadd.f32 %v4594, %v4695
        %v4728 = vadd.f32 %v4595, %v4696
        %v4729 = vadd.f32 %v4596, %v4697
        %v4730 = vadd.f32 %v4597, %v4698
        %v4731 = vadd.f32 %v4598, %v4699
        %v4732 = vadd.f32 %v4599, %v4700
        %v4733 = vadd.f32 %v4600, %v4701
        %v4734 = vadd.f32 %v4601, %v4702
        %v4735 = vadd.f32 %v4602, %v4703
        %v4736 = vadd.f32 %v4603, %v4704
        %v4737 = vadd.f32 %v4604, %v4705
        %v4738 = vadd.f32 %v4605, %v4706
        %v4739 = vadd.f32 %v4606, %v4707
        %v4740 = vadd.f32 %v4607, %v4708
        %v4741 = vadd.f32 %v4608, %v4709
        %v4742 = vadd.f32 %v4609, %v4710
        %v4743 = vadd.f32 %v4610, %v4711
        %v4744 = vadd.f32 %v4611, %v4712
        %v4745 = vadd.f32 %v4612, %v4713
        %v4746 = vadd.f32 %v4613, %v4714
        %v4747 = vadd.f32 %v4614, %v4715
        %v4748 = vpack.c.bf16 %v4717, %v4716
        %v4749 = vpack.c.bf16 %v4719, %v4718
        %v4750 = vpack.c.bf16 %v4721, %v4720
        %v4751 = vpack.c.bf16 %v4723, %v4722
        %v4752 = vpack.c.bf16 %v4725, %v4724
        %v4753 = vpack.c.bf16 %v4727, %v4726
        %v4754 = vpack.c.bf16 %v4729, %v4728
        %v4755 = vpack.c.bf16 %v4731, %v4730
        %v4756 = vpack.c.bf16 %v4733, %v4732
        %v4757 = vpack.c.bf16 %v4735, %v4734
        %v4758 = vpack.c.bf16 %v4737, %v4736
        %v4759 = vpack.c.bf16 %v4739, %v4738
        %v4760 = vpack.c.bf16 %v4741, %v4740
        %v4761 = vpack.c.bf16 %v4743, %v4742
        %v4762 = vpack.c.bf16 %v4745, %v4744
        %v4763 = vpack.c.bf16 %v4747, %v4746
        %v4764 = vld [vmem:[#allocation16] sm:$0xf]
        %v4765 = vld [vmem:[#allocation16 + $0x4] sm:$0xf]
        %v4766 = vld [vmem:[#allocation16 + $0x8] sm:$0xf]
        %v4767 = vld [vmem:[#allocation16 + $0xc] sm:$0xf]
        %v4768 = vld [vmem:[#allocation16 + $0x10] sm:$0xf]
        %v4769 = vld [vmem:[#allocation16 + $0x14] sm:$0xf]
        %v4770 = vld [vmem:[#allocation16 + $0x18] sm:$0xf]
        %v4771 = vld [vmem:[#allocation16 + $0x1c] sm:$0xf]
        %v4772 = vld [vmem:[#allocation16 + $0x20] sm:$0xf]
        %v4773 = vld [vmem:[#allocation16 + $0x24] sm:$0xf]
        %v4774 = vld [vmem:[#allocation16 + $0x28] sm:$0xf]
        %v4775 = vld [vmem:[#allocation16 + $0x2c] sm:$0xf]
        %v4776 = vld [vmem:[#allocation16 + $0x30] sm:$0xf]
        %v4777 = vld [vmem:[#allocation16 + $0x34] sm:$0xf]
        %v4778 = vld [vmem:[#allocation16 + $0x38] sm:$0xf]
        %v4779 = vld [vmem:[#allocation16 + $0x3c] sm:$0xf]
        %v4780 = vld [vmem:[%s9] sm:$0x1]
        %v4782 = vlaneseq
        %v4783 = vshrl.u32 %v4782, 7
        %v4784 = vsub.s32 0, %v4783
        %v4785 = vrot.slane %v4780, %v4784
        %v4803 = vunpack.c.l.b16 %v4764
        %v4804 = vunpack.c.l.b16 %v4765
        %v4805 = vunpack.c.l.b16 %v4766
        %v4806 = vunpack.c.l.b16 %v4767
        %v4807 = vunpack.c.l.b16 %v4768
        %v4808 = vunpack.c.l.b16 %v4769
        %v4809 = vunpack.c.l.b16 %v4770
        %v4810 = vunpack.c.l.b16 %v4771
        %v4811 = vunpack.c.l.b16 %v4772
        %v4812 = vunpack.c.l.b16 %v4773
        %v4813 = vunpack.c.l.b16 %v4774
        %v4814 = vunpack.c.l.b16 %v4775
        %v4815 = vunpack.c.l.b16 %v4776
        %v4816 = vunpack.c.l.b16 %v4777
        %v4817 = vunpack.c.l.b16 %v4778
        %v4818 = vunpack.c.l.b16 %v4779
        %v4819 = vpack.c.b16 %v4804, %v4803
        %v4820 = vpack.c.b16 %v4806, %v4805
        %v4821 = vpack.c.b16 %v4808, %v4807
        %v4822 = vpack.c.b16 %v4810, %v4809
        %v4823 = vpack.c.b16 %v4812, %v4811
        %v4824 = vpack.c.b16 %v4814, %v4813
        %v4825 = vpack.c.b16 %v4816, %v4815
        %v4826 = vpack.c.b16 %v4818, %v4817
        %4835 = vmatprep.subr.bf16.mxu0 0
        %4836 = vmatpush1.bf16.msra.mxu0 %v4826
        %4837 = vmatprep.subr.bf16.mxu0 0
        %4838 = vmatpush1.bf16.msra.mxu0 %v4825
        %4839 = vmatprep.subr.bf16.mxu0 0
        %4840 = vmatpush1.bf16.msra.mxu0 %v4824
        %4841 = vmatprep.subr.bf16.mxu0 0
        %4842 = vmatpush1.bf16.msra.mxu0 %v4823
        %4843 = vmatprep.subr.bf16.mxu0 0
        %4844 = vmatpush1.bf16.msra.mxu0 %v4822
        %4845 = vmatprep.subr.bf16.mxu0 0
        %4846 = vmatpush1.bf16.msra.mxu0 %v4821
        %4847 = vmatprep.subr.bf16.mxu0 0
        %4848 = vmatpush1.bf16.msra.mxu0 %v4820
        %4849 = vmatprep.subr.bf16.mxu0 0
        %4850 = vmatpush1.bf16.msra.mxu0 %v4819
        %4851 = vmatprep.subr.bf16.mxu0 0
        %4852 = vmatpush2.bf16.msra.mxu0 0
        %4853 = vmatprep.subr.bf16.mxu0 0
        %4854 = vmatpush2.bf16.msra.mxu0 0
        %4855 = vmatprep.subr.bf16.mxu0 0
        %4856 = vmatpush2.bf16.msra.mxu0 0
        %4857 = vmatprep.subr.bf16.mxu0 0
        %4858 = vmatpush2.bf16.msra.mxu0 0
        %4859 = vmatprep.subr.bf16.mxu0 0
        %4860 = vmatpush2.bf16.msra.mxu0 0
        %4861 = vmatprep.subr.bf16.mxu0 0
        %4862 = vmatpush2.bf16.msra.mxu0 0
        %4863 = vmatprep.subr.bf16.mxu0 0
        %4864 = vmatpush2.bf16.msra.mxu0 0
        %4865 = vmatprep.subr.bf16.mxu0 0
        %4866 = vmatpush2.bf16.msra.mxu0 0
        %4867 = vmatprep.mubr.bf16.mxu0 0
        %4868 = vmatmul.mubr.bf16.gmra.mxu0 %v4748
        %v4869 = vpop.f32.mrf.mxu0
        %v4870 = vadd.f32 %v4785, %v4869
        %v4871 = vpop.f32.mrf.mxu0
        %v4872 = vpop.f32.mrf.mxu0
        %v4873 = vadd.f32 %v4785, %v4872
        %v4874 = vpop.f32.mrf.mxu0
        %4875 = vmatprep.mubr.bf16.mxu0 0
        %4876 = vmatmul.mubr.bf16.gmra.mxu0 %v4749
        %v4877 = vpop.f32.mrf.mxu0
        %v4878 = vadd.f32 %v4785, %v4877
        %v4879 = vpop.f32.mrf.mxu0
        %v4880 = vpop.f32.mrf.mxu0
        %v4881 = vadd.f32 %v4785, %v4880
        %v4882 = vpop.f32.mrf.mxu0
        %4883 = vmatprep.mubr.bf16.mxu0 0
        %4884 = vmatmul.mubr.bf16.gmra.mxu0 %v4750
        %v4885 = vpop.f32.mrf.mxu0
        %v4886 = vadd.f32 %v4785, %v4885
        %v4887 = vpop.f32.mrf.mxu0
        %v4888 = vpop.f32.mrf.mxu0
        %v4889 = vadd.f32 %v4785, %v4888
        %v4890 = vpop.f32.mrf.mxu0
        %4891 = vmatprep.mubr.bf16.mxu0 0
        %4892 = vmatmul.mubr.bf16.gmra.mxu0 %v4751
        %v4893 = vpop.f32.mrf.mxu0
        %v4894 = vadd.f32 %v4785, %v4893
        %v4895 = vpop.f32.mrf.mxu0
        %v4896 = vpop.f32.mrf.mxu0
        %v4897 = vadd.f32 %v4785, %v4896
        %v4898 = vpop.f32.mrf.mxu0
        %4899 = vmatprep.mubr.bf16.mxu0 0
        %4900 = vmatmul.mubr.bf16.gmra.mxu0 %v4752
        %v4901 = vpop.f32.mrf.mxu0
        %v4902 = vadd.f32 %v4785, %v4901
        %v4903 = vpop.f32.mrf.mxu0
        %v4904 = vpop.f32.mrf.mxu0
        %v4905 = vadd.f32 %v4785, %v4904
        %v4906 = vpop.f32.mrf.mxu0
        %4907 = vmatprep.mubr.bf16.mxu0 0
        %4908 = vmatmul.mubr.bf16.gmra.mxu0 %v4753
        %v4909 = vpop.f32.mrf.mxu0
        %v4910 = vadd.f32 %v4785, %v4909
        %v4911 = vpop.f32.mrf.mxu0
        %v4912 = vpop.f32.mrf.mxu0
        %v4913 = vadd.f32 %v4785, %v4912
        %v4914 = vpop.f32.mrf.mxu0
        %4915 = vmatprep.mubr.bf16.mxu0 0
        %4916 = vmatmul.mubr.bf16.gmra.mxu0 %v4754
        %v4917 = vpop.f32.mrf.mxu0
        %v4918 = vadd.f32 %v4785, %v4917
        %v4919 = vpop.f32.mrf.mxu0
        %v4920 = vpop.f32.mrf.mxu0
        %v4921 = vadd.f32 %v4785, %v4920
        %v4922 = vpop.f32.mrf.mxu0
        %4923 = vmatprep.mubr.bf16.mxu0 0
        %4924 = vmatmul.mubr.bf16.gmra.mxu0 %v4755
        %v4925 = vpop.f32.mrf.mxu0
        %v4926 = vadd.f32 %v4785, %v4925
        %v4927 = vpop.f32.mrf.mxu0
        %v4928 = vpop.f32.mrf.mxu0
        %v4929 = vadd.f32 %v4785, %v4928
        %v4930 = vpop.f32.mrf.mxu0
        %4931 = vmatprep.mubr.bf16.mxu0 0
        %4932 = vmatmul.mubr.bf16.gmra.mxu0 %v4756
        %v4933 = vpop.f32.mrf.mxu0
        %v4934 = vadd.f32 %v4785, %v4933
        %v4935 = vpop.f32.mrf.mxu0
        %v4936 = vpop.f32.mrf.mxu0
        %v4937 = vadd.f32 %v4785, %v4936
        %v4938 = vpop.f32.mrf.mxu0
        %4939 = vmatprep.mubr.bf16.mxu0 0
        %4940 = vmatmul.mubr.bf16.gmra.mxu0 %v4757
        %v4941 = vpop.f32.mrf.mxu0
        %v4942 = vadd.f32 %v4785, %v4941
        %v4943 = vpop.f32.mrf.mxu0
        %v4944 = vpop.f32.mrf.mxu0
        %v4945 = vadd.f32 %v4785, %v4944
        %v4946 = vpop.f32.mrf.mxu0
        %4947 = vmatprep.mubr.bf16.mxu0 0
        %4948 = vmatmul.mubr.bf16.gmra.mxu0 %v4758
        %v4949 = vpop.f32.mrf.mxu0
        %v4950 = vadd.f32 %v4785, %v4949
        %v4951 = vpop.f32.mrf.mxu0
        %v4952 = vpop.f32.mrf.mxu0
        %v4953 = vadd.f32 %v4785, %v4952
        %v4954 = vpop.f32.mrf.mxu0
        %4955 = vmatprep.mubr.bf16.mxu0 0
        %4956 = vmatmul.mubr.bf16.gmra.mxu0 %v4759
        %v4957 = vpop.f32.mrf.mxu0
        %v4958 = vadd.f32 %v4785, %v4957
        %v4959 = vpop.f32.mrf.mxu0
        %v4960 = vpop.f32.mrf.mxu0
        %v4961 = vadd.f32 %v4785, %v4960
        %v4962 = vpop.f32.mrf.mxu0
        %4963 = vmatprep.mubr.bf16.mxu0 0
        %4964 = vmatmul.mubr.bf16.gmra.mxu0 %v4760
        %v4965 = vpop.f32.mrf.mxu0
        %v4966 = vadd.f32 %v4785, %v4965
        %v4967 = vpop.f32.mrf.mxu0
        %v4968 = vpop.f32.mrf.mxu0
        %v4969 = vadd.f32 %v4785, %v4968
        %v4970 = vpop.f32.mrf.mxu0
        %4971 = vmatprep.mubr.bf16.mxu0 0
        %4972 = vmatmul.mubr.bf16.gmra.mxu0 %v4761
        %v4973 = vpop.f32.mrf.mxu0
        %v4974 = vadd.f32 %v4785, %v4973
        %v4975 = vpop.f32.mrf.mxu0
        %v4976 = vpop.f32.mrf.mxu0
        %v4977 = vadd.f32 %v4785, %v4976
        %v4978 = vpop.f32.mrf.mxu0
        %4979 = vmatprep.mubr.bf16.mxu0 0
        %4980 = vmatmul.mubr.bf16.gmra.mxu0 %v4762
        %v4981 = vpop.f32.mrf.mxu0
        %v4982 = vadd.f32 %v4785, %v4981
        %v4983 = vpop.f32.mrf.mxu0
        %v4984 = vpop.f32.mrf.mxu0
        %v4985 = vadd.f32 %v4785, %v4984
        %v4986 = vpop.f32.mrf.mxu0
        %4987 = vmatprep.mubr.bf16.mxu0 0
        %4988 = vmatmul.mubr.bf16.gmra.mxu0 %v4763
        %v4989 = vpop.f32.mrf.mxu0
        %v4990 = vadd.f32 %v4785, %v4989
        %v4991 = vpop.f32.mrf.mxu0
        %v4992 = vpop.f32.mrf.mxu0
        %v4993 = vadd.f32 %v4785, %v4992
        %v4994 = vpop.f32.mrf.mxu0
        %4995 = vdwg.mxu0
        %4996 = vst [vmem:[%s475] sm:$0xff] %v4870
        %4997 = vst [vmem:[%s475 + $0x8] sm:$0xff] %v4873
        %4998 = vst [vmem:[%s475 + $0x10] sm:$0xff] %v4878
        %4999 = vst [vmem:[%s475 + $0x18] sm:$0xff] %v4881
        %5000 = vst [vmem:[%s475 + $0x20] sm:$0xff] %v4886
        %5001 = vst [vmem:[%s475 + $0x28] sm:$0xff] %v4889
        %5002 = vst [vmem:[%s475 + $0x30] sm:$0xff] %v4894
        %5003 = vst [vmem:[%s475 + $0x38] sm:$0xff] %v4897
        %5004 = vst [vmem:[%s475 + $0x40] sm:$0xff] %v4902
        %5005 = vst [vmem:[%s475 + $0x48] sm:$0xff] %v4905
        %5006 = vst [vmem:[%s475 + $0x50] sm:$0xff] %v4910
        %5007 = vst [vmem:[%s475 + $0x58] sm:$0xff] %v4913
        %5008 = vst [vmem:[%s475 + $0x60] sm:$0xff] %v4918
        %5009 = vst [vmem:[%s475 + $0x68] sm:$0xff] %v4921
        %5010 = vst [vmem:[%s475 + $0x70] sm:$0xff] %v4926
        %5011 = vst [vmem:[%s475 + $0x78] sm:$0xff] %v4929
        %5012 = vst [vmem:[%s475 + $0x80] sm:$0xff] %v4934
        %5013 = vst [vmem:[%s475 + $0x88] sm:$0xff] %v4937
        %5014 = vst [vmem:[%s475 + $0x90] sm:$0xff] %v4942
        %5015 = vst [vmem:[%s475 + $0x98] sm:$0xff] %v4945
        %5016 = vst [vmem:[%s475 + $0xa0] sm:$0xff] %v4950
        %5017 = vst [vmem:[%s475 + $0xa8] sm:$0xff] %v4953
        %5018 = vst [vmem:[%s475 + $0xb0] sm:$0xff] %v4958
        %5019 = vst [vmem:[%s475 + $0xb8] sm:$0xff] %v4961
        %5020 = vst [vmem:[%s475 + $0xc0] sm:$0xff] %v4966
        %5021 = vst [vmem:[%s475 + $0xc8] sm:$0xff] %v4969
        %5022 = vst [vmem:[%s475 + $0xd0] sm:$0xff] %v4974
        %5023 = vst [vmem:[%s475 + $0xd8] sm:$0xff] %v4977
        %5024 = vst [vmem:[%s475 + $0xe0] sm:$0xff] %v4982
        %5025 = vst [vmem:[%s475 + $0xe8] sm:$0xff] %v4985
        %5026 = vst [vmem:[%s475 + $0xf0] sm:$0xff] %v4990
        %5027 = vst [vmem:[%s475 + $0xf8] sm:$0xff] %v4993
        %s5028 = sand.u32 %s254, 1
        %s5029 = scalar_lea.sflag [#allocation6], %s5028
        %s5030 = sand.u32 %s254, 1
        %s5031 = smul.addr %s5030, 256
        %s5032 = scalar_lea.vmem [#allocation18], %s5031
        // Predicated region
        $region93: #{tpu_custom_call.1} parent=59 // pred_check
          %p5033 = pneg %p264
        $region94: #{tpu_custom_call.1} parent=59 // pred_check_branch
          %5035 = sbr.rel (%p5033) target = $region96
        $region95: #{tpu_custom_call.1} parent=59 // pred_region
          %s5037 = ssub.s32 4096, 4096
          %5038 = vsyncadd %s5029, %s5037
          %s5039 = smul.addr %s31, 32
          %s5040 = smul.addr %s5039, 128
          %s5041 = scalar_lea.hbm %s10, %s5040
          %s5042 = sshll.u32 %s5032, 4
          %s5043 = int_to_ptr.vmem [resolvable:$true] %s5042
          %5048 = dma.vmem_to_hbm [thread:$0]  %s5043, 4096, %s5041, %s5029, 128, 128, 8
        $region96: #{tpu_custom_call.1} parent=59 // pred_fallthru
          _
      $region60: #{tpu_custom_call.1} parent=5 // pred_fallthru
        _
      %p5049 = scmp.le.s32.totalorder 2, %s26
      // Predicated region
      $region97: #{tpu_custom_call.1} parent=5 // pred_check
        %p5050 = pneg %p5049
      $region98: #{tpu_custom_call.1} parent=5 // pred_check_branch
        %5052 = sbr.rel (%p5050) target = $region100
      $region99: #{tpu_custom_call.1} parent=5 // pred_region
        %s5053 = ssub.s32 %s26, 2
        // Predicated region
        $region101: #{tpu_custom_call.1} parent=99 // pred_check
          %p5054 = pneg %p270
        $region102: #{tpu_custom_call.1} parent=99 // pred_check_branch
          %5056 = sbr.rel (%p5054) target = $region104
        $region103: #{tpu_custom_call.1} parent=99 // pred_region
          %s5057 = sand.u32 %s255, 1
          %s5058 = scalar_lea.sflag [#allocation6], %s5057
          %s5059 = sand.u32 %s255, 1
          %s5060 = smul.addr %s5059, 256
          %s5061 = scalar_lea.vmem [#allocation18], %s5060
          %5062 = dma.done %s5058, 4096
        $region104: #{tpu_custom_call.1} parent=99 // pred_fallthru
          _
      $region100: #{tpu_custom_call.1} parent=5 // pred_fallthru
        _
    $region6: #{tpu_custom_call.1} parent=1 // loop_footer
      %s30 = sadd.s32 1, %s26
    $region7: #{tpu_custom_call.1} parent=1 // loop_footer_branch
      %25 = sbr.rel target = $region3
    $region8: #{tpu_custom_call.1} parent=1 // loop_exit
      _
    %5063 = vsyncpa [#allocation5], 1
    %s5064 = scalar_lea.sflag [#allocation5], 1
    %5065 = vsyncpa %s5064, 1
    %5066 = vsyncpa [#allocation8], 1
    %5067 = vsyncpa [#allocation11], 1
    %5068 = vsyncpa [#allocation14], 1
    %5069 = vsyncpa [#allocation17], 1
    %5070 = vsyncpa [#allocation6], 1
    %s5071 = scalar_lea.sflag [#allocation6], 1
    %5072 = vsyncpa %s5071, 1

</llo_original>
